<compile_context>
chip_gen: v5e
topology: v5e:2x2
jax: 0.10.0
libtpu: 0.0.40
codegen_flags: <defaults>
</compile_context>

<pallas_src>
import functools

import jax
import jax.numpy as jnp
from jax.experimental import pallas as pl
from jax.experimental.pallas import tpu as pltpu


# ------------------------- fused WordModel kernel -----------------------------

def _make_word_model_kernel(num_layers, T, B, H):
    """Fused kernel: hoisted input projection + wavefront LSTM stack + tied decoder."""
    L = num_layers
    G = 4 * H

    def kernel(x_ref, wih0_ref, b0_ref, wblk_ref, brest_ref, embw_ref,
               out_ref, gx_sc, hseq_sc):
        # ---- 1) Layer-0 input projection for ALL time steps (one batched MXU matmul).
        gx_sc[...] = (jnp.dot(x_ref[...], wih0_ref[...],
                              preferred_element_type=jnp.float32)
                      + b0_ref[...])                                  # (T*B, 4H)

        wblk = wblk_ref[...]                                          # (L*H, L*4H)
        # Hoisted broadcast of the layer>=1 biases (layer-0 bias is inside gx_sc).
        brest = jnp.broadcast_to(brest_ref[...], (B, L * G))          # (B, L*4H)

        h = [jnp.zeros((B, H), jnp.float32) for _ in range(L)]
        c = [jnp.zeros((B, H), jnp.float32) for _ in range(L)]

        # ---- 2) Wavefront recurrence: iteration `it` advances layer l at step (it - l).
        #         Entering iteration `it`, h[l] holds layer l's state at step (it-1-l),
        #         which is exactly what layer l (recurrent input) and layer l+1 (feed
        #         input) need — so one block matmul on the concatenated carries feeds
        #         every active layer of this iteration.
        for it in range(T + L - 1):                                   # fully unrolled
            lhs = jnp.concatenate(h, axis=1)                          # (B, L*H), old vals
            g_all = jnp.dot(lhs, wblk,
                            preferred_element_type=jnp.float32) + brest
            for l in range(L):
                step = it - l
                if 0 <= step < T:                                     # static predicate
                    g = g_all[:, l * G:(l + 1) * G]                   # (B, 4H)
                    if l == 0:
                        g = g + gx_sc[step * B:(step + 1) * B, :]
                    i_g = jax.nn.sigmoid(g[:, 0 * H:1 * H])
                    f_g = jax.nn.sigmoid(g[:, 1 * H:2 * H])
                    g_g = jnp.tanh(g[:, 2 * H:3 * H])
                    o_g = jax.nn.sigmoid(g[:, 3 * H:4 * H])
                    c[l] = f_g * c[l] + i_g * g_g
                    h[l] = o_g * jnp.tanh(c[l])
                    if l == L - 1:
                        hseq_sc[step * B:(step + 1) * B, :] = h[l]

        # ---- 3) Tied decoder: logits = h_seq @ emb_weight^T (contract on H);
        #         fc.bias == 0 is skipped; output is lane-dense (V multiple of 128).
        out_ref[...] = jax.lax.dot_general(
            hseq_sc[...], embw_ref[...],
            dimension_numbers=(((1,), (1,)), ((), ())),
            preferred_element_type=jnp.float32).astype(out_ref.dtype)

    return kernel


def word_model_fused(x2d, wih0, b0, wblk, brest, emb_weight, *, T, B, num_layers):
    """x2d: (T*B, E) fp32 embedded inputs; returns logits (T*B, V) fp32."""
    TB, E = x2d.shape
    V, H = emb_weight.shape

    # Layout sanity (keeps (8,128) tiling clean; tying requires E == H anyway).
    assert TB == T * B
    assert E == H, "weight tying requires embedding_dim == hidden_dim"
    assert H % 128 == 0 and V % 128 == 0 and TB % 8 == 0

    kernel = _make_word_model_kernel(num_layers, T, B, H)
    return pl.pallas_call(
        kernel,
        out_shape=jax.ShapeDtypeStruct((TB, V), jnp.float32),
        grid_spec=pltpu.PrefetchScalarGridSpec(
            num_scalar_prefetch=0,
            grid=(1,),                                   # single invocation, all in VMEM
            in_specs=[
                pl.BlockSpec(x2d.shape, lambda i: (0, 0)),
                pl.BlockSpec(wih0.shape, lambda i: (0, 0)),
                pl.BlockSpec(b0.shape, lambda i: (0, 0)),
                pl.BlockSpec(wblk.shape, lambda i: (0, 0)),
                pl.BlockSpec(brest.shape, lambda i: (0, 0)),
                pl.BlockSpec(emb_weight.shape, lambda i: (0, 0)),
            ],
            out_specs=pl.BlockSpec((TB, V), lambda i: (0, 0)),
            scratch_shapes=[
                pltpu.VMEM((TB, 4 * H), jnp.float32),    # gx_sc: hoisted layer-0 gates
                pltpu.VMEM((TB, H), jnp.float32),        # hseq_sc: last-layer outputs
            ],
        ),
        compiler_params=pltpu.CompilerParams(
            dimension_semantics=("arbitrary",)),
    )(x2d, wih0, b0, wblk, brest, emb_weight)


# ------------------------------- WordModel -----------------------------------

class WordModelPallas:
    def __init__(self, vocab_size=512, embedding_dim=128, hidden_dim=128,
                 num_layers=2, seed=0):
        assert embedding_dim == hidden_dim, "weight tying requires E == H"
        self.vocab_size = vocab_size
        self.embedding_dim = embedding_dim
        self.hidden_dim = hidden_dim
        self.num_layers = num_layers

        key = jax.random.PRNGKey(seed)
        k_emb, key = jax.random.split(key)
        # embedding.weight.data.uniform_(-0.1, 0.1); fc.weight tied; fc.bias = 0.
        self.emb_weight = jax.random.uniform(
            k_emb, (vocab_size, embedding_dim), jnp.float32, -0.1, 0.1)

        # LSTM params (PyTorch default init U(-1/sqrt(H), 1/sqrt(H))), gate order
        # i, f, g, o; stored pre-transposed as (in_dim, 4H); b = b_ih + b_hh.
        bound = 1.0 / (hidden_dim ** 0.5)
        self.lstm_params = []
        for layer in range(num_layers):
            in_dim = embedding_dim if layer == 0 else hidden_dim
            k1, k2, k3, k4, key = jax.random.split(key, 5)
            w_ih = jax.random.uniform(k1, (in_dim, 4 * hidden_dim),
                                      jnp.float32, -bound, bound)
            w_hh = jax.random.uniform(k2, (hidden_dim, 4 * hidden_dim),
                                      jnp.float32, -bound, bound)
            b_ih = jax.random.uniform(k3, (1, 4 * hidden_dim),
                                      jnp.float32, -bound, bound)
            b_hh = jax.random.uniform(k4, (1, 4 * hidden_dim),
                                      jnp.float32, -bound, bound)
            self.lstm_params.append((w_ih, w_hh, b_ih + b_hh))

        # Fused block weight/bias for the wavefront recurrence:
        #   row block l-1, col block l -> W_ih_l   (feed from layer below)
        #   row block l,   col block l -> W_hh_l   (recurrent)
        # Layer-0's W_ih / bias are NOT here — they live in the hoisted projection.
        H, L = hidden_dim, num_layers
        wblk = jnp.zeros((L * H, L * 4 * H), jnp.float32)
        brest = jnp.zeros((1, L * 4 * H), jnp.float32)
        for l, (w_ih, w_hh, b) in enumerate(self.lstm_params):
            wblk = wblk.at[l * H:(l + 1) * H, l * 4 * H:(l + 1) * 4 * H].set(w_hh)
            if l >= 1:
                wblk = wblk.at[(l - 1) * H:l * H, l * 4 * H:(l + 1) * 4 * H].set(w_ih)
                brest = brest.at[:, l * 4 * H:(l + 1) * 4 * H].set(b)
        self.w_block = wblk
        self.b_rest = brest
        self.w_ih0 = self.lstm_params[0][0]
        self.b0 = self.lstm_params[0][2]

    @functools.partial(jax.jit, static_argnums=0)
    def forward(self, x_tokens):
        """x_tokens: (T, B) int32 -> logits (T, B, V) float32."""
        T, B = x_tokens.shape
        # Embedding lookup (plain JAX gather glue); dropout == identity (eval mode).
        emb = self.emb_weight[x_tokens]                          # (T, B, E)
        x2d = emb.reshape(T * B, self.embedding_dim)
        # Fused LSTM stack (zero initial h/c, as in init_hidden()) + tied decoder.
        logits = word_model_fused(x2d, self.w_ih0, self.b0, self.w_block,
                                  self.b_rest, self.emb_weight,
                                  T=T, B=B, num_layers=self.num_layers)
        return logits.reshape(T, B, self.vocab_size)


# ------------------------- pure-JAX reference (for checking) ------------------

def _reference_forward(x_tokens, emb_weight, lstm_params):
    T, B = x_tokens.shape
    layer_in = emb_weight[x_tokens]                              # (T, B, E)
    for (w_ih, w_hh, b) in lstm_params:
        H = w_hh.shape[0]

        def cell(carry, x_t, w_ih=w_ih, w_hh=w_hh, b=b, H=H):
            h, c = carry
            g = x_t @ w_ih + h @ w_hh + b[0]
            i = jax.nn.sigmoid(g[:, 0 * H:1 * H])
            f = jax.nn.sigmoid(g[:, 1 * H:2 * H])
            gg = jnp.tanh(g[:, 2 * H:3 * H])
            o = jax.nn.sigmoid(g[:, 3 * H:4 * H])
            c = f * c + i * gg
            h = o * jnp.tanh(c)
            return (h, c), h

        init = (jnp.zeros((B, H), jnp.float32), jnp.zeros((B, H), jnp.float32))
        _, layer_in = jax.lax.scan(cell, init, layer_in)
    return jnp.einsum('tbh,vh->tbv', layer_in, emb_weight)


# --------------------------------- main ---------------------------------------

if __name__ == "__main__":
    T, B = 8, 8
    model = WordModelPallas(vocab_size=512, embedding_dim=128,
                            hidden_dim=128, num_layers=2, seed=0)

    key = jax.random.PRNGKey(0)
    x = jax.random.randint(key, (T, B), 0, model.vocab_size, dtype=jnp.int32)

    logits = model.forward(x)
    jax.block_until_ready(logits)

    assert logits.shape == (T, B, model.vocab_size)
    assert logits.dtype == jnp.float32
    assert bool(jnp.all(jnp.isfinite(logits)))

    ref = _reference_forward(x, model.emb_weight, model.lstm_params)
    max_err = float(jnp.max(jnp.abs(logits - ref)))
    assert bool(jnp.allclose(logits, ref, atol=2e-3, rtol=2e-3)), max_err

    print("KERNEL_OK")
</pallas_src>

<mosaic_0001>
module attributes {stable_mosaic.version = 11 : i64} {
  func.func @kernel(%arg0: i32, %arg1: memref<64x128xf32, #tpu.memory_space<vmem>>, %arg2: memref<128x512xf32, #tpu.memory_space<vmem>>, %arg3: memref<1x512xf32, #tpu.memory_space<vmem>>, %arg4: memref<256x1024xf32, #tpu.memory_space<vmem>>, %arg5: memref<1x1024xf32, #tpu.memory_space<vmem>>, %arg6: memref<512x128xf32, #tpu.memory_space<vmem>>, %arg7: memref<64x512xf32, #tpu.memory_space<vmem>>, %arg8: memref<64x512xf32, #tpu.memory_space<vmem>>, %arg9: memref<64x128xf32, #tpu.memory_space<vmem>>) attributes {dimension_semantics = [#tpu.dimension_semantics<arbitrary>], iteration_bounds = array<i64: 1>, scalar_prefetch = 0 : i64, scratch_operands = 2 : i64, tpu.core_type = #tpu.core_type<tc>, window_params = [{pipeline_mode = #tpu.pipeline_mode<synchronous>, transform_indices = @transform_0, window_bounds = array<i64: 64, 128>}, {pipeline_mode = #tpu.pipeline_mode<synchronous>, transform_indices = @transform_1, window_bounds = array<i64: 128, 512>}, {pipeline_mode = #tpu.pipeline_mode<synchronous>, transform_indices = @transform_2, window_bounds = array<i64: 1, 512>}, {pipeline_mode = #tpu.pipeline_mode<synchronous>, transform_indices = @transform_3, window_bounds = array<i64: 256, 1024>}, {pipeline_mode = #tpu.pipeline_mode<synchronous>, transform_indices = @transform_4, window_bounds = array<i64: 1, 1024>}, {pipeline_mode = #tpu.pipeline_mode<synchronous>, transform_indices = @transform_5, window_bounds = array<i64: 512, 128>}, {pipeline_mode = #tpu.pipeline_mode<synchronous>, transform_indices = @transform_6, window_bounds = array<i64: 64, 512>}]} {
    %c0 = arith.constant 0 : index
    %c0_0 = arith.constant 0 : index
    %0 = vector.load %arg1[%c0, %c0_0] : memref<64x128xf32, #tpu.memory_space<vmem>>, vector<64x128xf32>
    %c0_1 = arith.constant 0 : index
    %c0_2 = arith.constant 0 : index
    %1 = vector.load %arg2[%c0_1, %c0_2] : memref<128x512xf32, #tpu.memory_space<vmem>>, vector<128x512xf32>
    %cst = arith.constant dense<0.000000e+00> : vector<64x512xf32>
    %2 = tpu.matmul %0, %1, %cst {dimension_numbers = #tpu.dot_dimension_numbers<[1], [0], [0], [1], [0, 0, 1, 1], [], []>} : vector<64x128xf32>, vector<128x512xf32>, vector<64x512xf32> -> vector<64x512xf32>
    %c0_3 = arith.constant 0 : index
    %c0_4 = arith.constant 0 : index
    %3 = vector.load %arg3[%c0_3, %c0_4] : memref<1x512xf32, #tpu.memory_space<vmem>>, vector<1x512xf32>
    %4 = vector.broadcast %3 : vector<1x512xf32> to vector<64x512xf32>
    %5 = arith.addf %2, %4 : vector<64x512xf32>
    %c0_5 = arith.constant 0 : index
    %c0_6 = arith.constant 0 : index
    %6 = vector.load %arg8[%c0_5, %c0_6] : memref<64x512xf32, #tpu.memory_space<vmem>>, vector<64x512xf32>
    tpu.vector_store %arg8[%c0_5, %c0_6], %5 {strides = array<i32>} : memref<64x512xf32, #tpu.memory_space<vmem>>, vector<64x512xf32>,
    %c0_7 = arith.constant 0 : index
    %c0_8 = arith.constant 0 : index
    %7 = vector.load %arg4[%c0_7, %c0_8] : memref<256x1024xf32, #tpu.memory_space<vmem>>, vector<256x1024xf32>
    %c0_9 = arith.constant 0 : index
    %c0_10 = arith.constant 0 : index
    %8 = vector.load %arg5[%c0_9, %c0_10] : memref<1x1024xf32, #tpu.memory_space<vmem>>, vector<1x1024xf32>
    %9 = vector.shape_cast %8 : vector<1x1024xf32> to vector<1x1024xf32>
    %10 = vector.broadcast %9 : vector<1x1024xf32> to vector<8x1024xf32>
    %cst_11 = arith.constant 0.000000e+00 : f32
    %11 = vector.broadcast %cst_11 : f32 to vector<8x128xf32>
    %cst_12 = arith.constant 0.000000e+00 : f32
    %12 = vector.broadcast %cst_12 : f32 to vector<8x128xf32>
    %cst_13 = arith.constant 0.000000e+00 : f32
    %13 = vector.broadcast %cst_13 : f32 to vector<8x128xf32>
    %cst_14 = arith.constant 0.000000e+00 : f32
    %14 = vector.broadcast %cst_14 : f32 to vector<8x128xf32>
    %15 = tpu.concatenate %11, %12 in 1 : vector<8x128xf32>, vector<8x128xf32> -> vector<8x256xf32>
    %cst_15 = arith.constant dense<0.000000e+00> : vector<8x1024xf32>
    %16 = tpu.matmul %15, %7, %cst_15 {dimension_numbers = #tpu.dot_dimension_numbers<[1], [0], [0], [1], [0, 0, 1, 1], [], []>} : vector<8x256xf32>, vector<256x1024xf32>, vector<8x1024xf32> -> vector<8x1024xf32>
    %17 = arith.addf %16, %10 : vector<8x1024xf32>
    %18 = vector.extract_strided_slice %17 {offsets = [0, 0], sizes = [8, 512], strides = [1, 1]} : vector<8x1024xf32> to vector<8x512xf32>
    %c0_16 = arith.constant 0 : index
    %c0_17 = arith.constant 0 : index
    %19 = vector.load %arg8[%c0_16, %c0_17] : memref<64x512xf32, #tpu.memory_space<vmem>>, vector<8x512xf32>
    %20 = arith.addf %18, %19 : vector<8x512xf32>
    %21 = vector.extract_strided_slice %20 {offsets = [0, 0], sizes = [8, 128], strides = [1, 1]} : vector<8x512xf32> to vector<8x128xf32>
    %22 = arith.negf %21 : vector<8x128xf32>
    %23 = math.exp %22 : vector<8x128xf32>
    %cst_18 = arith.constant 1.000000e+00 : f32
    %24 = vector.broadcast %cst_18 : f32 to vector<8x128xf32>
    %25 = arith.addf %24, %23 : vector<8x128xf32>
    %26 = arith.divf %24, %25 : vector<8x128xf32>
    %27 = vector.extract_strided_slice %20 {offsets = [0, 128], sizes = [8, 128], strides = [1, 1]} : vector<8x512xf32> to vector<8x128xf32>
    %28 = arith.negf %27 : vector<8x128xf32>
    %29 = math.exp %28 : vector<8x128xf32>
    %cst_19 = arith.constant 1.000000e+00 : f32
    %30 = vector.broadcast %cst_19 : f32 to vector<8x128xf32>
    %31 = arith.addf %30, %29 : vector<8x128xf32>
    %32 = arith.divf %30, %31 : vector<8x128xf32>
    %33 = vector.extract_strided_slice %20 {offsets = [0, 256], sizes = [8, 128], strides = [1, 1]} : vector<8x512xf32> to vector<8x128xf32>
    %34 = math.tanh %33 : vector<8x128xf32>
    %35 = vector.extract_strided_slice %20 {offsets = [0, 384], sizes = [8, 128], strides = [1, 1]} : vector<8x512xf32> to vector<8x128xf32>
    %36 = arith.negf %35 : vector<8x128xf32>
    %37 = math.exp %36 : vector<8x128xf32>
    %cst_20 = arith.constant 1.000000e+00 : f32
    %38 = vector.broadcast %cst_20 : f32 to vector<8x128xf32>
    %39 = arith.addf %38, %37 : vector<8x128xf32>
    %40 = arith.divf %38, %39 : vector<8x128xf32>
    %41 = arith.mulf %32, %13 : vector<8x128xf32>
    %42 = arith.mulf %26, %34 : vector<8x128xf32>
    %43 = arith.addf %41, %42 : vector<8x128xf32>
    %44 = math.tanh %43 : vector<8x128xf32>
    %45 = arith.mulf %40, %44 : vector<8x128xf32>
    %46 = tpu.concatenate %45, %12 in 1 : vector<8x128xf32>, vector<8x128xf32> -> vector<8x256xf32>
    %cst_21 = arith.constant dense<0.000000e+00> : vector<8x1024xf32>
    %47 = tpu.matmul %46, %7, %cst_21 {dimension_numbers = #tpu.dot_dimension_numbers<[1], [0], [0], [1], [0, 0, 1, 1], [], []>} : vector<8x256xf32>, vector<256x1024xf32>, vector<8x1024xf32> -> vector<8x1024xf32>
    %48 = arith.addf %47, %10 : vector<8x1024xf32>
    %49 = vector.extract_strided_slice %48 {offsets = [0, 0], sizes = [8, 512], strides = [1, 1]} : vector<8x1024xf32> to vector<8x512xf32>
    %c8 = arith.constant 8 : index
    %c0_22 = arith.constant 0 : index
    %50 = vector.load %arg8[%c8, %c0_22] : memref<64x512xf32, #tpu.memory_space<vmem>>, vector<8x512xf32>
    %51 = arith.addf %49, %50 : vector<8x512xf32>
    %52 = vector.extract_strided_slice %51 {offsets = [0, 0], sizes = [8, 128], strides = [1, 1]} : vector<8x512xf32> to vector<8x128xf32>
    %53 = arith.negf %52 : vector<8x128xf32>
    %54 = math.exp %53 : vector<8x128xf32>
    %cst_23 = arith.constant 1.000000e+00 : f32
    %55 = vector.broadcast %cst_23 : f32 to vector<8x128xf32>
    %56 = arith.addf %55, %54 : vector<8x128xf32>
    %57 = arith.divf %55, %56 : vector<8x128xf32>
    %58 = vector.extract_strided_slice %51 {offsets = [0, 128], sizes = [8, 128], strides = [1, 1]} : vector<8x512xf32> to vector<8x128xf32>
    %59 = arith.negf %58 : vector<8x128xf32>
    %60 = math.exp %59 : vector<8x128xf32>
    %cst_24 = arith.constant 1.000000e+00 : f32
    %61 = vector.broadcast %cst_24 : f32 to vector<8x128xf32>
    %62 = arith.addf %61, %60 : vector<8x128xf32>
    %63 = arith.divf %61, %62 : vector<8x128xf32>
    %64 = vector.extract_strided_slice %51 {offsets = [0, 256], sizes = [8, 128], strides = [1, 1]} : vector<8x512xf32> to vector<8x128xf32>
    %65 = math.tanh %64 : vector<8x128xf32>
    %66 = vector.extract_strided_slice %51 {offsets = [0, 384], sizes = [8, 128], strides = [1, 1]} : vector<8x512xf32> to vector<8x128xf32>
    %67 = arith.negf %66 : vector<8x128xf32>
    %68 = math.exp %67 : vector<8x128xf32>
    %cst_25 = arith.constant 1.000000e+00 : f32
    %69 = vector.broadcast %cst_25 : f32 to vector<8x128xf32>
    %70 = arith.addf %69, %68 : vector<8x128xf32>
    %71 = arith.divf %69, %70 : vector<8x128xf32>
    %72 = arith.mulf %63, %43 : vector<8x128xf32>
    %73 = arith.mulf %57, %65 : vector<8x128xf32>
    %74 = arith.addf %72, %73 : vector<8x128xf32>
    %75 = math.tanh %74 : vector<8x128xf32>
    %76 = arith.mulf %71, %75 : vector<8x128xf32>
    %77 = vector.extract_strided_slice %48 {offsets = [0, 512], sizes = [8, 512], strides = [1, 1]} : vector<8x1024xf32> to vector<8x512xf32>
    %78 = vector.extract_strided_slice %77 {offsets = [0, 0], sizes = [8, 128], strides = [1, 1]} : vector<8x512xf32> to vector<8x128xf32>
    %79 = arith.negf %78 : vector<8x128xf32>
    %80 = math.exp %79 : vector<8x128xf32>
    %cst_26 = arith.constant 1.000000e+00 : f32
    %81 = vector.broadcast %cst_26 : f32 to vector<8x128xf32>
    %82 = arith.addf %81, %80 : vector<8x128xf32>
    %83 = arith.divf %81, %82 : vector<8x128xf32>
    %84 = vector.extract_strided_slice %77 {offsets = [0, 128], sizes = [8, 128], strides = [1, 1]} : vector<8x512xf32> to vector<8x128xf32>
    %85 = arith.negf %84 : vector<8x128xf32>
    %86 = math.exp %85 : vector<8x128xf32>
    %cst_27 = arith.constant 1.000000e+00 : f32
    %87 = vector.broadcast %cst_27 : f32 to vector<8x128xf32>
    %88 = arith.addf %87, %86 : vector<8x128xf32>
    %89 = arith.divf %87, %88 : vector<8x128xf32>
    %90 = vector.extract_strided_slice %77 {offsets = [0, 256], sizes = [8, 128], strides = [1, 1]} : vector<8x512xf32> to vector<8x128xf32>
    %91 = math.tanh %90 : vector<8x128xf32>
    %92 = vector.extract_strided_slice %77 {offsets = [0, 384], sizes = [8, 128], strides = [1, 1]} : vector<8x512xf32> to vector<8x128xf32>
    %93 = arith.negf %92 : vector<8x128xf32>
    %94 = math.exp %93 : vector<8x128xf32>
    %cst_28 = arith.constant 1.000000e+00 : f32
    %95 = vector.broadcast %cst_28 : f32 to vector<8x128xf32>
    %96 = arith.addf %95, %94 : vector<8x128xf32>
    %97 = arith.divf %95, %96 : vector<8x128xf32>
    %98 = arith.mulf %89, %14 : vector<8x128xf32>
    %99 = arith.mulf %83, %91 : vector<8x128xf32>
    %100 = arith.addf %98, %99 : vector<8x128xf32>
    %101 = math.tanh %100 : vector<8x128xf32>
    %102 = arith.mulf %97, %101 : vector<8x128xf32>
    %c0_29 = arith.constant 0 : index
    %c0_30 = arith.constant 0 : index
    %103 = vector.load %arg9[%c0_29, %c0_30] : memref<64x128xf32, #tpu.memory_space<vmem>>, vector<8x128xf32>
    tpu.vector_store %arg9[%c0_29, %c0_30], %102 {strides = array<i32>} : memref<64x128xf32, #tpu.memory_space<vmem>>, vector<8x128xf32>,
    %104 = tpu.concatenate %76, %102 in 1 : vector<8x128xf32>, vector<8x128xf32> -> vector<8x256xf32>
    %cst_31 = arith.constant dense<0.000000e+00> : vector<8x1024xf32>
    %105 = tpu.matmul %104, %7, %cst_31 {dimension_numbers = #tpu.dot_dimension_numbers<[1], [0], [0], [1], [0, 0, 1, 1], [], []>} : vector<8x256xf32>, vector<256x1024xf32>, vector<8x1024xf32> -> vector<8x1024xf32>
    %106 = arith.addf %105, %10 : vector<8x1024xf32>
    %107 = vector.extract_strided_slice %106 {offsets = [0, 0], sizes = [8, 512], strides = [1, 1]} : vector<8x1024xf32> to vector<8x512xf32>
    %c16 = arith.constant 16 : index
    %c0_32 = arith.constant 0 : index
    %108 = vector.load %arg8[%c16, %c0_32] : memref<64x512xf32, #tpu.memory_space<vmem>>, vector<8x512xf32>
    %109 = arith.addf %107, %108 : vector<8x512xf32>
    %110 = vector.extract_strided_slice %109 {offsets = [0, 0], sizes = [8, 128], strides = [1, 1]} : vector<8x512xf32> to vector<8x128xf32>
    %111 = arith.negf %110 : vector<8x128xf32>
    %112 = math.exp %111 : vector<8x128xf32>
    %cst_33 = arith.constant 1.000000e+00 : f32
    %113 = vector.broadcast %cst_33 : f32 to vector<8x128xf32>
    %114 = arith.addf %113, %112 : vector<8x128xf32>
    %115 = arith.divf %113, %114 : vector<8x128xf32>
    %116 = vector.extract_strided_slice %109 {offsets = [0, 128], sizes = [8, 128], strides = [1, 1]} : vector<8x512xf32> to vector<8x128xf32>
    %117 = arith.negf %116 : vector<8x128xf32>
    %118 = math.exp %117 : vector<8x128xf32>
    %cst_34 = arith.constant 1.000000e+00 : f32
    %119 = vector.broadcast %cst_34 : f32 to vector<8x128xf32>
    %120 = arith.addf %119, %118 : vector<8x128xf32>
    %121 = arith.divf %119, %120 : vector<8x128xf32>
    %122 = vector.extract_strided_slice %109 {offsets = [0, 256], sizes = [8, 128], strides = [1, 1]} : vector<8x512xf32> to vector<8x128xf32>
    %123 = math.tanh %122 : vector<8x128xf32>
    %124 = vector.extract_strided_slice %109 {offsets = [0, 384], sizes = [8, 128], strides = [1, 1]} : vector<8x512xf32> to vector<8x128xf32>
    %125 = arith.negf %124 : vector<8x128xf32>
    %126 = math.exp %125 : vector<8x128xf32>
    %cst_35 = arith.constant 1.000000e+00 : f32
    %127 = vector.broadcast %cst_35 : f32 to vector<8x128xf32>
    %128 = arith.addf %127, %126 : vector<8x128xf32>
    %129 = arith.divf %127, %128 : vector<8x128xf32>
    %130 = arith.mulf %121, %74 : vector<8x128xf32>
    %131 = arith.mulf %115, %123 : vector<8x128xf32>
    %132 = arith.addf %130, %131 : vector<8x128xf32>
    %133 = math.tanh %132 : vector<8x128xf32>
    %134 = arith.mulf %129, %133 : vector<8x128xf32>
    %135 = vector.extract_strided_slice %106 {offsets = [0, 512], sizes = [8, 512], strides = [1, 1]} : vector<8x1024xf32> to vector<8x512xf32>
    %136 = vector.extract_strided_slice %135 {offsets = [0, 0], sizes = [8, 128], strides = [1, 1]} : vector<8x512xf32> to vector<8x128xf32>
    %137 = arith.negf %136 : vector<8x128xf32>
    %138 = math.exp %137 : vector<8x128xf32>
    %cst_36 = arith.constant 1.000000e+00 : f32
    %139 = vector.broadcast %cst_36 : f32 to vector<8x128xf32>
    %140 = arith.addf %139, %138 : vector<8x128xf32>
    %141 = arith.divf %139, %140 : vector<8x128xf32>
    %142 = vector.extract_strided_slice %135 {offsets = [0, 128], sizes = [8, 128], strides = [1, 1]} : vector<8x512xf32> to vector<8x128xf32>
    %143 = arith.negf %142 : vector<8x128xf32>
    %144 = math.exp %143 : vector<8x128xf32>
    %cst_37 = arith.constant 1.000000e+00 : f32
    %145 = vector.broadcast %cst_37 : f32 to vector<8x128xf32>
    %146 = arith.addf %145, %144 : vector<8x128xf32>
    %147 = arith.divf %145, %146 : vector<8x128xf32>
    %148 = vector.extract_strided_slice %135 {offsets = [0, 256], sizes = [8, 128], strides = [1, 1]} : vector<8x512xf32> to vector<8x128xf32>
    %149 = math.tanh %148 : vector<8x128xf32>
    %150 = vector.extract_strided_slice %135 {offsets = [0, 384], sizes = [8, 128], strides = [1, 1]} : vector<8x512xf32> to vector<8x128xf32>
    %151 = arith.negf %150 : vector<8x128xf32>
    %152 = math.exp %151 : vector<8x128xf32>
    %cst_38 = arith.constant 1.000000e+00 : f32
    %153 = vector.broadcast %cst_38 : f32 to vector<8x128xf32>
    %154 = arith.addf %153, %152 : vector<8x128xf32>
    %155 = arith.divf %153, %154 : vector<8x128xf32>
    %156 = arith.mulf %147, %100 : vector<8x128xf32>
    %157 = arith.mulf %141, %149 : vector<8x128xf32>
    %158 = arith.addf %156, %157 : vector<8x128xf32>
    %159 = math.tanh %158 : vector<8x128xf32>
    %160 = arith.mulf %155, %159 : vector<8x128xf32>
    %c8_39 = arith.constant 8 : index
    %c0_40 = arith.constant 0 : index
    %161 = vector.load %arg9[%c8_39, %c0_40] : memref<64x128xf32, #tpu.memory_space<vmem>>, vector<8x128xf32>
    tpu.vector_store %arg9[%c8_39, %c0_40], %160 {strides = array<i32>} : memref<64x128xf32, #tpu.memory_space<vmem>>, vector<8x128xf32>,
    %162 = tpu.concatenate %134, %160 in 1 : vector<8x128xf32>, vector<8x128xf32> -> vector<8x256xf32>
    %cst_41 = arith.constant dense<0.000000e+00> : vector<8x1024xf32>
    %163 = tpu.matmul %162, %7, %cst_41 {dimension_numbers = #tpu.dot_dimension_numbers<[1], [0], [0], [1], [0, 0, 1, 1], [], []>} : vector<8x256xf32>, vector<256x1024xf32>, vector<8x1024xf32> -> vector<8x1024xf32>
    %164 = arith.addf %163, %10 : vector<8x1024xf32>
    %165 = vector.extract_strided_slice %164 {offsets = [0, 0], sizes = [8, 512], strides = [1, 1]} : vector<8x1024xf32> to vector<8x512xf32>
    %c24 = arith.constant 24 : index
    %c0_42 = arith.constant 0 : index
    %166 = vector.load %arg8[%c24, %c0_42] : memref<64x512xf32, #tpu.memory_space<vmem>>, vector<8x512xf32>
    %167 = arith.addf %165, %166 : vector<8x512xf32>
    %168 = vector.extract_strided_slice %167 {offsets = [0, 0], sizes = [8, 128], strides = [1, 1]} : vector<8x512xf32> to vector<8x128xf32>
    %169 = arith.negf %168 : vector<8x128xf32>
    %170 = math.exp %169 : vector<8x128xf32>
    %cst_43 = arith.constant 1.000000e+00 : f32
    %171 = vector.broadcast %cst_43 : f32 to vector<8x128xf32>
    %172 = arith.addf %171, %170 : vector<8x128xf32>
    %173 = arith.divf %171, %172 : vector<8x128xf32>
    %174 = vector.extract_strided_slice %167 {offsets = [0, 128], sizes = [8, 128], strides = [1, 1]} : vector<8x512xf32> to vector<8x128xf32>
    %175 = arith.negf %174 : vector<8x128xf32>
    %176 = math.exp %175 : vector<8x128xf32>
    %cst_44 = arith.constant 1.000000e+00 : f32
    %177 = vector.broadcast %cst_44 : f32 to vector<8x128xf32>
    %178 = arith.addf %177, %176 : vector<8x128xf32>
    %179 = arith.divf %177, %178 : vector<8x128xf32>
    %180 = vector.extract_strided_slice %167 {offsets = [0, 256], sizes = [8, 128], strides = [1, 1]} : vector<8x512xf32> to vector<8x128xf32>
    %181 = math.tanh %180 : vector<8x128xf32>
    %182 = vector.extract_strided_slice %167 {offsets = [0, 384], sizes = [8, 128], strides = [1, 1]} : vector<8x512xf32> to vector<8x128xf32>
    %183 = arith.negf %182 : vector<8x128xf32>
    %184 = math.exp %183 : vector<8x128xf32>
    %cst_45 = arith.constant 1.000000e+00 : f32
    %185 = vector.broadcast %cst_45 : f32 to vector<8x128xf32>
    %186 = arith.addf %185, %184 : vector<8x128xf32>
    %187 = arith.divf %185, %186 : vector<8x128xf32>
    %188 = arith.mulf %179, %132 : vector<8x128xf32>
    %189 = arith.mulf %173, %181 : vector<8x128xf32>
    %190 = arith.addf %188, %189 : vector<8x128xf32>
    %191 = math.tanh %190 : vector<8x128xf32>
    %192 = arith.mulf %187, %191 : vector<8x128xf32>
    %193 = vector.extract_strided_slice %164 {offsets = [0, 512], sizes = [8, 512], strides = [1, 1]} : vector<8x1024xf32> to vector<8x512xf32>
    %194 = vector.extract_strided_slice %193 {offsets = [0, 0], sizes = [8, 128], strides = [1, 1]} : vector<8x512xf32> to vector<8x128xf32>
    %195 = arith.negf %194 : vector<8x128xf32>
    %196 = math.exp %195 : vector<8x128xf32>
    %cst_46 = arith.constant 1.000000e+00 : f32
    %197 = vector.broadcast %cst_46 : f32 to vector<8x128xf32>
    %198 = arith.addf %197, %196 : vector<8x128xf32>
    %199 = arith.divf %197, %198 : vector<8x128xf32>
    %200 = vector.extract_strided_slice %193 {offsets = [0, 128], sizes = [8, 128], strides = [1, 1]} : vector<8x512xf32> to vector<8x128xf32>
    %201 = arith.negf %200 : vector<8x128xf32>
    %202 = math.exp %201 : vector<8x128xf32>
    %cst_47 = arith.constant 1.000000e+00 : f32
    %203 = vector.broadcast %cst_47 : f32 to vector<8x128xf32>
    %204 = arith.addf %203, %202 : vector<8x128xf32>
    %205 = arith.divf %203, %204 : vector<8x128xf32>
    %206 = vector.extract_strided_slice %193 {offsets = [0, 256], sizes = [8, 128], strides = [1, 1]} : vector<8x512xf32> to vector<8x128xf32>
    %207 = math.tanh %206 : vector<8x128xf32>
    %208 = vector.extract_strided_slice %193 {offsets = [0, 384], sizes = [8, 128], strides = [1, 1]} : vector<8x512xf32> to vector<8x128xf32>
    %209 = arith.negf %208 : vector<8x128xf32>
    %210 = math.exp %209 : vector<8x128xf32>
    %cst_48 = arith.constant 1.000000e+00 : f32
    %211 = vector.broadcast %cst_48 : f32 to vector<8x128xf32>
    %212 = arith.addf %211, %210 : vector<8x128xf32>
    %213 = arith.divf %211, %212 : vector<8x128xf32>
    %214 = arith.mulf %205, %158 : vector<8x128xf32>
    %215 = arith.mulf %199, %207 : vector<8x128xf32>
    %216 = arith.addf %214, %215 : vector<8x128xf32>
    %217 = math.tanh %216 : vector<8x128xf32>
    %218 = arith.mulf %213, %217 : vector<8x128xf32>
    %c16_49 = arith.constant 16 : index
    %c0_50 = arith.constant 0 : index
    %219 = vector.load %arg9[%c16_49, %c0_50] : memref<64x128xf32, #tpu.memory_space<vmem>>, vector<8x128xf32>
    tpu.vector_store %arg9[%c16_49, %c0_50], %218 {strides = array<i32>} : memref<64x128xf32, #tpu.memory_space<vmem>>, vector<8x128xf32>,
    %220 = tpu.concatenate %192, %218 in 1 : vector<8x128xf32>, vector<8x128xf32> -> vector<8x256xf32>
    %cst_51 = arith.constant dense<0.000000e+00> : vector<8x1024xf32>
    %221 = tpu.matmul %220, %7, %cst_51 {dimension_numbers = #tpu.dot_dimension_numbers<[1], [0], [0], [1], [0, 0, 1, 1], [], []>} : vector<8x256xf32>, vector<256x1024xf32>, vector<8x1024xf32> -> vector<8x1024xf32>
    %222 = arith.addf %221, %10 : vector<8x1024xf32>
    %223 = vector.extract_strided_slice %222 {offsets = [0, 0], sizes = [8, 512], strides = [1, 1]} : vector<8x1024xf32> to vector<8x512xf32>
    %c32 = arith.constant 32 : index
    %c0_52 = arith.constant 0 : index
    %224 = vector.load %arg8[%c32, %c0_52] : memref<64x512xf32, #tpu.memory_space<vmem>>, vector<8x512xf32>
    %225 = arith.addf %223, %224 : vector<8x512xf32>
    %226 = vector.extract_strided_slice %225 {offsets = [0, 0], sizes = [8, 128], strides = [1, 1]} : vector<8x512xf32> to vector<8x128xf32>
    %227 = arith.negf %226 : vector<8x128xf32>
    %228 = math.exp %227 : vector<8x128xf32>
    %cst_53 = arith.constant 1.000000e+00 : f32
    %229 = vector.broadcast %cst_53 : f32 to vector<8x128xf32>
    %230 = arith.addf %229, %228 : vector<8x128xf32>
    %231 = arith.divf %229, %230 : vector<8x128xf32>
    %232 = vector.extract_strided_slice %225 {offsets = [0, 128], sizes = [8, 128], strides = [1, 1]} : vector<8x512xf32> to vector<8x128xf32>
    %233 = arith.negf %232 : vector<8x128xf32>
    %234 = math.exp %233 : vector<8x128xf32>
    %cst_54 = arith.constant 1.000000e+00 : f32
    %235 = vector.broadcast %cst_54 : f32 to vector<8x128xf32>
    %236 = arith.addf %235, %234 : vector<8x128xf32>
    %237 = arith.divf %235, %236 : vector<8x128xf32>
    %238 = vector.extract_strided_slice %225 {offsets = [0, 256], sizes = [8, 128], strides = [1, 1]} : vector<8x512xf32> to vector<8x128xf32>
    %239 = math.tanh %238 : vector<8x128xf32>
    %240 = vector.extract_strided_slice %225 {offsets = [0, 384], sizes = [8, 128], strides = [1, 1]} : vector<8x512xf32> to vector<8x128xf32>
    %241 = arith.negf %240 : vector<8x128xf32>
    %242 = math.exp %241 : vector<8x128xf32>
    %cst_55 = arith.constant 1.000000e+00 : f32
    %243 = vector.broadcast %cst_55 : f32 to vector<8x128xf32>
    %244 = arith.addf %243, %242 : vector<8x128xf32>
    %245 = arith.divf %243, %244 : vector<8x128xf32>
    %246 = arith.mulf %237, %190 : vector<8x128xf32>
    %247 = arith.mulf %231, %239 : vector<8x128xf32>
    %248 = arith.addf %246, %247 : vector<8x128xf32>
    %249 = math.tanh %248 : vector<8x128xf32>
    %250 = arith.mulf %245, %249 : vector<8x128xf32>
    %251 = vector.extract_strided_slice %222 {offsets = [0, 512], sizes = [8, 512], strides = [1, 1]} : vector<8x1024xf32> to vector<8x512xf32>
    %252 = vector.extract_strided_slice %251 {offsets = [0, 0], sizes = [8, 128], strides = [1, 1]} : vector<8x512xf32> to vector<8x128xf32>
    %253 = arith.negf %252 : vector<8x128xf32>
    %254 = math.exp %253 : vector<8x128xf32>
    %cst_56 = arith.constant 1.000000e+00 : f32
    %255 = vector.broadcast %cst_56 : f32 to vector<8x128xf32>
    %256 = arith.addf %255, %254 : vector<8x128xf32>
    %257 = arith.divf %255, %256 : vector<8x128xf32>
    %258 = vector.extract_strided_slice %251 {offsets = [0, 128], sizes = [8, 128], strides = [1, 1]} : vector<8x512xf32> to vector<8x128xf32>
    %259 = arith.negf %258 : vector<8x128xf32>
    %260 = math.exp %259 : vector<8x128xf32>
    %cst_57 = arith.constant 1.000000e+00 : f32
    %261 = vector.broadcast %cst_57 : f32 to vector<8x128xf32>
    %262 = arith.addf %261, %260 : vector<8x128xf32>
    %263 = arith.divf %261, %262 : vector<8x128xf32>
    %264 = vector.extract_strided_slice %251 {offsets = [0, 256], sizes = [8, 128], strides = [1, 1]} : vector<8x512xf32> to vector<8x128xf32>
    %265 = math.tanh %264 : vector<8x128xf32>
    %266 = vector.extract_strided_slice %251 {offsets = [0, 384], sizes = [8, 128], strides = [1, 1]} : vector<8x512xf32> to vector<8x128xf32>
    %267 = arith.negf %266 : vector<8x128xf32>
    %268 = math.exp %267 : vector<8x128xf32>
    %cst_58 = arith.constant 1.000000e+00 : f32
    %269 = vector.broadcast %cst_58 : f32 to vector<8x128xf32>
    %270 = arith.addf %269, %268 : vector<8x128xf32>
    %271 = arith.divf %269, %270 : vector<8x128xf32>
    %272 = arith.mulf %263, %216 : vector<8x128xf32>
    %273 = arith.mulf %257, %265 : vector<8x128xf32>
    %274 = arith.addf %272, %273 : vector<8x128xf32>
    %275 = math.tanh %274 : vector<8x128xf32>
    %276 = arith.mulf %271, %275 : vector<8x128xf32>
    %c24_59 = arith.constant 24 : index
    %c0_60 = arith.constant 0 : index
    %277 = vector.load %arg9[%c24_59, %c0_60] : memref<64x128xf32, #tpu.memory_space<vmem>>, vector<8x128xf32>
    tpu.vector_store %arg9[%c24_59, %c0_60], %276 {strides = array<i32>} : memref<64x128xf32, #tpu.memory_space<vmem>>, vector<8x128xf32>,
    %278 = tpu.concatenate %250, %276 in 1 : vector<8x128xf32>, vector<8x128xf32> -> vector<8x256xf32>
    %cst_61 = arith.constant dense<0.000000e+00> : vector<8x1024xf32>
    %279 = tpu.matmul %278, %7, %cst_61 {dimension_numbers = #tpu.dot_dimension_numbers<[1], [0], [0], [1], [0, 0, 1, 1], [], []>} : vector<8x256xf32>, vector<256x1024xf32>, vector<8x1024xf32> -> vector<8x1024xf32>
    %280 = arith.addf %279, %10 : vector<8x1024xf32>
    %281 = vector.extract_strided_slice %280 {offsets = [0, 0], sizes = [8, 512], strides = [1, 1]} : vector<8x1024xf32> to vector<8x512xf32>
    %c40 = arith.constant 40 : index
    %c0_62 = arith.constant 0 : index
    %282 = vector.load %arg8[%c40, %c0_62] : memref<64x512xf32, #tpu.memory_space<vmem>>, vector<8x512xf32>
    %283 = arith.addf %281, %282 : vector<8x512xf32>
    %284 = vector.extract_strided_slice %283 {offsets = [0, 0], sizes = [8, 128], strides = [1, 1]} : vector<8x512xf32> to vector<8x128xf32>
    %285 = arith.negf %284 : vector<8x128xf32>
    %286 = math.exp %285 : vector<8x128xf32>
    %cst_63 = arith.constant 1.000000e+00 : f32
    %287 = vector.broadcast %cst_63 : f32 to vector<8x128xf32>
    %288 = arith.addf %287, %286 : vector<8x128xf32>
    %289 = arith.divf %287, %288 : vector<8x128xf32>
    %290 = vector.extract_strided_slice %283 {offsets = [0, 128], sizes = [8, 128], strides = [1, 1]} : vector<8x512xf32> to vector<8x128xf32>
    %291 = arith.negf %290 : vector<8x128xf32>
    %292 = math.exp %291 : vector<8x128xf32>
    %cst_64 = arith.constant 1.000000e+00 : f32
    %293 = vector.broadcast %cst_64 : f32 to vector<8x128xf32>
    %294 = arith.addf %293, %292 : vector<8x128xf32>
    %295 = arith.divf %293, %294 : vector<8x128xf32>
    %296 = vector.extract_strided_slice %283 {offsets = [0, 256], sizes = [8, 128], strides = [1, 1]} : vector<8x512xf32> to vector<8x128xf32>
    %297 = math.tanh %296 : vector<8x128xf32>
    %298 = vector.extract_strided_slice %283 {offsets = [0, 384], sizes = [8, 128], strides = [1, 1]} : vector<8x512xf32> to vector<8x128xf32>
    %299 = arith.negf %298 : vector<8x128xf32>
    %300 = math.exp %299 : vector<8x128xf32>
    %cst_65 = arith.constant 1.000000e+00 : f32
    %301 = vector.broadcast %cst_65 : f32 to vector<8x128xf32>
    %302 = arith.addf %301, %300 : vector<8x128xf32>
    %303 = arith.divf %301, %302 : vector<8x128xf32>
    %304 = arith.mulf %295, %248 : vector<8x128xf32>
    %305 = arith.mulf %289, %297 : vector<8x128xf32>
    %306 = arith.addf %304, %305 : vector<8x128xf32>
    %307 = math.tanh %306 : vector<8x128xf32>
    %308 = arith.mulf %303, %307 : vector<8x128xf32>
    %309 = vector.extract_strided_slice %280 {offsets = [0, 512], sizes = [8, 512], strides = [1, 1]} : vector<8x1024xf32> to vector<8x512xf32>
    %310 = vector.extract_strided_slice %309 {offsets = [0, 0], sizes = [8, 128], strides = [1, 1]} : vector<8x512xf32> to vector<8x128xf32>
    %311 = arith.negf %310 : vector<8x128xf32>
    %312 = math.exp %311 : vector<8x128xf32>
    %cst_66 = arith.constant 1.000000e+00 : f32
    %313 = vector.broadcast %cst_66 : f32 to vector<8x128xf32>
    %314 = arith.addf %313, %312 : vector<8x128xf32>
    %315 = arith.divf %313, %314 : vector<8x128xf32>
    %316 = vector.extract_strided_slice %309 {offsets = [0, 128], sizes = [8, 128], strides = [1, 1]} : vector<8x512xf32> to vector<8x128xf32>
    %317 = arith.negf %316 : vector<8x128xf32>
    %318 = math.exp %317 : vector<8x128xf32>
    %cst_67 = arith.constant 1.000000e+00 : f32
    %319 = vector.broadcast %cst_67 : f32 to vector<8x128xf32>
    %320 = arith.addf %319, %318 : vector<8x128xf32>
    %321 = arith.divf %319, %320 : vector<8x128xf32>
    %322 = vector.extract_strided_slice %309 {offsets = [0, 256], sizes = [8, 128], strides = [1, 1]} : vector<8x512xf32> to vector<8x128xf32>
    %323 = math.tanh %322 : vector<8x128xf32>
    %324 = vector.extract_strided_slice %309 {offsets = [0, 384], sizes = [8, 128], strides = [1, 1]} : vector<8x512xf32> to vector<8x128xf32>
    %325 = arith.negf %324 : vector<8x128xf32>
    %326 = math.exp %325 : vector<8x128xf32>
    %cst_68 = arith.constant 1.000000e+00 : f32
    %327 = vector.broadcast %cst_68 : f32 to vector<8x128xf32>
    %328 = arith.addf %327, %326 : vector<8x128xf32>
    %329 = arith.divf %327, %328 : vector<8x128xf32>
    %330 = arith.mulf %321, %274 : vector<8x128xf32>
    %331 = arith.mulf %315, %323 : vector<8x128xf32>
    %332 = arith.addf %330, %331 : vector<8x128xf32>
    %333 = math.tanh %332 : vector<8x128xf32>
    %334 = arith.mulf %329, %333 : vector<8x128xf32>
    %c32_69 = arith.constant 32 : index
    %c0_70 = arith.constant 0 : index
    %335 = vector.load %arg9[%c32_69, %c0_70] : memref<64x128xf32, #tpu.memory_space<vmem>>, vector<8x128xf32>
    tpu.vector_store %arg9[%c32_69, %c0_70], %334 {strides = array<i32>} : memref<64x128xf32, #tpu.memory_space<vmem>>, vector<8x128xf32>,
    %336 = tpu.concatenate %308, %334 in 1 : vector<8x128xf32>, vector<8x128xf32> -> vector<8x256xf32>
    %cst_71 = arith.constant dense<0.000000e+00> : vector<8x1024xf32>
    %337 = tpu.matmul %336, %7, %cst_71 {dimension_numbers = #tpu.dot_dimension_numbers<[1], [0], [0], [1], [0, 0, 1, 1], [], []>} : vector<8x256xf32>, vector<256x1024xf32>, vector<8x1024xf32> -> vector<8x1024xf32>
    %338 = arith.addf %337, %10 : vector<8x1024xf32>
    %339 = vector.extract_strided_slice %338 {offsets = [0, 0], sizes = [8, 512], strides = [1, 1]} : vector<8x1024xf32> to vector<8x512xf32>
    %c48 = arith.constant 48 : index
    %c0_72 = arith.constant 0 : index
    %340 = vector.load %arg8[%c48, %c0_72] : memref<64x512xf32, #tpu.memory_space<vmem>>, vector<8x512xf32>
    %341 = arith.addf %339, %340 : vector<8x512xf32>
    %342 = vector.extract_strided_slice %341 {offsets = [0, 0], sizes = [8, 128], strides = [1, 1]} : vector<8x512xf32> to vector<8x128xf32>
    %343 = arith.negf %342 : vector<8x128xf32>
    %344 = math.exp %343 : vector<8x128xf32>
    %cst_73 = arith.constant 1.000000e+00 : f32
    %345 = vector.broadcast %cst_73 : f32 to vector<8x128xf32>
    %346 = arith.addf %345, %344 : vector<8x128xf32>
    %347 = arith.divf %345, %346 : vector<8x128xf32>
    %348 = vector.extract_strided_slice %341 {offsets = [0, 128], sizes = [8, 128], strides = [1, 1]} : vector<8x512xf32> to vector<8x128xf32>
    %349 = arith.negf %348 : vector<8x128xf32>
    %350 = math.exp %349 : vector<8x128xf32>
    %cst_74 = arith.constant 1.000000e+00 : f32
    %351 = vector.broadcast %cst_74 : f32 to vector<8x128xf32>
    %352 = arith.addf %351, %350 : vector<8x128xf32>
    %353 = arith.divf %351, %352 : vector<8x128xf32>
    %354 = vector.extract_strided_slice %341 {offsets = [0, 256], sizes = [8, 128], strides = [1, 1]} : vector<8x512xf32> to vector<8x128xf32>
    %355 = math.tanh %354 : vector<8x128xf32>
    %356 = vector.extract_strided_slice %341 {offsets = [0, 384], sizes = [8, 128], strides = [1, 1]} : vector<8x512xf32> to vector<8x128xf32>
    %357 = arith.negf %356 : vector<8x128xf32>
    %358 = math.exp %357 : vector<8x128xf32>
    %cst_75 = arith.constant 1.000000e+00 : f32
    %359 = vector.broadcast %cst_75 : f32 to vector<8x128xf32>
    %360 = arith.addf %359, %358 : vector<8x128xf32>
    %361 = arith.divf %359, %360 : vector<8x128xf32>
    %362 = arith.mulf %353, %306 : vector<8x128xf32>
    %363 = arith.mulf %347, %355 : vector<8x128xf32>
    %364 = arith.addf %362, %363 : vector<8x128xf32>
    %365 = math.tanh %364 : vector<8x128xf32>
    %366 = arith.mulf %361, %365 : vector<8x128xf32>
    %367 = vector.extract_strided_slice %338 {offsets = [0, 512], sizes = [8, 512], strides = [1, 1]} : vector<8x1024xf32> to vector<8x512xf32>
    %368 = vector.extract_strided_slice %367 {offsets = [0, 0], sizes = [8, 128], strides = [1, 1]} : vector<8x512xf32> to vector<8x128xf32>
    %369 = arith.negf %368 : vector<8x128xf32>
    %370 = math.exp %369 : vector<8x128xf32>
    %cst_76 = arith.constant 1.000000e+00 : f32
    %371 = vector.broadcast %cst_76 : f32 to vector<8x128xf32>
    %372 = arith.addf %371, %370 : vector<8x128xf32>
    %373 = arith.divf %371, %372 : vector<8x128xf32>
    %374 = vector.extract_strided_slice %367 {offsets = [0, 128], sizes = [8, 128], strides = [1, 1]} : vector<8x512xf32> to vector<8x128xf32>
    %375 = arith.negf %374 : vector<8x128xf32>
    %376 = math.exp %375 : vector<8x128xf32>
    %cst_77 = arith.constant 1.000000e+00 : f32
    %377 = vector.broadcast %cst_77 : f32 to vector<8x128xf32>
    %378 = arith.addf %377, %376 : vector<8x128xf32>
    %379 = arith.divf %377, %378 : vector<8x128xf32>
    %380 = vector.extract_strided_slice %367 {offsets = [0, 256], sizes = [8, 128], strides = [1, 1]} : vector<8x512xf32> to vector<8x128xf32>
    %381 = math.tanh %380 : vector<8x128xf32>
    %382 = vector.extract_strided_slice %367 {offsets = [0, 384], sizes = [8, 128], strides = [1, 1]} : vector<8x512xf32> to vector<8x128xf32>
    %383 = arith.negf %382 : vector<8x128xf32>
    %384 = math.exp %383 : vector<8x128xf32>
    %cst_78 = arith.constant 1.000000e+00 : f32
    %385 = vector.broadcast %cst_78 : f32 to vector<8x128xf32>
    %386 = arith.addf %385, %384 : vector<8x128xf32>
    %387 = arith.divf %385, %386 : vector<8x128xf32>
    %388 = arith.mulf %379, %332 : vector<8x128xf32>
    %389 = arith.mulf %373, %381 : vector<8x128xf32>
    %390 = arith.addf %388, %389 : vector<8x128xf32>
    %391 = math.tanh %390 : vector<8x128xf32>
    %392 = arith.mulf %387, %391 : vector<8x128xf32>
    %c40_79 = arith.constant 40 : index
    %c0_80 = arith.constant 0 : index
    %393 = vector.load %arg9[%c40_79, %c0_80] : memref<64x128xf32, #tpu.memory_space<vmem>>, vector<8x128xf32>
    tpu.vector_store %arg9[%c40_79, %c0_80], %392 {strides = array<i32>} : memref<64x128xf32, #tpu.memory_space<vmem>>, vector<8x128xf32>,
    %394 = tpu.concatenate %366, %392 in 1 : vector<8x128xf32>, vector<8x128xf32> -> vector<8x256xf32>
    %cst_81 = arith.constant dense<0.000000e+00> : vector<8x1024xf32>
    %395 = tpu.matmul %394, %7, %cst_81 {dimension_numbers = #tpu.dot_dimension_numbers<[1], [0], [0], [1], [0, 0, 1, 1], [], []>} : vector<8x256xf32>, vector<256x1024xf32>, vector<8x1024xf32> -> vector<8x1024xf32>
    %396 = arith.addf %395, %10 : vector<8x1024xf32>
    %397 = vector.extract_strided_slice %396 {offsets = [0, 0], sizes = [8, 512], strides = [1, 1]} : vector<8x1024xf32> to vector<8x512xf32>
    %c56 = arith.constant 56 : index
    %c0_82 = arith.constant 0 : index
    %398 = vector.load %arg8[%c56, %c0_82] : memref<64x512xf32, #tpu.memory_space<vmem>>, vector<8x512xf32>
    %399 = arith.addf %397, %398 : vector<8x512xf32>
    %400 = vector.extract_strided_slice %399 {offsets = [0, 0], sizes = [8, 128], strides = [1, 1]} : vector<8x512xf32> to vector<8x128xf32>
    %401 = arith.negf %400 : vector<8x128xf32>
    %402 = math.exp %401 : vector<8x128xf32>
    %cst_83 = arith.constant 1.000000e+00 : f32
    %403 = vector.broadcast %cst_83 : f32 to vector<8x128xf32>
    %404 = arith.addf %403, %402 : vector<8x128xf32>
    %405 = arith.divf %403, %404 : vector<8x128xf32>
    %406 = vector.extract_strided_slice %399 {offsets = [0, 128], sizes = [8, 128], strides = [1, 1]} : vector<8x512xf32> to vector<8x128xf32>
    %407 = arith.negf %406 : vector<8x128xf32>
    %408 = math.exp %407 : vector<8x128xf32>
    %cst_84 = arith.constant 1.000000e+00 : f32
    %409 = vector.broadcast %cst_84 : f32 to vector<8x128xf32>
    %410 = arith.addf %409, %408 : vector<8x128xf32>
    %411 = arith.divf %409, %410 : vector<8x128xf32>
    %412 = vector.extract_strided_slice %399 {offsets = [0, 256], sizes = [8, 128], strides = [1, 1]} : vector<8x512xf32> to vector<8x128xf32>
    %413 = math.tanh %412 : vector<8x128xf32>
    %414 = vector.extract_strided_slice %399 {offsets = [0, 384], sizes = [8, 128], strides = [1, 1]} : vector<8x512xf32> to vector<8x128xf32>
    %415 = arith.negf %414 : vector<8x128xf32>
    %416 = math.exp %415 : vector<8x128xf32>
    %cst_85 = arith.constant 1.000000e+00 : f32
    %417 = vector.broadcast %cst_85 : f32 to vector<8x128xf32>
    %418 = arith.addf %417, %416 : vector<8x128xf32>
    %419 = arith.divf %417, %418 : vector<8x128xf32>
    %420 = arith.mulf %411, %364 : vector<8x128xf32>
    %421 = arith.mulf %405, %413 : vector<8x128xf32>
    %422 = arith.addf %420, %421 : vector<8x128xf32>
    %423 = math.tanh %422 : vector<8x128xf32>
    %424 = arith.mulf %419, %423 : vector<8x128xf32>
    %425 = vector.extract_strided_slice %396 {offsets = [0, 512], sizes = [8, 512], strides = [1, 1]} : vector<8x1024xf32> to vector<8x512xf32>
    %426 = vector.extract_strided_slice %425 {offsets = [0, 0], sizes = [8, 128], strides = [1, 1]} : vector<8x512xf32> to vector<8x128xf32>
    %427 = arith.negf %426 : vector<8x128xf32>
    %428 = math.exp %427 : vector<8x128xf32>
    %cst_86 = arith.constant 1.000000e+00 : f32
    %429 = vector.broadcast %cst_86 : f32 to vector<8x128xf32>
    %430 = arith.addf %429, %428 : vector<8x128xf32>
    %431 = arith.divf %429, %430 : vector<8x128xf32>
    %432 = vector.extract_strided_slice %425 {offsets = [0, 128], sizes = [8, 128], strides = [1, 1]} : vector<8x512xf32> to vector<8x128xf32>
    %433 = arith.negf %432 : vector<8x128xf32>
    %434 = math.exp %433 : vector<8x128xf32>
    %cst_87 = arith.constant 1.000000e+00 : f32
    %435 = vector.broadcast %cst_87 : f32 to vector<8x128xf32>
    %436 = arith.addf %435, %434 : vector<8x128xf32>
    %437 = arith.divf %435, %436 : vector<8x128xf32>
    %438 = vector.extract_strided_slice %425 {offsets = [0, 256], sizes = [8, 128], strides = [1, 1]} : vector<8x512xf32> to vector<8x128xf32>
    %439 = math.tanh %438 : vector<8x128xf32>
    %440 = vector.extract_strided_slice %425 {offsets = [0, 384], sizes = [8, 128], strides = [1, 1]} : vector<8x512xf32> to vector<8x128xf32>
    %441 = arith.negf %440 : vector<8x128xf32>
    %442 = math.exp %441 : vector<8x128xf32>
    %cst_88 = arith.constant 1.000000e+00 : f32
    %443 = vector.broadcast %cst_88 : f32 to vector<8x128xf32>
    %444 = arith.addf %443, %442 : vector<8x128xf32>
    %445 = arith.divf %443, %444 : vector<8x128xf32>
    %446 = arith.mulf %437, %390 : vector<8x128xf32>
    %447 = arith.mulf %431, %439 : vector<8x128xf32>
    %448 = arith.addf %446, %447 : vector<8x128xf32>
    %449 = math.tanh %448 : vector<8x128xf32>
    %450 = arith.mulf %445, %449 : vector<8x128xf32>
    %c48_89 = arith.constant 48 : index
    %c0_90 = arith.constant 0 : index
    %451 = vector.load %arg9[%c48_89, %c0_90] : memref<64x128xf32, #tpu.memory_space<vmem>>, vector<8x128xf32>
    tpu.vector_store %arg9[%c48_89, %c0_90], %450 {strides = array<i32>} : memref<64x128xf32, #tpu.memory_space<vmem>>, vector<8x128xf32>,
    %452 = tpu.concatenate %424, %450 in 1 : vector<8x128xf32>, vector<8x128xf32> -> vector<8x256xf32>
    %cst_91 = arith.constant dense<0.000000e+00> : vector<8x1024xf32>
    %453 = tpu.matmul %452, %7, %cst_91 {dimension_numbers = #tpu.dot_dimension_numbers<[1], [0], [0], [1], [0, 0, 1, 1], [], []>} : vector<8x256xf32>, vector<256x1024xf32>, vector<8x1024xf32> -> vector<8x1024xf32>
    %454 = arith.addf %453, %10 : vector<8x1024xf32>
    %455 = vector.extract_strided_slice %454 {offsets = [0, 512], sizes = [8, 512], strides = [1, 1]} : vector<8x1024xf32> to vector<8x512xf32>
    %456 = vector.extract_strided_slice %455 {offsets = [0, 0], sizes = [8, 128], strides = [1, 1]} : vector<8x512xf32> to vector<8x128xf32>
    %457 = arith.negf %456 : vector<8x128xf32>
    %458 = math.exp %457 : vector<8x128xf32>
    %cst_92 = arith.constant 1.000000e+00 : f32
    %459 = vector.broadcast %cst_92 : f32 to vector<8x128xf32>
    %460 = arith.addf %459, %458 : vector<8x128xf32>
    %461 = arith.divf %459, %460 : vector<8x128xf32>
    %462 = vector.extract_strided_slice %455 {offsets = [0, 128], sizes = [8, 128], strides = [1, 1]} : vector<8x512xf32> to vector<8x128xf32>
    %463 = arith.negf %462 : vector<8x128xf32>
    %464 = math.exp %463 : vector<8x128xf32>
    %cst_93 = arith.constant 1.000000e+00 : f32
    %465 = vector.broadcast %cst_93 : f32 to vector<8x128xf32>
    %466 = arith.addf %465, %464 : vector<8x128xf32>
    %467 = arith.divf %465, %466 : vector<8x128xf32>
    %468 = vector.extract_strided_slice %455 {offsets = [0, 256], sizes = [8, 128], strides = [1, 1]} : vector<8x512xf32> to vector<8x128xf32>
    %469 = math.tanh %468 : vector<8x128xf32>
    %470 = vector.extract_strided_slice %455 {offsets = [0, 384], sizes = [8, 128], strides = [1, 1]} : vector<8x512xf32> to vector<8x128xf32>
    %471 = arith.negf %470 : vector<8x128xf32>
    %472 = math.exp %471 : vector<8x128xf32>
    %cst_94 = arith.constant 1.000000e+00 : f32
    %473 = vector.broadcast %cst_94 : f32 to vector<8x128xf32>
    %474 = arith.addf %473, %472 : vector<8x128xf32>
    %475 = arith.divf %473, %474 : vector<8x128xf32>
    %476 = arith.mulf %467, %448 : vector<8x128xf32>
    %477 = arith.mulf %461, %469 : vector<8x128xf32>
    %478 = arith.addf %476, %477 : vector<8x128xf32>
    %479 = math.tanh %478 : vector<8x128xf32>
    %480 = arith.mulf %475, %479 : vector<8x128xf32>
    %c56_95 = arith.constant 56 : index
    %c0_96 = arith.constant 0 : index
    %481 = vector.load %arg9[%c56_95, %c0_96] : memref<64x128xf32, #tpu.memory_space<vmem>>, vector<8x128xf32>
    tpu.vector_store %arg9[%c56_95, %c0_96], %480 {strides = array<i32>} : memref<64x128xf32, #tpu.memory_space<vmem>>, vector<8x128xf32>,
    %c0_97 = arith.constant 0 : index
    %c0_98 = arith.constant 0 : index
    %482 = vector.load %arg9[%c0_97, %c0_98] : memref<64x128xf32, #tpu.memory_space<vmem>>, vector<64x128xf32>
    %c0_99 = arith.constant 0 : index
    %c0_100 = arith.constant 0 : index
    %483 = vector.load %arg6[%c0_99, %c0_100] : memref<512x128xf32, #tpu.memory_space<vmem>>, vector<512x128xf32>
    %cst_101 = arith.constant dense<0.000000e+00> : vector<64x512xf32>
    %484 = tpu.matmul %482, %483, %cst_101 {dimension_numbers = #tpu.dot_dimension_numbers<[1], [1], [0], [0], [0, 0, 1, 0], [], []>} : vector<64x128xf32>, vector<512x128xf32>, vector<64x512xf32> -> vector<64x512xf32>
    %c0_102 = arith.constant 0 : index
    %c0_103 = arith.constant 0 : index
    %485 = vector.load %arg7[%c0_102, %c0_103] : memref<64x512xf32, #tpu.memory_space<vmem>>, vector<64x512xf32>
    tpu.vector_store %arg7[%c0_102, %c0_103], %484 {strides = array<i32>} : memref<64x512xf32, #tpu.memory_space<vmem>>, vector<64x512xf32>,
    return
  }
  func.func @transform_0(%arg0: i32) -> (i32, i32) {
    %c0_i32 = arith.constant 0 : i32
    %c0_i32_0 = arith.constant 0 : i32
    %c0_i32_1 = arith.constant 0 : i32
    return %c0_i32, %c0_i32_0 : i32, i32
  }
  func.func @transform_1(%arg0: i32) -> (i32, i32) {
    %c0_i32 = arith.constant 0 : i32
    %c0_i32_0 = arith.constant 0 : i32
    %c0_i32_1 = arith.constant 0 : i32
    return %c0_i32, %c0_i32_0 : i32, i32
  }
  func.func @transform_2(%arg0: i32) -> (i32, i32) {
    %c0_i32 = arith.constant 0 : i32
    %c0_i32_0 = arith.constant 0 : i32
    %c0_i32_1 = arith.constant 0 : i32
    return %c0_i32, %c0_i32_0 : i32, i32
  }
  func.func @transform_3(%arg0: i32) -> (i32, i32) {
    %c0_i32 = arith.constant 0 : i32
    %c0_i32_0 = arith.constant 0 : i32
    %c0_i32_1 = arith.constant 0 : i32
    return %c0_i32, %c0_i32_0 : i32, i32
  }
  func.func @transform_4(%arg0: i32) -> (i32, i32) {
    %c0_i32 = arith.constant 0 : i32
    %c0_i32_0 = arith.constant 0 : i32
    %c0_i32_1 = arith.constant 0 : i32
    return %c0_i32, %c0_i32_0 : i32, i32
  }
  func.func @transform_5(%arg0: i32) -> (i32, i32) {
    %c0_i32 = arith.constant 0 : i32
    %c0_i32_0 = arith.constant 0 : i32
    %c0_i32_1 = arith.constant 0 : i32
    return %c0_i32, %c0_i32_0 : i32, i32
  }
  func.func @transform_6(%arg0: i32) -> (i32, i32) {
    %c0_i32 = arith.constant 0 : i32
    %c0_i32_0 = arith.constant 0 : i32
    %c0_i32_1 = arith.constant 0 : i32
    return %c0_i32, %c0_i32_0 : i32, i32
  }
}

</mosaic_0001>

<llo_original>
// kernel: forward.1
$region0: #{forward.1}
  #allocation0 [shape = 'u32[]', space=smem, size = 0x4, offset = 0x4, fixed_abs, tag = 'smem constant byte address 0x4 - core index']
  #allocation1 [shape = 'u32[72,128]{1,0:T(1,128)}', space=vmem, size = 0x9000, scoped, tag = 'internal scratch']
  #allocation2 [shape = 'f32[64,512]{1,0:T(8,128)}', space=vmem, size = 0x20000, scoped, tag = 'scratch operand']
  #allocation3 [shape = 'f32[64,128]{1,0:T(8,128)}', space=vmem, size = 0x8000, scoped, tag = 'scratch operand']
  %s0 = inlined_call_operand.vmem [shape: f32[64,128], index: 0, kind: input, shape index: {}]
  %s1 = inlined_call_operand.hbm [shape: f32[128,512], index: 1, kind: input, shape index: {}]
  %s2 = inlined_call_operand.vmem [shape: f32[1,512], index: 2, kind: input, shape index: {}]
  %s3 = inlined_call_operand.hbm [shape: f32[256,1024], index: 3, kind: input, shape index: {}]
  %s4 = inlined_call_operand.vmem [shape: f32[1,1024], index: 4, kind: input, shape index: {}]
  %s5 = inlined_call_operand.vmem [shape: f32[512,128], index: 5, kind: input, shape index: {}]
  %s6 = inlined_call_operand.hbm [shape: f32[64,512], index: 6, kind: output, shape index: {}]
  %s7 = sld [smem:[#allocation0]]
  $region42: #{forward.1} parent=0
    _
  %s9 = ssub.s32 1, %s7
  %s10 = scalar_select 0, %s9, %s7
  $region1: #{forward.1} parent=0
    #allocation4 [shape = 'u8[262144]{0}', space=vmem, size = 0x40000, scoped, tag = 'input window, operand 1, single buffered']
    #allocation5 [shape = 's32[1]{0}', space=sflag, size = 0x4, scoped, tag = 'scoped memory for forward.1']
    #allocation6 [shape = 's32[1]{0}', space=sflag, size = 0x4, scoped, tag = 'scoped memory for forward.1']
    #allocation7 [shape = 'u8[1048576]{0}', space=vmem, size = 0x100000, scoped, tag = 'input window, operand 3, single buffered']
    #allocation8 [shape = 's32[1]{0}', space=sflag, size = 0x4, scoped, tag = 'scoped memory for forward.1']
    #allocation9 [shape = 'u8[131072]{0}', space=vmem, size = 0x20000, scoped, tag = 'output window, operand 0, single buffered']
    %11 = vsyncpa [#allocation5], 0
    %12 = vsyncpa [#allocation8], 0
    %13 = vsyncpa [#allocation6], 0
    // Predicated region
    $region2: #{forward.1} parent=1 // pred_check
      _
    $region3: #{forward.1} parent=1 // pred_check_branch
      %15 = sbr.rel (0) target = $region5
    $region4: #{forward.1} parent=1 // pred_region
      _
    $region5: #{forward.1} parent=1 // pred_fallthru
      _
    // Predicated region
    $region6: #{forward.1} parent=1 // pred_check
      _
    $region7: #{forward.1} parent=1 // pred_check_branch
      %17 = sbr.rel (0) target = $region9
    $region8: #{forward.1} parent=1 // pred_region
      %19 = vsyncadd [#allocation5], 0
      %s20 = sshll.u32 %s1, 4
      %s21 = int_to_ptr.hbm [resolvable:$true] %s20
      %s22 = sshll.u32 [#allocation4], 4
      %s23 = int_to_ptr.vmem [resolvable:$true] %s22
      %28 = dma.hbm_to_vmem [thread:$0]  %s21, 8192, %s23, [#allocation5], 512, 512, 32
    $region9: #{forward.1} parent=1 // pred_fallthru
      _
    // Predicated region
    $region10: #{forward.1} parent=1 // pred_check
      _
    $region11: #{forward.1} parent=1 // pred_check_branch
      %30 = sbr.rel (0) target = $region13
    $region12: #{forward.1} parent=1 // pred_region
      _
    $region13: #{forward.1} parent=1 // pred_fallthru
      _
    // Predicated region
    $region14: #{forward.1} parent=1 // pred_check
      _
    $region15: #{forward.1} parent=1 // pred_check_branch
      %32 = sbr.rel (0) target = $region17
    $region16: #{forward.1} parent=1 // pred_region
      %34 = vsyncadd [#allocation8], 0
      %s35 = sshll.u32 %s3, 4
      %s36 = int_to_ptr.hbm [resolvable:$true] %s35
      %s37 = sshll.u32 [#allocation7], 4
      %s38 = int_to_ptr.vmem [resolvable:$true] %s37
      %43 = dma.hbm_to_vmem [thread:$0]  %s36, 32768, %s38, [#allocation8], 1024, 1024, 64
    $region17: #{forward.1} parent=1 // pred_fallthru
      _
    // Predicated region
    $region18: #{forward.1} parent=1 // pred_check
      _
    $region19: #{forward.1} parent=1 // pred_check_branch
      %45 = sbr.rel (0) target = $region21
    $region20: #{forward.1} parent=1 // pred_region
      _
    $region21: #{forward.1} parent=1 // pred_fallthru
      _
    // Predicated region
    $region22: #{forward.1} parent=1 // pred_check
      _
    $region23: #{forward.1} parent=1 // pred_check_branch
      %47 = sbr.rel (0) target = $region25
    $region24: #{forward.1} parent=1 // pred_region
      _
    $region25: #{forward.1} parent=1 // pred_fallthru
      _
    // Predicated region
    $region26: #{forward.1} parent=1 // pred_check
      _
    $region27: #{forward.1} parent=1 // pred_check_branch
      %49 = sbr.rel (0) target = $region29
    $region28: #{forward.1} parent=1 // pred_region
      %51 = dma.done [#allocation5], 8192
    $region29: #{forward.1} parent=1 // pred_fallthru
      _
    // Predicated region
    $region30: #{forward.1} parent=1 // pred_check
      _
    $region31: #{forward.1} parent=1 // pred_check_branch
      %53 = sbr.rel (0) target = $region33
    $region32: #{forward.1} parent=1 // pred_region
      %55 = dma.done [#allocation8], 32768
    $region33: #{forward.1} parent=1 // pred_fallthru
      _
    %v56 = vld [vmem:[%s0] sm:$0xff]
    %v57 = vld [vmem:[%s0 + $0x8] sm:$0xff]
    %v58 = vld [vmem:[%s0 + $0x10] sm:$0xff]
    %v59 = vld [vmem:[%s0 + $0x18] sm:$0xff]
    %v60 = vld [vmem:[%s0 + $0x20] sm:$0xff]
    %v61 = vld [vmem:[%s0 + $0x28] sm:$0xff]
    %v62 = vld [vmem:[%s0 + $0x30] sm:$0xff]
    %v63 = vld [vmem:[%s0 + $0x38] sm:$0xff]
    %v64 = vld [vmem:[#allocation4] sm:$0xff]
    %v65 = vld [vmem:[#allocation4 + $0x8] sm:$0xff]
    %v66 = vld [vmem:[#allocation4 + $0x10] sm:$0xff]
    %v67 = vld [vmem:[#allocation4 + $0x18] sm:$0xff]
    %v68 = vld [vmem:[#allocation4 + $0x20] sm:$0xff]
    %v69 = vld [vmem:[#allocation4 + $0x28] sm:$0xff]
    %v70 = vld [vmem:[#allocation4 + $0x30] sm:$0xff]
    %v71 = vld [vmem:[#allocation4 + $0x38] sm:$0xff]
    %v72 = vld [vmem:[#allocation4 + $0x40] sm:$0xff]
    %v73 = vld [vmem:[#allocation4 + $0x48] sm:$0xff]
    %v74 = vld [vmem:[#allocation4 + $0x50] sm:$0xff]
    %v75 = vld [vmem:[#allocation4 + $0x58] sm:$0xff]
    %v76 = vld [vmem:[#allocation4 + $0x60] sm:$0xff]
    %v77 = vld [vmem:[#allocation4 + $0x68] sm:$0xff]
    %v78 = vld [vmem:[#allocation4 + $0x70] sm:$0xff]
    %v79 = vld [vmem:[#allocation4 + $0x78] sm:$0xff]
    %v80 = vld [vmem:[#allocation4 + $0x80] sm:$0xff]
    %v81 = vld [vmem:[#allocation4 + $0x88] sm:$0xff]
    %v82 = vld [vmem:[#allocation4 + $0x90] sm:$0xff]
    %v83 = vld [vmem:[#allocation4 + $0x98] sm:$0xff]
    %v84 = vld [vmem:[#allocation4 + $0xa0] sm:$0xff]
    %v85 = vld [vmem:[#allocation4 + $0xa8] sm:$0xff]
    %v86 = vld [vmem:[#allocation4 + $0xb0] sm:$0xff]
    %v87 = vld [vmem:[#allocation4 + $0xb8] sm:$0xff]
    %v88 = vld [vmem:[#allocation4 + $0xc0] sm:$0xff]
    %v89 = vld [vmem:[#allocation4 + $0xc8] sm:$0xff]
    %v90 = vld [vmem:[#allocation4 + $0xd0] sm:$0xff]
    %v91 = vld [vmem:[#allocation4 + $0xd8] sm:$0xff]
    %v92 = vld [vmem:[#allocation4 + $0xe0] sm:$0xff]
    %v93 = vld [vmem:[#allocation4 + $0xe8] sm:$0xff]
    %v94 = vld [vmem:[#allocation4 + $0xf0] sm:$0xff]
    %v95 = vld [vmem:[#allocation4 + $0xf8] sm:$0xff]
    %v96 = vld [vmem:[#allocation4 + $0x100] sm:$0xff]
    %v97 = vld [vmem:[#allocation4 + $0x108] sm:$0xff]
    %v98 = vld [vmem:[#allocation4 + $0x110] sm:$0xff]
    %v99 = vld [vmem:[#allocation4 + $0x118] sm:$0xff]
    %v100 = vld [vmem:[#allocation4 + $0x120] sm:$0xff]
    %v101 = vld [vmem:[#allocation4 + $0x128] sm:$0xff]
    %v102 = vld [vmem:[#allocation4 + $0x130] sm:$0xff]
    %v103 = vld [vmem:[#allocation4 + $0x138] sm:$0xff]
    %v104 = vld [vmem:[#allocation4 + $0x140] sm:$0xff]
    %v105 = vld [vmem:[#allocation4 + $0x148] sm:$0xff]
    %v106 = vld [vmem:[#allocation4 + $0x150] sm:$0xff]
    %v107 = vld [vmem:[#allocation4 + $0x158] sm:$0xff]
    %v108 = vld [vmem:[#allocation4 + $0x160] sm:$0xff]
    %v109 = vld [vmem:[#allocation4 + $0x168] sm:$0xff]
    %v110 = vld [vmem:[#allocation4 + $0x170] sm:$0xff]
    %v111 = vld [vmem:[#allocation4 + $0x178] sm:$0xff]
    %v112 = vld [vmem:[#allocation4 + $0x180] sm:$0xff]
    %v113 = vld [vmem:[#allocation4 + $0x188] sm:$0xff]
    %v114 = vld [vmem:[#allocation4 + $0x190] sm:$0xff]
    %v115 = vld [vmem:[#allocation4 + $0x198] sm:$0xff]
    %v116 = vld [vmem:[#allocation4 + $0x1a0] sm:$0xff]
    %v117 = vld [vmem:[#allocation4 + $0x1a8] sm:$0xff]
    %v118 = vld [vmem:[#allocation4 + $0x1b0] sm:$0xff]
    %v119 = vld [vmem:[#allocation4 + $0x1b8] sm:$0xff]
    %v120 = vld [vmem:[#allocation4 + $0x1c0] sm:$0xff]
    %v121 = vld [vmem:[#allocation4 + $0x1c8] sm:$0xff]
    %v122 = vld [vmem:[#allocation4 + $0x1d0] sm:$0xff]
    %v123 = vld [vmem:[#allocation4 + $0x1d8] sm:$0xff]
    %v124 = vld [vmem:[#allocation4 + $0x1e0] sm:$0xff]
    %v125 = vld [vmem:[#allocation4 + $0x1e8] sm:$0xff]
    %v126 = vld [vmem:[#allocation4 + $0x1f0] sm:$0xff]
    %v127 = vld [vmem:[#allocation4 + $0x1f8] sm:$0xff]
    %v128 = vld [vmem:[%s2] sm:$0xf]
    %v130 = vperm.slane %v128, 0
    %v131 = vperm.slane %v128, 1
    %v132 = vperm.slane %v128, 2
    %v133 = vperm.slane %v128, 3
    %138 = vmatpush.msra.mxu0 %v124
    %139 = vmatpush.msra.mxu0 %v120
    %140 = vmatpush.msra.mxu0 %v116
    %141 = vmatpush.msra.mxu0 %v112
    %142 = vmatpush.msra.mxu0 %v108
    %143 = vmatpush.msra.mxu0 %v104
    %144 = vmatpush.msra.mxu0 %v100
    %145 = vmatpush.msra.mxu0 %v96
    %146 = vmatpush.msra.mxu0 %v92
    %147 = vmatpush.msra.mxu0 %v88
    %148 = vmatpush.msra.mxu0 %v84
    %149 = vmatpush.msra.mxu0 %v80
    %150 = vmatpush.msra.mxu0 %v76
    %151 = vmatpush.msra.mxu0 %v72
    %152 = vmatpush.msra.mxu0 %v68
    %153 = vmatpush.msra.mxu0 %v64
    %154 = vmatmul.f32.gmra.mxu0 %v56
    %v155 = vpop.f32.mrf.mxu0
    %v156 = vadd.f32 %v130, %v155
    %157 = vmatmul.f32.gmra.mxu0 %v57
    %v158 = vpop.f32.mrf.mxu0
    %v159 = vadd.f32 %v130, %v158
    %160 = vmatmul.f32.gmra.mxu0 %v58
    %v161 = vpop.f32.mrf.mxu0
    %v162 = vadd.f32 %v130, %v161
    %163 = vmatmul.f32.gmra.mxu0 %v59
    %v164 = vpop.f32.mrf.mxu0
    %v165 = vadd.f32 %v130, %v164
    %166 = vmatmul.f32.gmra.mxu0 %v60
    %v167 = vpop.f32.mrf.mxu0
    %v168 = vadd.f32 %v130, %v167
    %169 = vmatmul.f32.gmra.mxu0 %v61
    %v170 = vpop.f32.mrf.mxu0
    %v171 = vadd.f32 %v130, %v170
    %172 = vmatmul.f32.gmra.mxu0 %v62
    %v173 = vpop.f32.mrf.mxu0
    %v174 = vadd.f32 %v130, %v173
    %175 = vmatmul.f32.gmra.mxu0 %v63
    %v176 = vpop.f32.mrf.mxu0
    %v177 = vadd.f32 %v130, %v176
    %178 = vdwg.mxu0
    %179 = vmatpush.msra.mxu0 %v125
    %180 = vmatpush.msra.mxu0 %v121
    %181 = vmatpush.msra.mxu0 %v117
    %182 = vmatpush.msra.mxu0 %v113
    %183 = vmatpush.msra.mxu0 %v109
    %184 = vmatpush.msra.mxu0 %v105
    %185 = vmatpush.msra.mxu0 %v101
    %186 = vmatpush.msra.mxu0 %v97
    %187 = vmatpush.msra.mxu0 %v93
    %188 = vmatpush.msra.mxu0 %v89
    %189 = vmatpush.msra.mxu0 %v85
    %190 = vmatpush.msra.mxu0 %v81
    %191 = vmatpush.msra.mxu0 %v77
    %192 = vmatpush.msra.mxu0 %v73
    %193 = vmatpush.msra.mxu0 %v69
    %194 = vmatpush.msra.mxu0 %v65
    %195 = vmatmul.f32.gmra.mxu0 %v56
    %v196 = vpop.f32.mrf.mxu0
    %v197 = vadd.f32 %v131, %v196
    %198 = vmatmul.f32.gmra.mxu0 %v57
    %v199 = vpop.f32.mrf.mxu0
    %v200 = vadd.f32 %v131, %v199
    %201 = vmatmul.f32.gmra.mxu0 %v58
    %v202 = vpop.f32.mrf.mxu0
    %v203 = vadd.f32 %v131, %v202
    %204 = vmatmul.f32.gmra.mxu0 %v59
    %v205 = vpop.f32.mrf.mxu0
    %v206 = vadd.f32 %v131, %v205
    %207 = vmatmul.f32.gmra.mxu0 %v60
    %v208 = vpop.f32.mrf.mxu0
    %v209 = vadd.f32 %v131, %v208
    %210 = vmatmul.f32.gmra.mxu0 %v61
    %v211 = vpop.f32.mrf.mxu0
    %v212 = vadd.f32 %v131, %v211
    %213 = vmatmul.f32.gmra.mxu0 %v62
    %v214 = vpop.f32.mrf.mxu0
    %v215 = vadd.f32 %v131, %v214
    %216 = vmatmul.f32.gmra.mxu0 %v63
    %v217 = vpop.f32.mrf.mxu0
    %v218 = vadd.f32 %v131, %v217
    %219 = vdwg.mxu0
    %220 = vmatpush.msra.mxu0 %v126
    %221 = vmatpush.msra.mxu0 %v122
    %222 = vmatpush.msra.mxu0 %v118
    %223 = vmatpush.msra.mxu0 %v114
    %224 = vmatpush.msra.mxu0 %v110
    %225 = vmatpush.msra.mxu0 %v106
    %226 = vmatpush.msra.mxu0 %v102
    %227 = vmatpush.msra.mxu0 %v98
    %228 = vmatpush.msra.mxu0 %v94
    %229 = vmatpush.msra.mxu0 %v90
    %230 = vmatpush.msra.mxu0 %v86
    %231 = vmatpush.msra.mxu0 %v82
    %232 = vmatpush.msra.mxu0 %v78
    %233 = vmatpush.msra.mxu0 %v74
    %234 = vmatpush.msra.mxu0 %v70
    %235 = vmatpush.msra.mxu0 %v66
    %236 = vmatmul.f32.gmra.mxu0 %v56
    %v237 = vpop.f32.mrf.mxu0
    %v238 = vadd.f32 %v132, %v237
    %239 = vmatmul.f32.gmra.mxu0 %v57
    %v240 = vpop.f32.mrf.mxu0
    %v241 = vadd.f32 %v132, %v240
    %242 = vmatmul.f32.gmra.mxu0 %v58
    %v243 = vpop.f32.mrf.mxu0
    %v244 = vadd.f32 %v132, %v243
    %245 = vmatmul.f32.gmra.mxu0 %v59
    %v246 = vpop.f32.mrf.mxu0
    %v247 = vadd.f32 %v132, %v246
    %248 = vmatmul.f32.gmra.mxu0 %v60
    %v249 = vpop.f32.mrf.mxu0
    %v250 = vadd.f32 %v132, %v249
    %251 = vmatmul.f32.gmra.mxu0 %v61
    %v252 = vpop.f32.mrf.mxu0
    %v253 = vadd.f32 %v132, %v252
    %254 = vmatmul.f32.gmra.mxu0 %v62
    %v255 = vpop.f32.mrf.mxu0
    %v256 = vadd.f32 %v132, %v255
    %257 = vmatmul.f32.gmra.mxu0 %v63
    %v258 = vpop.f32.mrf.mxu0
    %v259 = vadd.f32 %v132, %v258
    %260 = vdwg.mxu0
    %261 = vmatpush.msra.mxu0 %v127
    %262 = vmatpush.msra.mxu0 %v123
    %263 = vmatpush.msra.mxu0 %v119
    %264 = vmatpush.msra.mxu0 %v115
    %265 = vmatpush.msra.mxu0 %v111
    %266 = vmatpush.msra.mxu0 %v107
    %267 = vmatpush.msra.mxu0 %v103
    %268 = vmatpush.msra.mxu0 %v99
    %269 = vmatpush.msra.mxu0 %v95
    %270 = vmatpush.msra.mxu0 %v91
    %271 = vmatpush.msra.mxu0 %v87
    %272 = vmatpush.msra.mxu0 %v83
    %273 = vmatpush.msra.mxu0 %v79
    %274 = vmatpush.msra.mxu0 %v75
    %275 = vmatpush.msra.mxu0 %v71
    %276 = vmatpush.msra.mxu0 %v67
    %277 = vmatmul.f32.gmra.mxu0 %v56
    %v278 = vpop.f32.mrf.mxu0
    %v279 = vadd.f32 %v133, %v278
    %280 = vmatmul.f32.gmra.mxu0 %v57
    %v281 = vpop.f32.mrf.mxu0
    %v282 = vadd.f32 %v133, %v281
    %283 = vmatmul.f32.gmra.mxu0 %v58
    %v284 = vpop.f32.mrf.mxu0
    %v285 = vadd.f32 %v133, %v284
    %286 = vmatmul.f32.gmra.mxu0 %v59
    %v287 = vpop.f32.mrf.mxu0
    %v288 = vadd.f32 %v133, %v287
    %289 = vmatmul.f32.gmra.mxu0 %v60
    %v290 = vpop.f32.mrf.mxu0
    %v291 = vadd.f32 %v133, %v290
    %292 = vmatmul.f32.gmra.mxu0 %v61
    %v293 = vpop.f32.mrf.mxu0
    %v294 = vadd.f32 %v133, %v293
    %295 = vmatmul.f32.gmra.mxu0 %v62
    %v296 = vpop.f32.mrf.mxu0
    %v297 = vadd.f32 %v133, %v296
    %298 = vmatmul.f32.gmra.mxu0 %v63
    %v299 = vpop.f32.mrf.mxu0
    %v300 = vadd.f32 %v133, %v299
    %301 = vdwg.mxu0
    %302 = vst [vmem:[#allocation2] sm:$0xff] %v156
    %303 = vst [vmem:[#allocation2 + $0x8] sm:$0xff] %v197
    %304 = vst [vmem:[#allocation2 + $0x10] sm:$0xff] %v238
    %305 = vst [vmem:[#allocation2 + $0x18] sm:$0xff] %v279
    %306 = vst [vmem:[#allocation2 + $0x20] sm:$0xff] %v159
    %307 = vst [vmem:[#allocation2 + $0x28] sm:$0xff] %v200
    %308 = vst [vmem:[#allocation2 + $0x30] sm:$0xff] %v241
    %309 = vst [vmem:[#allocation2 + $0x38] sm:$0xff] %v282
    %310 = vst [vmem:[#allocation2 + $0x40] sm:$0xff] %v162
    %311 = vst [vmem:[#allocation2 + $0x48] sm:$0xff] %v203
    %312 = vst [vmem:[#allocation2 + $0x50] sm:$0xff] %v244
    %313 = vst [vmem:[#allocation2 + $0x58] sm:$0xff] %v285
    %314 = vst [vmem:[#allocation2 + $0x60] sm:$0xff] %v165
    %315 = vst [vmem:[#allocation2 + $0x68] sm:$0xff] %v206
    %316 = vst [vmem:[#allocation2 + $0x70] sm:$0xff] %v247
    %317 = vst [vmem:[#allocation2 + $0x78] sm:$0xff] %v288
    %318 = vst [vmem:[#allocation2 + $0x80] sm:$0xff] %v168
    %319 = vst [vmem:[#allocation2 + $0x88] sm:$0xff] %v209
    %320 = vst [vmem:[#allocation2 + $0x90] sm:$0xff] %v250
    %321 = vst [vmem:[#allocation2 + $0x98] sm:$0xff] %v291
    %322 = vst [vmem:[#allocation2 + $0xa0] sm:$0xff] %v171
    %323 = vst [vmem:[#allocation2 + $0xa8] sm:$0xff] %v212
    %324 = vst [vmem:[#allocation2 + $0xb0] sm:$0xff] %v253
    %325 = vst [vmem:[#allocation2 + $0xb8] sm:$0xff] %v294
    %326 = vst [vmem:[#allocation2 + $0xc0] sm:$0xff] %v174
    %327 = vst [vmem:[#allocation2 + $0xc8] sm:$0xff] %v215
    %328 = vst [vmem:[#allocation2 + $0xd0] sm:$0xff] %v256
    %329 = vst [vmem:[#allocation2 + $0xd8] sm:$0xff] %v297
    %330 = vst [vmem:[#allocation2 + $0xe0] sm:$0xff] %v177
    %331 = vst [vmem:[#allocation2 + $0xe8] sm:$0xff] %v218
    %332 = vst [vmem:[#allocation2 + $0xf0] sm:$0xff] %v259
    %333 = vst [vmem:[#allocation2 + $0xf8] sm:$0xff] %v300
    %v334 = vld [vmem:[#allocation7] sm:$0xff]
    %v335 = vld [vmem:[#allocation7 + $0x8] sm:$0xff]
    %v336 = vld [vmem:[#allocation7 + $0x10] sm:$0xff]
    %v337 = vld [vmem:[#allocation7 + $0x18] sm:$0xff]
    %v338 = vld [vmem:[#allocation7 + $0x20] sm:$0xff]
    %v339 = vld [vmem:[#allocation7 + $0x28] sm:$0xff]
    %v340 = vld [vmem:[#allocation7 + $0x30] sm:$0xff]
    %v341 = vld [vmem:[#allocation7 + $0x38] sm:$0xff]
    %v342 = vld [vmem:[#allocation7 + $0x40] sm:$0xff]
    %v343 = vld [vmem:[#allocation7 + $0x48] sm:$0xff]
    %v344 = vld [vmem:[#allocation7 + $0x50] sm:$0xff]
    %v345 = vld [vmem:[#allocation7 + $0x58] sm:$0xff]
    %v346 = vld [vmem:[#allocation7 + $0x60] sm:$0xff]
    %v347 = vld [vmem:[#allocation7 + $0x68] sm:$0xff]
    %v348 = vld [vmem:[#allocation7 + $0x70] sm:$0xff]
    %v349 = vld [vmem:[#allocation7 + $0x78] sm:$0xff]
    %v350 = vld [vmem:[#allocation7 + $0x80] sm:$0xff]
    %v351 = vld [vmem:[#allocation7 + $0x88] sm:$0xff]
    %v352 = vld [vmem:[#allocation7 + $0x90] sm:$0xff]
    %v353 = vld [vmem:[#allocation7 + $0x98] sm:$0xff]
    %v354 = vld [vmem:[#allocation7 + $0xa0] sm:$0xff]
    %v355 = vld [vmem:[#allocation7 + $0xa8] sm:$0xff]
    %v356 = vld [vmem:[#allocation7 + $0xb0] sm:$0xff]
    %v357 = vld [vmem:[#allocation7 + $0xb8] sm:$0xff]
    %v358 = vld [vmem:[#allocation7 + $0xc0] sm:$0xff]
    %v359 = vld [vmem:[#allocation7 + $0xc8] sm:$0xff]
    %v360 = vld [vmem:[#allocation7 + $0xd0] sm:$0xff]
    %v361 = vld [vmem:[#allocation7 + $0xd8] sm:$0xff]
    %v362 = vld [vmem:[#allocation7 + $0xe0] sm:$0xff]
    %v363 = vld [vmem:[#allocation7 + $0xe8] sm:$0xff]
    %v364 = vld [vmem:[#allocation7 + $0xf0] sm:$0xff]
    %v365 = vld [vmem:[#allocation7 + $0xf8] sm:$0xff]
    %v366 = vld [vmem:[#allocation7 + $0x100] sm:$0xff]
    %v367 = vld [vmem:[#allocation7 + $0x108] sm:$0xff]
    %v368 = vld [vmem:[#allocation7 + $0x110] sm:$0xff]
    %v369 = vld [vmem:[#allocation7 + $0x118] sm:$0xff]
    %v370 = vld [vmem:[#allocation7 + $0x120] sm:$0xff]
    %v371 = vld [vmem:[#allocation7 + $0x128] sm:$0xff]
    %v372 = vld [vmem:[#allocation7 + $0x130] sm:$0xff]
    %v373 = vld [vmem:[#allocation7 + $0x138] sm:$0xff]
    %v374 = vld [vmem:[#allocation7 + $0x140] sm:$0xff]
    %v375 = vld [vmem:[#allocation7 + $0x148] sm:$0xff]
    %v376 = vld [vmem:[#allocation7 + $0x150] sm:$0xff]
    %v377 = vld [vmem:[#allocation7 + $0x158] sm:$0xff]
    %v378 = vld [vmem:[#allocation7 + $0x160] sm:$0xff]
    %v379 = vld [vmem:[#allocation7 + $0x168] sm:$0xff]
    %v380 = vld [vmem:[#allocation7 + $0x170] sm:$0xff]
    %v381 = vld [vmem:[#allocation7 + $0x178] sm:$0xff]
    %v382 = vld [vmem:[#allocation7 + $0x180] sm:$0xff]
    %v383 = vld [vmem:[#allocation7 + $0x188] sm:$0xff]
    %v384 = vld [vmem:[#allocation7 + $0x190] sm:$0xff]
    %v385 = vld [vmem:[#allocation7 + $0x198] sm:$0xff]
    %v386 = vld [vmem:[#allocation7 + $0x1a0] sm:$0xff]
    %v387 = vld [vmem:[#allocation7 + $0x1a8] sm:$0xff]
    %v388 = vld [vmem:[#allocation7 + $0x1b0] sm:$0xff]
    %v389 = vld [vmem:[#allocation7 + $0x1b8] sm:$0xff]
    %v390 = vld [vmem:[#allocation7 + $0x1c0] sm:$0xff]
    %v391 = vld [vmem:[#allocation7 + $0x1c8] sm:$0xff]
    %v392 = vld [vmem:[#allocation7 + $0x1d0] sm:$0xff]
    %v393 = vld [vmem:[#allocation7 + $0x1d8] sm:$0xff]
    %v394 = vld [vmem:[#allocation7 + $0x1e0] sm:$0xff]
    %v395 = vld [vmem:[#allocation7 + $0x1e8] sm:$0xff]
    %v396 = vld [vmem:[#allocation7 + $0x1f0] sm:$0xff]
    %v397 = vld [vmem:[#allocation7 + $0x1f8] sm:$0xff]
    %v398 = vld [vmem:[#allocation7 + $0x200] sm:$0xff]
    %v399 = vld [vmem:[#allocation7 + $0x208] sm:$0xff]
    %v400 = vld [vmem:[#allocation7 + $0x210] sm:$0xff]
    %v401 = vld [vmem:[#allocation7 + $0x218] sm:$0xff]
    %v402 = vld [vmem:[#allocation7 + $0x220] sm:$0xff]
    %v403 = vld [vmem:[#allocation7 + $0x228] sm:$0xff]
    %v404 = vld [vmem:[#allocation7 + $0x230] sm:$0xff]
    %v405 = vld [vmem:[#allocation7 + $0x238] sm:$0xff]
    %v406 = vld [vmem:[#allocation7 + $0x240] sm:$0xff]
    %v407 = vld [vmem:[#allocation7 + $0x248] sm:$0xff]
    %v408 = vld [vmem:[#allocation7 + $0x250] sm:$0xff]
    %v409 = vld [vmem:[#allocation7 + $0x258] sm:$0xff]
    %v410 = vld [vmem:[#allocation7 + $0x260] sm:$0xff]
    %v411 = vld [vmem:[#allocation7 + $0x268] sm:$0xff]
    %v412 = vld [vmem:[#allocation7 + $0x270] sm:$0xff]
    %v413 = vld [vmem:[#allocation7 + $0x278] sm:$0xff]
    %v414 = vld [vmem:[#allocation7 + $0x280] sm:$0xff]
    %v415 = vld [vmem:[#allocation7 + $0x288] sm:$0xff]
    %v416 = vld [vmem:[#allocation7 + $0x290] sm:$0xff]
    %v417 = vld [vmem:[#allocation7 + $0x298] sm:$0xff]
    %v418 = vld [vmem:[#allocation7 + $0x2a0] sm:$0xff]
    %v419 = vld [vmem:[#allocation7 + $0x2a8] sm:$0xff]
    %v420 = vld [vmem:[#allocation7 + $0x2b0] sm:$0xff]
    %v421 = vld [vmem:[#allocation7 + $0x2b8] sm:$0xff]
    %v422 = vld [vmem:[#allocation7 + $0x2c0] sm:$0xff]
    %v423 = vld [vmem:[#allocation7 + $0x2c8] sm:$0xff]
    %v424 = vld [vmem:[#allocation7 + $0x2d0] sm:$0xff]
    %v425 = vld [vmem:[#allocation7 + $0x2d8] sm:$0xff]
    %v426 = vld [vmem:[#allocation7 + $0x2e0] sm:$0xff]
    %v427 = vld [vmem:[#allocation7 + $0x2e8] sm:$0xff]
    %v428 = vld [vmem:[#allocation7 + $0x2f0] sm:$0xff]
    %v429 = vld [vmem:[#allocation7 + $0x2f8] sm:$0xff]
    %v430 = vld [vmem:[#allocation7 + $0x300] sm:$0xff]
    %v431 = vld [vmem:[#allocation7 + $0x308] sm:$0xff]
    %v432 = vld [vmem:[#allocation7 + $0x310] sm:$0xff]
    %v433 = vld [vmem:[#allocation7 + $0x318] sm:$0xff]
    %v434 = vld [vmem:[#allocation7 + $0x320] sm:$0xff]
    %v435 = vld [vmem:[#allocation7 + $0x328] sm:$0xff]
    %v436 = vld [vmem:[#allocation7 + $0x330] sm:$0xff]
    %v437 = vld [vmem:[#allocation7 + $0x338] sm:$0xff]
    %v438 = vld [vmem:[#allocation7 + $0x340] sm:$0xff]
    %v439 = vld [vmem:[#allocation7 + $0x348] sm:$0xff]
    %v440 = vld [vmem:[#allocation7 + $0x350] sm:$0xff]
    %v441 = vld [vmem:[#allocation7 + $0x358] sm:$0xff]
    %v442 = vld [vmem:[#allocation7 + $0x360] sm:$0xff]
    %v443 = vld [vmem:[#allocation7 + $0x368] sm:$0xff]
    %v444 = vld [vmem:[#allocation7 + $0x370] sm:$0xff]
    %v445 = vld [vmem:[#allocation7 + $0x378] sm:$0xff]
    %v446 = vld [vmem:[#allocation7 + $0x380] sm:$0xff]
    %v447 = vld [vmem:[#allocation7 + $0x388] sm:$0xff]
    %v448 = vld [vmem:[#allocation7 + $0x390] sm:$0xff]
    %v449 = vld [vmem:[#allocation7 + $0x398] sm:$0xff]
    %v450 = vld [vmem:[#allocation7 + $0x3a0] sm:$0xff]
    %v451 = vld [vmem:[#allocation7 + $0x3a8] sm:$0xff]
    %v452 = vld [vmem:[#allocation7 + $0x3b0] sm:$0xff]
    %v453 = vld [vmem:[#allocation7 + $0x3b8] sm:$0xff]
    %v454 = vld [vmem:[#allocation7 + $0x3c0] sm:$0xff]
    %v455 = vld [vmem:[#allocation7 + $0x3c8] sm:$0xff]
    %v456 = vld [vmem:[#allocation7 + $0x3d0] sm:$0xff]
    %v457 = vld [vmem:[#allocation7 + $0x3d8] sm:$0xff]
    %v458 = vld [vmem:[#allocation7 + $0x3e0] sm:$0xff]
    %v459 = vld [vmem:[#allocation7 + $0x3e8] sm:$0xff]
    %v460 = vld [vmem:[#allocation7 + $0x3f0] sm:$0xff]
    %v461 = vld [vmem:[#allocation7 + $0x3f8] sm:$0xff]
    %v462 = vld [vmem:[#allocation7 + $0x400] sm:$0xff]
    %v463 = vld [vmem:[#allocation7 + $0x408] sm:$0xff]
    %v464 = vld [vmem:[#allocation7 + $0x410] sm:$0xff]
    %v465 = vld [vmem:[#allocation7 + $0x418] sm:$0xff]
    %v466 = vld [vmem:[#allocation7 + $0x420] sm:$0xff]
    %v467 = vld [vmem:[#allocation7 + $0x428] sm:$0xff]
    %v468 = vld [vmem:[#allocation7 + $0x430] sm:$0xff]
    %v469 = vld [vmem:[#allocation7 + $0x438] sm:$0xff]
    %v470 = vld [vmem:[#allocation7 + $0x440] sm:$0xff]
    %v471 = vld [vmem:[#allocation7 + $0x448] sm:$0xff]
    %v472 = vld [vmem:[#allocation7 + $0x450] sm:$0xff]
    %v473 = vld [vmem:[#allocation7 + $0x458] sm:$0xff]
    %v474 = vld [vmem:[#allocation7 + $0x460] sm:$0xff]
    %v475 = vld [vmem:[#allocation7 + $0x468] sm:$0xff]
    %v476 = vld [vmem:[#allocation7 + $0x470] sm:$0xff]
    %v477 = vld [vmem:[#allocation7 + $0x478] sm:$0xff]
    %v478 = vld [vmem:[#allocation7 + $0x480] sm:$0xff]
    %v479 = vld [vmem:[#allocation7 + $0x488] sm:$0xff]
    %v480 = vld [vmem:[#allocation7 + $0x490] sm:$0xff]
    %v481 = vld [vmem:[#allocation7 + $0x498] sm:$0xff]
    %v482 = vld [vmem:[#allocation7 + $0x4a0] sm:$0xff]
    %v483 = vld [vmem:[#allocation7 + $0x4a8] sm:$0xff]
    %v484 = vld [vmem:[#allocation7 + $0x4b0] sm:$0xff]
    %v485 = vld [vmem:[#allocation7 + $0x4b8] sm:$0xff]
    %v486 = vld [vmem:[#allocation7 + $0x4c0] sm:$0xff]
    %v487 = vld [vmem:[#allocation7 + $0x4c8] sm:$0xff]
    %v488 = vld [vmem:[#allocation7 + $0x4d0] sm:$0xff]
    %v489 = vld [vmem:[#allocation7 + $0x4d8] sm:$0xff]
    %v490 = vld [vmem:[#allocation7 + $0x4e0] sm:$0xff]
    %v491 = vld [vmem:[#allocation7 + $0x4e8] sm:$0xff]
    %v492 = vld [vmem:[#allocation7 + $0x4f0] sm:$0xff]
    %v493 = vld [vmem:[#allocation7 + $0x4f8] sm:$0xff]
    %v494 = vld [vmem:[#allocation7 + $0x500] sm:$0xff]
    %v495 = vld [vmem:[#allocation7 + $0x508] sm:$0xff]
    %v496 = vld [vmem:[#allocation7 + $0x510] sm:$0xff]
    %v497 = vld [vmem:[#allocation7 + $0x518] sm:$0xff]
    %v498 = vld [vmem:[#allocation7 + $0x520] sm:$0xff]
    %v499 = vld [vmem:[#allocation7 + $0x528] sm:$0xff]
    %v500 = vld [vmem:[#allocation7 + $0x530] sm:$0xff]
    %v501 = vld [vmem:[#allocation7 + $0x538] sm:$0xff]
    %v502 = vld [vmem:[#allocation7 + $0x540] sm:$0xff]
    %v503 = vld [vmem:[#allocation7 + $0x548] sm:$0xff]
    %v504 = vld [vmem:[#allocation7 + $0x550] sm:$0xff]
    %v505 = vld [vmem:[#allocation7 + $0x558] sm:$0xff]
    %v506 = vld [vmem:[#allocation7 + $0x560] sm:$0xff]
    %v507 = vld [vmem:[#allocation7 + $0x568] sm:$0xff]
    %v508 = vld [vmem:[#allocation7 + $0x570] sm:$0xff]
    %v509 = vld [vmem:[#allocation7 + $0x578] sm:$0xff]
    %v510 = vld [vmem:[#allocation7 + $0x580] sm:$0xff]
    %v511 = vld [vmem:[#allocation7 + $0x588] sm:$0xff]
    %v512 = vld [vmem:[#allocation7 + $0x590] sm:$0xff]
    %v513 = vld [vmem:[#allocation7 + $0x598] sm:$0xff]
    %v514 = vld [vmem:[#allocation7 + $0x5a0] sm:$0xff]
    %v515 = vld [vmem:[#allocation7 + $0x5a8] sm:$0xff]
    %v516 = vld [vmem:[#allocation7 + $0x5b0] sm:$0xff]
    %v517 = vld [vmem:[#allocation7 + $0x5b8] sm:$0xff]
    %v518 = vld [vmem:[#allocation7 + $0x5c0] sm:$0xff]
    %v519 = vld [vmem:[#allocation7 + $0x5c8] sm:$0xff]
    %v520 = vld [vmem:[#allocation7 + $0x5d0] sm:$0xff]
    %v521 = vld [vmem:[#allocation7 + $0x5d8] sm:$0xff]
    %v522 = vld [vmem:[#allocation7 + $0x5e0] sm:$0xff]
    %v523 = vld [vmem:[#allocation7 + $0x5e8] sm:$0xff]
    %v524 = vld [vmem:[#allocation7 + $0x5f0] sm:$0xff]
    %v525 = vld [vmem:[#allocation7 + $0x5f8] sm:$0xff]
    %v526 = vld [vmem:[#allocation7 + $0x600] sm:$0xff]
    %v527 = vld [vmem:[#allocation7 + $0x608] sm:$0xff]
    %v528 = vld [vmem:[#allocation7 + $0x610] sm:$0xff]
    %v529 = vld [vmem:[#allocation7 + $0x618] sm:$0xff]
    %v530 = vld [vmem:[#allocation7 + $0x620] sm:$0xff]
    %v531 = vld [vmem:[#allocation7 + $0x628] sm:$0xff]
    %v532 = vld [vmem:[#allocation7 + $0x630] sm:$0xff]
    %v533 = vld [vmem:[#allocation7 + $0x638] sm:$0xff]
    %v534 = vld [vmem:[#allocation7 + $0x640] sm:$0xff]
    %v535 = vld [vmem:[#allocation7 + $0x648] sm:$0xff]
    %v536 = vld [vmem:[#allocation7 + $0x650] sm:$0xff]
    %v537 = vld [vmem:[#allocation7 + $0x658] sm:$0xff]
    %v538 = vld [vmem:[#allocation7 + $0x660] sm:$0xff]
    %v539 = vld [vmem:[#allocation7 + $0x668] sm:$0xff]
    %v540 = vld [vmem:[#allocation7 + $0x670] sm:$0xff]
    %v541 = vld [vmem:[#allocation7 + $0x678] sm:$0xff]
    %v542 = vld [vmem:[#allocation7 + $0x680] sm:$0xff]
    %v543 = vld [vmem:[#allocation7 + $0x688] sm:$0xff]
    %v544 = vld [vmem:[#allocation7 + $0x690] sm:$0xff]
    %v545 = vld [vmem:[#allocation7 + $0x698] sm:$0xff]
    %v546 = vld [vmem:[#allocation7 + $0x6a0] sm:$0xff]
    %v547 = vld [vmem:[#allocation7 + $0x6a8] sm:$0xff]
    %v548 = vld [vmem:[#allocation7 + $0x6b0] sm:$0xff]
    %v549 = vld [vmem:[#allocation7 + $0x6b8] sm:$0xff]
    %v550 = vld [vmem:[#allocation7 + $0x6c0] sm:$0xff]
    %v551 = vld [vmem:[#allocation7 + $0x6c8] sm:$0xff]
    %v552 = vld [vmem:[#allocation7 + $0x6d0] sm:$0xff]
    %v553 = vld [vmem:[#allocation7 + $0x6d8] sm:$0xff]
    %v554 = vld [vmem:[#allocation7 + $0x6e0] sm:$0xff]
    %v555 = vld [vmem:[#allocation7 + $0x6e8] sm:$0xff]
    %v556 = vld [vmem:[#allocation7 + $0x6f0] sm:$0xff]
    %v557 = vld [vmem:[#allocation7 + $0x6f8] sm:$0xff]
    %v558 = vld [vmem:[#allocation7 + $0x700] sm:$0xff]
    %v559 = vld [vmem:[#allocation7 + $0x708] sm:$0xff]
    %v560 = vld [vmem:[#allocation7 + $0x710] sm:$0xff]
    %v561 = vld [vmem:[#allocation7 + $0x718] sm:$0xff]
    %v562 = vld [vmem:[#allocation7 + $0x720] sm:$0xff]
    %v563 = vld [vmem:[#allocation7 + $0x728] sm:$0xff]
    %v564 = vld [vmem:[#allocation7 + $0x730] sm:$0xff]
    %v565 = vld [vmem:[#allocation7 + $0x738] sm:$0xff]
    %v566 = vld [vmem:[#allocation7 + $0x740] sm:$0xff]
    %v567 = vld [vmem:[#allocation7 + $0x748] sm:$0xff]
    %v568 = vld [vmem:[#allocation7 + $0x750] sm:$0xff]
    %v569 = vld [vmem:[#allocation7 + $0x758] sm:$0xff]
    %v570 = vld [vmem:[#allocation7 + $0x760] sm:$0xff]
    %v571 = vld [vmem:[#allocation7 + $0x768] sm:$0xff]
    %v572 = vld [vmem:[#allocation7 + $0x770] sm:$0xff]
    %v573 = vld [vmem:[#allocation7 + $0x778] sm:$0xff]
    %v574 = vld [vmem:[#allocation7 + $0x780] sm:$0xff]
    %v575 = vld [vmem:[#allocation7 + $0x788] sm:$0xff]
    %v576 = vld [vmem:[#allocation7 + $0x790] sm:$0xff]
    %v577 = vld [vmem:[#allocation7 + $0x798] sm:$0xff]
    %v578 = vld [vmem:[#allocation7 + $0x7a0] sm:$0xff]
    %v579 = vld [vmem:[#allocation7 + $0x7a8] sm:$0xff]
    %v580 = vld [vmem:[#allocation7 + $0x7b0] sm:$0xff]
    %v581 = vld [vmem:[#allocation7 + $0x7b8] sm:$0xff]
    %v582 = vld [vmem:[#allocation7 + $0x7c0] sm:$0xff]
    %v583 = vld [vmem:[#allocation7 + $0x7c8] sm:$0xff]
    %v584 = vld [vmem:[#allocation7 + $0x7d0] sm:$0xff]
    %v585 = vld [vmem:[#allocation7 + $0x7d8] sm:$0xff]
    %v586 = vld [vmem:[#allocation7 + $0x7e0] sm:$0xff]
    %v587 = vld [vmem:[#allocation7 + $0x7e8] sm:$0xff]
    %v588 = vld [vmem:[#allocation7 + $0x7f0] sm:$0xff]
    %v589 = vld [vmem:[#allocation7 + $0x7f8] sm:$0xff]
    %v590 = vld [vmem:[%s4] sm:$0xff]
    %v592 = vperm.slane %v590, 0
    %v593 = vperm.slane %v590, 1
    %v594 = vperm.slane %v590, 2
    %v595 = vperm.slane %v590, 3
    %v596 = vperm.slane %v590, 4
    %v597 = vperm.slane %v590, 5
    %v598 = vperm.slane %v590, 6
    %v599 = vperm.slane %v590, 7
    %608 = vmatpush.msra.mxu0 %v454
    %609 = vmatpush.msra.mxu0 %v446
    %610 = vmatpush.msra.mxu0 %v438
    %611 = vmatpush.msra.mxu0 %v430
    %612 = vmatpush.msra.mxu0 %v422
    %613 = vmatpush.msra.mxu0 %v414
    %614 = vmatpush.msra.mxu0 %v406
    %615 = vmatpush.msra.mxu0 %v398
    %616 = vmatpush.msra.mxu0 %v390
    %617 = vmatpush.msra.mxu0 %v382
    %618 = vmatpush.msra.mxu0 %v374
    %619 = vmatpush.msra.mxu0 %v366
    %620 = vmatpush.msra.mxu0 %v358
    %621 = vmatpush.msra.mxu0 %v350
    %622 = vmatpush.msra.mxu0 %v342
    %623 = vmatpush.msra.mxu0 %v334
    %624 = vmatmul.f32.gmra.mxu0 0.0
    %v625 = vpop.f32.mrf.mxu0
    %v626 = vadd.f32 %v592, %v625
    %627 = vdwg.mxu0
    %628 = vmatpush.msra.mxu0 %v582
    %629 = vmatpush.msra.mxu0 %v574
    %630 = vmatpush.msra.mxu0 %v566
    %631 = vmatpush.msra.mxu0 %v558
    %632 = vmatpush.msra.mxu0 %v550
    %633 = vmatpush.msra.mxu0 %v542
    %634 = vmatpush.msra.mxu0 %v534
    %635 = vmatpush.msra.mxu0 %v526
    %636 = vmatpush.msra.mxu0 %v518
    %637 = vmatpush.msra.mxu0 %v510
    %638 = vmatpush.msra.mxu0 %v502
    %639 = vmatpush.msra.mxu0 %v494
    %640 = vmatpush.msra.mxu0 %v486
    %641 = vmatpush.msra.mxu0 %v478
    %642 = vmatpush.msra.mxu0 %v470
    %643 = vmatpush.msra.mxu0 %v462
    %644 = vmatmul.f32.gmra.mxu0 0.0
    %v645 = vpop.f32.mrf.mxu0
    %v646 = vadd.f32 %v626, %v645
    %647 = vdwg.mxu0
    %648 = vmatpush.msra.mxu0 %v455
    %649 = vmatpush.msra.mxu0 %v447
    %650 = vmatpush.msra.mxu0 %v439
    %651 = vmatpush.msra.mxu0 %v431
    %652 = vmatpush.msra.mxu0 %v423
    %653 = vmatpush.msra.mxu0 %v415
    %654 = vmatpush.msra.mxu0 %v407
    %655 = vmatpush.msra.mxu0 %v399
    %656 = vmatpush.msra.mxu0 %v391
    %657 = vmatpush.msra.mxu0 %v383
    %658 = vmatpush.msra.mxu0 %v375
    %659 = vmatpush.msra.mxu0 %v367
    %660 = vmatpush.msra.mxu0 %v359
    %661 = vmatpush.msra.mxu0 %v351
    %662 = vmatpush.msra.mxu0 %v343
    %663 = vmatpush.msra.mxu0 %v335
    %664 = vmatmul.f32.gmra.mxu0 0.0
    %v665 = vpop.f32.mrf.mxu0
    %v666 = vadd.f32 %v593, %v665
    %667 = vdwg.mxu0
    %668 = vmatpush.msra.mxu0 %v583
    %669 = vmatpush.msra.mxu0 %v575
    %670 = vmatpush.msra.mxu0 %v567
    %671 = vmatpush.msra.mxu0 %v559
    %672 = vmatpush.msra.mxu0 %v551
    %673 = vmatpush.msra.mxu0 %v543
    %674 = vmatpush.msra.mxu0 %v535
    %675 = vmatpush.msra.mxu0 %v527
    %676 = vmatpush.msra.mxu0 %v519
    %677 = vmatpush.msra.mxu0 %v511
    %678 = vmatpush.msra.mxu0 %v503
    %679 = vmatpush.msra.mxu0 %v495
    %680 = vmatpush.msra.mxu0 %v487
    %681 = vmatpush.msra.mxu0 %v479
    %682 = vmatpush.msra.mxu0 %v471
    %683 = vmatpush.msra.mxu0 %v463
    %684 = vmatmul.f32.gmra.mxu0 0.0
    %v685 = vpop.f32.mrf.mxu0
    %v686 = vadd.f32 %v666, %v685
    %687 = vdwg.mxu0
    %688 = vmatpush.msra.mxu0 %v456
    %689 = vmatpush.msra.mxu0 %v448
    %690 = vmatpush.msra.mxu0 %v440
    %691 = vmatpush.msra.mxu0 %v432
    %692 = vmatpush.msra.mxu0 %v424
    %693 = vmatpush.msra.mxu0 %v416
    %694 = vmatpush.msra.mxu0 %v408
    %695 = vmatpush.msra.mxu0 %v400
    %696 = vmatpush.msra.mxu0 %v392
    %697 = vmatpush.msra.mxu0 %v384
    %698 = vmatpush.msra.mxu0 %v376
    %699 = vmatpush.msra.mxu0 %v368
    %700 = vmatpush.msra.mxu0 %v360
    %701 = vmatpush.msra.mxu0 %v352
    %702 = vmatpush.msra.mxu0 %v344
    %703 = vmatpush.msra.mxu0 %v336
    %704 = vmatmul.f32.gmra.mxu0 0.0
    %v705 = vpop.f32.mrf.mxu0
    %v706 = vadd.f32 %v594, %v705
    %707 = vdwg.mxu0
    %708 = vmatpush.msra.mxu0 %v584
    %709 = vmatpush.msra.mxu0 %v576
    %710 = vmatpush.msra.mxu0 %v568
    %711 = vmatpush.msra.mxu0 %v560
    %712 = vmatpush.msra.mxu0 %v552
    %713 = vmatpush.msra.mxu0 %v544
    %714 = vmatpush.msra.mxu0 %v536
    %715 = vmatpush.msra.mxu0 %v528
    %716 = vmatpush.msra.mxu0 %v520
    %717 = vmatpush.msra.mxu0 %v512
    %718 = vmatpush.msra.mxu0 %v504
    %719 = vmatpush.msra.mxu0 %v496
    %720 = vmatpush.msra.mxu0 %v488
    %721 = vmatpush.msra.mxu0 %v480
    %722 = vmatpush.msra.mxu0 %v472
    %723 = vmatpush.msra.mxu0 %v464
    %724 = vmatmul.f32.gmra.mxu0 0.0
    %v725 = vpop.f32.mrf.mxu0
    %v726 = vadd.f32 %v706, %v725
    %727 = vdwg.mxu0
    %728 = vmatpush.msra.mxu0 %v457
    %729 = vmatpush.msra.mxu0 %v449
    %730 = vmatpush.msra.mxu0 %v441
    %731 = vmatpush.msra.mxu0 %v433
    %732 = vmatpush.msra.mxu0 %v425
    %733 = vmatpush.msra.mxu0 %v417
    %734 = vmatpush.msra.mxu0 %v409
    %735 = vmatpush.msra.mxu0 %v401
    %736 = vmatpush.msra.mxu0 %v393
    %737 = vmatpush.msra.mxu0 %v385
    %738 = vmatpush.msra.mxu0 %v377
    %739 = vmatpush.msra.mxu0 %v369
    %740 = vmatpush.msra.mxu0 %v361
    %741 = vmatpush.msra.mxu0 %v353
    %742 = vmatpush.msra.mxu0 %v345
    %743 = vmatpush.msra.mxu0 %v337
    %744 = vmatmul.f32.gmra.mxu0 0.0
    %v745 = vpop.f32.mrf.mxu0
    %v746 = vadd.f32 %v595, %v745
    %747 = vdwg.mxu0
    %748 = vmatpush.msra.mxu0 %v585
    %749 = vmatpush.msra.mxu0 %v577
    %750 = vmatpush.msra.mxu0 %v569
    %751 = vmatpush.msra.mxu0 %v561
    %752 = vmatpush.msra.mxu0 %v553
    %753 = vmatpush.msra.mxu0 %v545
    %754 = vmatpush.msra.mxu0 %v537
    %755 = vmatpush.msra.mxu0 %v529
    %756 = vmatpush.msra.mxu0 %v521
    %757 = vmatpush.msra.mxu0 %v513
    %758 = vmatpush.msra.mxu0 %v505
    %759 = vmatpush.msra.mxu0 %v497
    %760 = vmatpush.msra.mxu0 %v489
    %761 = vmatpush.msra.mxu0 %v481
    %762 = vmatpush.msra.mxu0 %v473
    %763 = vmatpush.msra.mxu0 %v465
    %764 = vmatmul.f32.gmra.mxu0 0.0
    %v765 = vpop.f32.mrf.mxu0
    %v766 = vadd.f32 %v746, %v765
    %767 = vdwg.mxu0
    %v768 = vld [vmem:[#allocation2] sm:$0xff]
    %v769 = vld [vmem:[#allocation2 + $0x8] sm:$0xff]
    %v770 = vld [vmem:[#allocation2 + $0x10] sm:$0xff]
    %v771 = vld [vmem:[#allocation2 + $0x18] sm:$0xff]
    %v772 = vadd.f32 %v646, %v768
    %v773 = vadd.f32 %v686, %v769
    %v774 = vadd.f32 %v726, %v770
    %v775 = vadd.f32 %v766, %v771
    %v776 = vxor.u32 %v772, 2147483648
    %v777 = vmul.f32 %v776, 1.442695
    %v778 = vpow.pop %v777
    %v779 = vadd.f32 %v778, 1.0
    %v780 = vrcp.pop %v779
    %v781 = vmul.f32 %v779, %v780
    %v782 = vsub.f32 1.0, %v781
    %v783 = vmul.f32 %v780, %v782
    %v784 = vadd.f32 %v780, %v783
    %vm785 = vweird.f32 %v779
    %vm786 = vweird.f32 %v780
    %vm787 = vmor %vm785, %vm786
    %v788 = vsel %vm787, %v780, %v784
    %v789 = vand.u32 2147483647, %v779
    %vm790 = vcmp.eq.f32.partialorder %v789, 8.507059e+37
    %v791 = vand.u32 %v779, 2147483648
    %v792 = vor.u32 1.1754944e-38, %v791
    %v793 = vsel %vm790, %v792, %v788
    %v794 = vmul.f32 1.0, %v793
    %v795 = vxor.u32 %v773, 2147483648
    %v796 = vmul.f32 %v795, 1.442695
    %v797 = vpow.pop %v796
    %v798 = vadd.f32 %v797, 1.0
    %v799 = vrcp.pop %v798
    %v800 = vmul.f32 %v798, %v799
    %v801 = vsub.f32 1.0, %v800
    %v802 = vmul.f32 %v799, %v801
    %v803 = vadd.f32 %v799, %v802
    %vm804 = vweird.f32 %v798
    %vm805 = vweird.f32 %v799
    %vm806 = vmor %vm804, %vm805
    %v807 = vsel %vm806, %v799, %v803
    %v808 = vand.u32 2147483647, %v798
    %vm809 = vcmp.eq.f32.partialorder %v808, 8.507059e+37
    %v810 = vand.u32 %v798, 2147483648
    %v811 = vor.u32 1.1754944e-38, %v810
    %v812 = vsel %vm809, %v811, %v807
    %v813 = vmul.f32 1.0, %v812
    %v814 = vtanh.pop %v774
    %v815 = vxor.u32 %v775, 2147483648
    %v816 = vmul.f32 %v815, 1.442695
    %v817 = vpow.pop %v816
    %v818 = vadd.f32 %v817, 1.0
    %v819 = vrcp.pop %v818
    %v820 = vmul.f32 %v818, %v819
    %v821 = vsub.f32 1.0, %v820
    %v822 = vmul.f32 %v819, %v821
    %v823 = vadd.f32 %v819, %v822
    %vm824 = vweird.f32 %v818
    %vm825 = vweird.f32 %v819
    %vm826 = vmor %vm824, %vm825
    %v827 = vsel %vm826, %v819, %v823
    %v828 = vand.u32 2147483647, %v818
    %vm829 = vcmp.eq.f32.partialorder %v828, 8.507059e+37
    %v830 = vand.u32 %v818, 2147483648
    %v831 = vor.u32 1.1754944e-38, %v830
    %v832 = vsel %vm829, %v831, %v827
    %v833 = vmul.f32 1.0, %v832
    %v834 = vmul.f32 %v813, 0.0
    %v835 = vmul.f32 %v794, %v814
    %v836 = vadd.f32 %v834, %v835
    %v837 = vtanh.pop %v836
    %v838 = vmul.f32 %v833, %v837
    %839 = vmatpush.msra.mxu0 %v454
    %840 = vmatpush.msra.mxu0 %v446
    %841 = vmatpush.msra.mxu0 %v438
    %842 = vmatpush.msra.mxu0 %v430
    %843 = vmatpush.msra.mxu0 %v422
    %844 = vmatpush.msra.mxu0 %v414
    %845 = vmatpush.msra.mxu0 %v406
    %846 = vmatpush.msra.mxu0 %v398
    %847 = vmatpush.msra.mxu0 %v390
    %848 = vmatpush.msra.mxu0 %v382
    %849 = vmatpush.msra.mxu0 %v374
    %850 = vmatpush.msra.mxu0 %v366
    %851 = vmatpush.msra.mxu0 %v358
    %852 = vmatpush.msra.mxu0 %v350
    %853 = vmatpush.msra.mxu0 %v342
    %854 = vmatpush.msra.mxu0 %v334
    %855 = vmatmul.f32.gmra.mxu0 %v838
    %v856 = vpop.f32.mrf.mxu0
    %v857 = vadd.f32 %v592, %v856
    %858 = vdwg.mxu0
    %859 = vmatpush.msra.mxu0 %v582
    %860 = vmatpush.msra.mxu0 %v574
    %861 = vmatpush.msra.mxu0 %v566
    %862 = vmatpush.msra.mxu0 %v558
    %863 = vmatpush.msra.mxu0 %v550
    %864 = vmatpush.msra.mxu0 %v542
    %865 = vmatpush.msra.mxu0 %v534
    %866 = vmatpush.msra.mxu0 %v526
    %867 = vmatpush.msra.mxu0 %v518
    %868 = vmatpush.msra.mxu0 %v510
    %869 = vmatpush.msra.mxu0 %v502
    %870 = vmatpush.msra.mxu0 %v494
    %871 = vmatpush.msra.mxu0 %v486
    %872 = vmatpush.msra.mxu0 %v478
    %873 = vmatpush.msra.mxu0 %v470
    %874 = vmatpush.msra.mxu0 %v462
    %875 = vmatmul.f32.gmra.mxu0 0.0
    %v876 = vpop.f32.mrf.mxu0
    %v877 = vadd.f32 %v857, %v876
    %878 = vdwg.mxu0
    %879 = vmatpush.msra.mxu0 %v455
    %880 = vmatpush.msra.mxu0 %v447
    %881 = vmatpush.msra.mxu0 %v439
    %882 = vmatpush.msra.mxu0 %v431
    %883 = vmatpush.msra.mxu0 %v423
    %884 = vmatpush.msra.mxu0 %v415
    %885 = vmatpush.msra.mxu0 %v407
    %886 = vmatpush.msra.mxu0 %v399
    %887 = vmatpush.msra.mxu0 %v391
    %888 = vmatpush.msra.mxu0 %v383
    %889 = vmatpush.msra.mxu0 %v375
    %890 = vmatpush.msra.mxu0 %v367
    %891 = vmatpush.msra.mxu0 %v359
    %892 = vmatpush.msra.mxu0 %v351
    %893 = vmatpush.msra.mxu0 %v343
    %894 = vmatpush.msra.mxu0 %v335
    %895 = vmatmul.f32.gmra.mxu0 %v838
    %v896 = vpop.f32.mrf.mxu0
    %v897 = vadd.f32 %v593, %v896
    %898 = vdwg.mxu0
    %899 = vmatpush.msra.mxu0 %v583
    %900 = vmatpush.msra.mxu0 %v575
    %901 = vmatpush.msra.mxu0 %v567
    %902 = vmatpush.msra.mxu0 %v559
    %903 = vmatpush.msra.mxu0 %v551
    %904 = vmatpush.msra.mxu0 %v543
    %905 = vmatpush.msra.mxu0 %v535
    %906 = vmatpush.msra.mxu0 %v527
    %907 = vmatpush.msra.mxu0 %v519
    %908 = vmatpush.msra.mxu0 %v511
    %909 = vmatpush.msra.mxu0 %v503
    %910 = vmatpush.msra.mxu0 %v495
    %911 = vmatpush.msra.mxu0 %v487
    %912 = vmatpush.msra.mxu0 %v479
    %913 = vmatpush.msra.mxu0 %v471
    %914 = vmatpush.msra.mxu0 %v463
    %915 = vmatmul.f32.gmra.mxu0 0.0
    %v916 = vpop.f32.mrf.mxu0
    %v917 = vadd.f32 %v897, %v916
    %918 = vdwg.mxu0
    %919 = vmatpush.msra.mxu0 %v456
    %920 = vmatpush.msra.mxu0 %v448
    %921 = vmatpush.msra.mxu0 %v440
    %922 = vmatpush.msra.mxu0 %v432
    %923 = vmatpush.msra.mxu0 %v424
    %924 = vmatpush.msra.mxu0 %v416
    %925 = vmatpush.msra.mxu0 %v408
    %926 = vmatpush.msra.mxu0 %v400
    %927 = vmatpush.msra.mxu0 %v392
    %928 = vmatpush.msra.mxu0 %v384
    %929 = vmatpush.msra.mxu0 %v376
    %930 = vmatpush.msra.mxu0 %v368
    %931 = vmatpush.msra.mxu0 %v360
    %932 = vmatpush.msra.mxu0 %v352
    %933 = vmatpush.msra.mxu0 %v344
    %934 = vmatpush.msra.mxu0 %v336
    %935 = vmatmul.f32.gmra.mxu0 %v838
    %v936 = vpop.f32.mrf.mxu0
    %v937 = vadd.f32 %v594, %v936
    %938 = vdwg.mxu0
    %939 = vmatpush.msra.mxu0 %v584
    %940 = vmatpush.msra.mxu0 %v576
    %941 = vmatpush.msra.mxu0 %v568
    %942 = vmatpush.msra.mxu0 %v560
    %943 = vmatpush.msra.mxu0 %v552
    %944 = vmatpush.msra.mxu0 %v544
    %945 = vmatpush.msra.mxu0 %v536
    %946 = vmatpush.msra.mxu0 %v528
    %947 = vmatpush.msra.mxu0 %v520
    %948 = vmatpush.msra.mxu0 %v512
    %949 = vmatpush.msra.mxu0 %v504
    %950 = vmatpush.msra.mxu0 %v496
    %951 = vmatpush.msra.mxu0 %v488
    %952 = vmatpush.msra.mxu0 %v480
    %953 = vmatpush.msra.mxu0 %v472
    %954 = vmatpush.msra.mxu0 %v464
    %955 = vmatmul.f32.gmra.mxu0 0.0
    %v956 = vpop.f32.mrf.mxu0
    %v957 = vadd.f32 %v937, %v956
    %958 = vdwg.mxu0
    %959 = vmatpush.msra.mxu0 %v457
    %960 = vmatpush.msra.mxu0 %v449
    %961 = vmatpush.msra.mxu0 %v441
    %962 = vmatpush.msra.mxu0 %v433
    %963 = vmatpush.msra.mxu0 %v425
    %964 = vmatpush.msra.mxu0 %v417
    %965 = vmatpush.msra.mxu0 %v409
    %966 = vmatpush.msra.mxu0 %v401
    %967 = vmatpush.msra.mxu0 %v393
    %968 = vmatpush.msra.mxu0 %v385
    %969 = vmatpush.msra.mxu0 %v377
    %970 = vmatpush.msra.mxu0 %v369
    %971 = vmatpush.msra.mxu0 %v361
    %972 = vmatpush.msra.mxu0 %v353
    %973 = vmatpush.msra.mxu0 %v345
    %974 = vmatpush.msra.mxu0 %v337
    %975 = vmatmul.f32.gmra.mxu0 %v838
    %v976 = vpop.f32.mrf.mxu0
    %v977 = vadd.f32 %v595, %v976
    %978 = vdwg.mxu0
    %979 = vmatpush.msra.mxu0 %v585
    %980 = vmatpush.msra.mxu0 %v577
    %981 = vmatpush.msra.mxu0 %v569
    %982 = vmatpush.msra.mxu0 %v561
    %983 = vmatpush.msra.mxu0 %v553
    %984 = vmatpush.msra.mxu0 %v545
    %985 = vmatpush.msra.mxu0 %v537
    %986 = vmatpush.msra.mxu0 %v529
    %987 = vmatpush.msra.mxu0 %v521
    %988 = vmatpush.msra.mxu0 %v513
    %989 = vmatpush.msra.mxu0 %v505
    %990 = vmatpush.msra.mxu0 %v497
    %991 = vmatpush.msra.mxu0 %v489
    %992 = vmatpush.msra.mxu0 %v481
    %993 = vmatpush.msra.mxu0 %v473
    %994 = vmatpush.msra.mxu0 %v465
    %995 = vmatmul.f32.gmra.mxu0 0.0
    %v996 = vpop.f32.mrf.mxu0
    %v997 = vadd.f32 %v977, %v996
    %998 = vdwg.mxu0
    %999 = vmatpush.msra.mxu0 %v458
    %1000 = vmatpush.msra.mxu0 %v450
    %1001 = vmatpush.msra.mxu0 %v442
    %1002 = vmatpush.msra.mxu0 %v434
    %1003 = vmatpush.msra.mxu0 %v426
    %1004 = vmatpush.msra.mxu0 %v418
    %1005 = vmatpush.msra.mxu0 %v410
    %1006 = vmatpush.msra.mxu0 %v402
    %1007 = vmatpush.msra.mxu0 %v394
    %1008 = vmatpush.msra.mxu0 %v386
    %1009 = vmatpush.msra.mxu0 %v378
    %1010 = vmatpush.msra.mxu0 %v370
    %1011 = vmatpush.msra.mxu0 %v362
    %1012 = vmatpush.msra.mxu0 %v354
    %1013 = vmatpush.msra.mxu0 %v346
    %1014 = vmatpush.msra.mxu0 %v338
    %1015 = vmatmul.f32.gmra.mxu0 %v838
    %v1016 = vpop.f32.mrf.mxu0
    %v1017 = vadd.f32 %v596, %v1016
    %1018 = vdwg.mxu0
    %1019 = vmatpush.msra.mxu0 %v586
    %1020 = vmatpush.msra.mxu0 %v578
    %1021 = vmatpush.msra.mxu0 %v570
    %1022 = vmatpush.msra.mxu0 %v562
    %1023 = vmatpush.msra.mxu0 %v554
    %1024 = vmatpush.msra.mxu0 %v546
    %1025 = vmatpush.msra.mxu0 %v538
    %1026 = vmatpush.msra.mxu0 %v530
    %1027 = vmatpush.msra.mxu0 %v522
    %1028 = vmatpush.msra.mxu0 %v514
    %1029 = vmatpush.msra.mxu0 %v506
    %1030 = vmatpush.msra.mxu0 %v498
    %1031 = vmatpush.msra.mxu0 %v490
    %1032 = vmatpush.msra.mxu0 %v482
    %1033 = vmatpush.msra.mxu0 %v474
    %1034 = vmatpush.msra.mxu0 %v466
    %1035 = vmatmul.f32.gmra.mxu0 0.0
    %v1036 = vpop.f32.mrf.mxu0
    %v1037 = vadd.f32 %v1017, %v1036
    %1038 = vdwg.mxu0
    %1039 = vmatpush.msra.mxu0 %v459
    %1040 = vmatpush.msra.mxu0 %v451
    %1041 = vmatpush.msra.mxu0 %v443
    %1042 = vmatpush.msra.mxu0 %v435
    %1043 = vmatpush.msra.mxu0 %v427
    %1044 = vmatpush.msra.mxu0 %v419
    %1045 = vmatpush.msra.mxu0 %v411
    %1046 = vmatpush.msra.mxu0 %v403
    %1047 = vmatpush.msra.mxu0 %v395
    %1048 = vmatpush.msra.mxu0 %v387
    %1049 = vmatpush.msra.mxu0 %v379
    %1050 = vmatpush.msra.mxu0 %v371
    %1051 = vmatpush.msra.mxu0 %v363
    %1052 = vmatpush.msra.mxu0 %v355
    %1053 = vmatpush.msra.mxu0 %v347
    %1054 = vmatpush.msra.mxu0 %v339
    %1055 = vmatmul.f32.gmra.mxu0 %v838
    %v1056 = vpop.f32.mrf.mxu0
    %v1057 = vadd.f32 %v597, %v1056
    %1058 = vdwg.mxu0
    %1059 = vmatpush.msra.mxu0 %v587
    %1060 = vmatpush.msra.mxu0 %v579
    %1061 = vmatpush.msra.mxu0 %v571
    %1062 = vmatpush.msra.mxu0 %v563
    %1063 = vmatpush.msra.mxu0 %v555
    %1064 = vmatpush.msra.mxu0 %v547
    %1065 = vmatpush.msra.mxu0 %v539
    %1066 = vmatpush.msra.mxu0 %v531
    %1067 = vmatpush.msra.mxu0 %v523
    %1068 = vmatpush.msra.mxu0 %v515
    %1069 = vmatpush.msra.mxu0 %v507
    %1070 = vmatpush.msra.mxu0 %v499
    %1071 = vmatpush.msra.mxu0 %v491
    %1072 = vmatpush.msra.mxu0 %v483
    %1073 = vmatpush.msra.mxu0 %v475
    %1074 = vmatpush.msra.mxu0 %v467
    %1075 = vmatmul.f32.gmra.mxu0 0.0
    %v1076 = vpop.f32.mrf.mxu0
    %v1077 = vadd.f32 %v1057, %v1076
    %1078 = vdwg.mxu0
    %1079 = vmatpush.msra.mxu0 %v460
    %1080 = vmatpush.msra.mxu0 %v452
    %1081 = vmatpush.msra.mxu0 %v444
    %1082 = vmatpush.msra.mxu0 %v436
    %1083 = vmatpush.msra.mxu0 %v428
    %1084 = vmatpush.msra.mxu0 %v420
    %1085 = vmatpush.msra.mxu0 %v412
    %1086 = vmatpush.msra.mxu0 %v404
    %1087 = vmatpush.msra.mxu0 %v396
    %1088 = vmatpush.msra.mxu0 %v388
    %1089 = vmatpush.msra.mxu0 %v380
    %1090 = vmatpush.msra.mxu0 %v372
    %1091 = vmatpush.msra.mxu0 %v364
    %1092 = vmatpush.msra.mxu0 %v356
    %1093 = vmatpush.msra.mxu0 %v348
    %1094 = vmatpush.msra.mxu0 %v340
    %1095 = vmatmul.f32.gmra.mxu0 %v838
    %v1096 = vpop.f32.mrf.mxu0
    %v1097 = vadd.f32 %v598, %v1096
    %1098 = vdwg.mxu0
    %1099 = vmatpush.msra.mxu0 %v588
    %1100 = vmatpush.msra.mxu0 %v580
    %1101 = vmatpush.msra.mxu0 %v572
    %1102 = vmatpush.msra.mxu0 %v564
    %1103 = vmatpush.msra.mxu0 %v556
    %1104 = vmatpush.msra.mxu0 %v548
    %1105 = vmatpush.msra.mxu0 %v540
    %1106 = vmatpush.msra.mxu0 %v532
    %1107 = vmatpush.msra.mxu0 %v524
    %1108 = vmatpush.msra.mxu0 %v516
    %1109 = vmatpush.msra.mxu0 %v508
    %1110 = vmatpush.msra.mxu0 %v500
    %1111 = vmatpush.msra.mxu0 %v492
    %1112 = vmatpush.msra.mxu0 %v484
    %1113 = vmatpush.msra.mxu0 %v476
    %1114 = vmatpush.msra.mxu0 %v468
    %1115 = vmatmul.f32.gmra.mxu0 0.0
    %v1116 = vpop.f32.mrf.mxu0
    %v1117 = vadd.f32 %v1097, %v1116
    %1118 = vdwg.mxu0
    %1119 = vmatpush.msra.mxu0 %v461
    %1120 = vmatpush.msra.mxu0 %v453
    %1121 = vmatpush.msra.mxu0 %v445
    %1122 = vmatpush.msra.mxu0 %v437
    %1123 = vmatpush.msra.mxu0 %v429
    %1124 = vmatpush.msra.mxu0 %v421
    %1125 = vmatpush.msra.mxu0 %v413
    %1126 = vmatpush.msra.mxu0 %v405
    %1127 = vmatpush.msra.mxu0 %v397
    %1128 = vmatpush.msra.mxu0 %v389
    %1129 = vmatpush.msra.mxu0 %v381
    %1130 = vmatpush.msra.mxu0 %v373
    %1131 = vmatpush.msra.mxu0 %v365
    %1132 = vmatpush.msra.mxu0 %v357
    %1133 = vmatpush.msra.mxu0 %v349
    %1134 = vmatpush.msra.mxu0 %v341
    %1135 = vmatmul.f32.gmra.mxu0 %v838
    %v1136 = vpop.f32.mrf.mxu0
    %v1137 = vadd.f32 %v599, %v1136
    %1138 = vdwg.mxu0
    %1139 = vmatpush.msra.mxu0 %v589
    %1140 = vmatpush.msra.mxu0 %v581
    %1141 = vmatpush.msra.mxu0 %v573
    %1142 = vmatpush.msra.mxu0 %v565
    %1143 = vmatpush.msra.mxu0 %v557
    %1144 = vmatpush.msra.mxu0 %v549
    %1145 = vmatpush.msra.mxu0 %v541
    %1146 = vmatpush.msra.mxu0 %v533
    %1147 = vmatpush.msra.mxu0 %v525
    %1148 = vmatpush.msra.mxu0 %v517
    %1149 = vmatpush.msra.mxu0 %v509
    %1150 = vmatpush.msra.mxu0 %v501
    %1151 = vmatpush.msra.mxu0 %v493
    %1152 = vmatpush.msra.mxu0 %v485
    %1153 = vmatpush.msra.mxu0 %v477
    %1154 = vmatpush.msra.mxu0 %v469
    %1155 = vmatmul.f32.gmra.mxu0 0.0
    %v1156 = vpop.f32.mrf.mxu0
    %v1157 = vadd.f32 %v1137, %v1156
    %1158 = vdwg.mxu0
    %v1159 = vld [vmem:[#allocation2 + $0x20] sm:$0xff]
    %v1160 = vld [vmem:[#allocation2 + $0x28] sm:$0xff]
    %v1161 = vld [vmem:[#allocation2 + $0x30] sm:$0xff]
    %v1162 = vld [vmem:[#allocation2 + $0x38] sm:$0xff]
    %v1163 = vadd.f32 %v877, %v1159
    %v1164 = vadd.f32 %v917, %v1160
    %v1165 = vadd.f32 %v957, %v1161
    %v1166 = vadd.f32 %v997, %v1162
    %v1167 = vxor.u32 %v1163, 2147483648
    %v1168 = vmul.f32 %v1167, 1.442695
    %v1169 = vpow.pop %v1168
    %v1170 = vadd.f32 %v1169, 1.0
    %v1171 = vrcp.pop %v1170
    %v1172 = vmul.f32 %v1170, %v1171
    %v1173 = vsub.f32 1.0, %v1172
    %v1174 = vmul.f32 %v1171, %v1173
    %v1175 = vadd.f32 %v1171, %v1174
    %vm1176 = vweird.f32 %v1170
    %vm1177 = vweird.f32 %v1171
    %vm1178 = vmor %vm1176, %vm1177
    %v1179 = vsel %vm1178, %v1171, %v1175
    %v1180 = vand.u32 2147483647, %v1170
    %vm1181 = vcmp.eq.f32.partialorder %v1180, 8.507059e+37
    %v1182 = vand.u32 %v1170, 2147483648
    %v1183 = vor.u32 1.1754944e-38, %v1182
    %v1184 = vsel %vm1181, %v1183, %v1179
    %v1185 = vmul.f32 1.0, %v1184
    %v1186 = vxor.u32 %v1164, 2147483648
    %v1187 = vmul.f32 %v1186, 1.442695
    %v1188 = vpow.pop %v1187
    %v1189 = vadd.f32 %v1188, 1.0
    %v1190 = vrcp.pop %v1189
    %v1191 = vmul.f32 %v1189, %v1190
    %v1192 = vsub.f32 1.0, %v1191
    %v1193 = vmul.f32 %v1190, %v1192
    %v1194 = vadd.f32 %v1190, %v1193
    %vm1195 = vweird.f32 %v1189
    %vm1196 = vweird.f32 %v1190
    %vm1197 = vmor %vm1195, %vm1196
    %v1198 = vsel %vm1197, %v1190, %v1194
    %v1199 = vand.u32 2147483647, %v1189
    %vm1200 = vcmp.eq.f32.partialorder %v1199, 8.507059e+37
    %v1201 = vand.u32 %v1189, 2147483648
    %v1202 = vor.u32 1.1754944e-38, %v1201
    %v1203 = vsel %vm1200, %v1202, %v1198
    %v1204 = vmul.f32 1.0, %v1203
    %v1205 = vtanh.pop %v1165
    %v1206 = vxor.u32 %v1166, 2147483648
    %v1207 = vmul.f32 %v1206, 1.442695
    %v1208 = vpow.pop %v1207
    %v1209 = vadd.f32 %v1208, 1.0
    %v1210 = vrcp.pop %v1209
    %v1211 = vmul.f32 %v1209, %v1210
    %v1212 = vsub.f32 1.0, %v1211
    %v1213 = vmul.f32 %v1210, %v1212
    %v1214 = vadd.f32 %v1210, %v1213
    %vm1215 = vweird.f32 %v1209
    %vm1216 = vweird.f32 %v1210
    %vm1217 = vmor %vm1215, %vm1216
    %v1218 = vsel %vm1217, %v1210, %v1214
    %v1219 = vand.u32 2147483647, %v1209
    %vm1220 = vcmp.eq.f32.partialorder %v1219, 8.507059e+37
    %v1221 = vand.u32 %v1209, 2147483648
    %v1222 = vor.u32 1.1754944e-38, %v1221
    %v1223 = vsel %vm1220, %v1222, %v1218
    %v1224 = vmul.f32 1.0, %v1223
    %v1225 = vmul.f32 %v1204, %v836
    %v1226 = vmul.f32 %v1185, %v1205
    %v1227 = vadd.f32 %v1225, %v1226
    %v1228 = vtanh.pop %v1227
    %v1229 = vmul.f32 %v1224, %v1228
    %v1230 = vxor.u32 %v1037, 2147483648
    %v1231 = vmul.f32 %v1230, 1.442695
    %v1232 = vpow.pop %v1231
    %v1233 = vadd.f32 %v1232, 1.0
    %v1234 = vrcp.pop %v1233
    %v1235 = vmul.f32 %v1233, %v1234
    %v1236 = vsub.f32 1.0, %v1235
    %v1237 = vmul.f32 %v1234, %v1236
    %v1238 = vadd.f32 %v1234, %v1237
    %vm1239 = vweird.f32 %v1233
    %vm1240 = vweird.f32 %v1234
    %vm1241 = vmor %vm1239, %vm1240
    %v1242 = vsel %vm1241, %v1234, %v1238
    %v1243 = vand.u32 2147483647, %v1233
    %vm1244 = vcmp.eq.f32.partialorder %v1243, 8.507059e+37
    %v1245 = vand.u32 %v1233, 2147483648
    %v1246 = vor.u32 1.1754944e-38, %v1245
    %v1247 = vsel %vm1244, %v1246, %v1242
    %v1248 = vmul.f32 1.0, %v1247
    %v1249 = vxor.u32 %v1077, 2147483648
    %v1250 = vmul.f32 %v1249, 1.442695
    %v1251 = vpow.pop %v1250
    %v1252 = vadd.f32 %v1251, 1.0
    %v1253 = vrcp.pop %v1252
    %v1254 = vmul.f32 %v1252, %v1253
    %v1255 = vsub.f32 1.0, %v1254
    %v1256 = vmul.f32 %v1253, %v1255
    %v1257 = vadd.f32 %v1253, %v1256
    %vm1258 = vweird.f32 %v1252
    %vm1259 = vweird.f32 %v1253
    %vm1260 = vmor %vm1258, %vm1259
    %v1261 = vsel %vm1260, %v1253, %v1257
    %v1262 = vand.u32 2147483647, %v1252
    %vm1263 = vcmp.eq.f32.partialorder %v1262, 8.507059e+37
    %v1264 = vand.u32 %v1252, 2147483648
    %v1265 = vor.u32 1.1754944e-38, %v1264
    %v1266 = vsel %vm1263, %v1265, %v1261
    %v1267 = vmul.f32 1.0, %v1266
    %v1268 = vtanh.pop %v1117
    %v1269 = vxor.u32 %v1157, 2147483648
    %v1270 = vmul.f32 %v1269, 1.442695
    %v1271 = vpow.pop %v1270
    %v1272 = vadd.f32 %v1271, 1.0
    %v1273 = vrcp.pop %v1272
    %v1274 = vmul.f32 %v1272, %v1273
    %v1275 = vsub.f32 1.0, %v1274
    %v1276 = vmul.f32 %v1273, %v1275
    %v1277 = vadd.f32 %v1273, %v1276
    %vm1278 = vweird.f32 %v1272
    %vm1279 = vweird.f32 %v1273
    %vm1280 = vmor %vm1278, %vm1279
    %v1281 = vsel %vm1280, %v1273, %v1277
    %v1282 = vand.u32 2147483647, %v1272
    %vm1283 = vcmp.eq.f32.partialorder %v1282, 8.507059e+37
    %v1284 = vand.u32 %v1272, 2147483648
    %v1285 = vor.u32 1.1754944e-38, %v1284
    %v1286 = vsel %vm1283, %v1285, %v1281
    %v1287 = vmul.f32 1.0, %v1286
    %v1288 = vmul.f32 %v1267, 0.0
    %v1289 = vmul.f32 %v1248, %v1268
    %v1290 = vadd.f32 %v1288, %v1289
    %v1291 = vtanh.pop %v1290
    %v1292 = vmul.f32 %v1287, %v1291
    %1293 = vst [vmem:[#allocation3] sm:$0xff] %v1292
    %1294 = vmatpush.msra.mxu0 %v454
    %1295 = vmatpush.msra.mxu0 %v446
    %1296 = vmatpush.msra.mxu0 %v438
    %1297 = vmatpush.msra.mxu0 %v430
    %1298 = vmatpush.msra.mxu0 %v422
    %1299 = vmatpush.msra.mxu0 %v414
    %1300 = vmatpush.msra.mxu0 %v406
    %1301 = vmatpush.msra.mxu0 %v398
    %1302 = vmatpush.msra.mxu0 %v390
    %1303 = vmatpush.msra.mxu0 %v382
    %1304 = vmatpush.msra.mxu0 %v374
    %1305 = vmatpush.msra.mxu0 %v366
    %1306 = vmatpush.msra.mxu0 %v358
    %1307 = vmatpush.msra.mxu0 %v350
    %1308 = vmatpush.msra.mxu0 %v342
    %1309 = vmatpush.msra.mxu0 %v334
    %1310 = vmatmul.f32.gmra.mxu0 %v1229
    %v1311 = vpop.f32.mrf.mxu0
    %v1312 = vadd.f32 %v592, %v1311
    %1313 = vdwg.mxu0
    %1314 = vmatpush.msra.mxu0 %v582
    %1315 = vmatpush.msra.mxu0 %v574
    %1316 = vmatpush.msra.mxu0 %v566
    %1317 = vmatpush.msra.mxu0 %v558
    %1318 = vmatpush.msra.mxu0 %v550
    %1319 = vmatpush.msra.mxu0 %v542
    %1320 = vmatpush.msra.mxu0 %v534
    %1321 = vmatpush.msra.mxu0 %v526
    %1322 = vmatpush.msra.mxu0 %v518
    %1323 = vmatpush.msra.mxu0 %v510
    %1324 = vmatpush.msra.mxu0 %v502
    %1325 = vmatpush.msra.mxu0 %v494
    %1326 = vmatpush.msra.mxu0 %v486
    %1327 = vmatpush.msra.mxu0 %v478
    %1328 = vmatpush.msra.mxu0 %v470
    %1329 = vmatpush.msra.mxu0 %v462
    %1330 = vmatmul.f32.gmra.mxu0 %v1292
    %v1331 = vpop.f32.mrf.mxu0
    %v1332 = vadd.f32 %v1312, %v1331
    %1333 = vdwg.mxu0
    %1334 = vmatpush.msra.mxu0 %v455
    %1335 = vmatpush.msra.mxu0 %v447
    %1336 = vmatpush.msra.mxu0 %v439
    %1337 = vmatpush.msra.mxu0 %v431
    %1338 = vmatpush.msra.mxu0 %v423
    %1339 = vmatpush.msra.mxu0 %v415
    %1340 = vmatpush.msra.mxu0 %v407
    %1341 = vmatpush.msra.mxu0 %v399
    %1342 = vmatpush.msra.mxu0 %v391
    %1343 = vmatpush.msra.mxu0 %v383
    %1344 = vmatpush.msra.mxu0 %v375
    %1345 = vmatpush.msra.mxu0 %v367
    %1346 = vmatpush.msra.mxu0 %v359
    %1347 = vmatpush.msra.mxu0 %v351
    %1348 = vmatpush.msra.mxu0 %v343
    %1349 = vmatpush.msra.mxu0 %v335
    %1350 = vmatmul.f32.gmra.mxu0 %v1229
    %v1351 = vpop.f32.mrf.mxu0
    %v1352 = vadd.f32 %v593, %v1351
    %1353 = vdwg.mxu0
    %1354 = vmatpush.msra.mxu0 %v583
    %1355 = vmatpush.msra.mxu0 %v575
    %1356 = vmatpush.msra.mxu0 %v567
    %1357 = vmatpush.msra.mxu0 %v559
    %1358 = vmatpush.msra.mxu0 %v551
    %1359 = vmatpush.msra.mxu0 %v543
    %1360 = vmatpush.msra.mxu0 %v535
    %1361 = vmatpush.msra.mxu0 %v527
    %1362 = vmatpush.msra.mxu0 %v519
    %1363 = vmatpush.msra.mxu0 %v511
    %1364 = vmatpush.msra.mxu0 %v503
    %1365 = vmatpush.msra.mxu0 %v495
    %1366 = vmatpush.msra.mxu0 %v487
    %1367 = vmatpush.msra.mxu0 %v479
    %1368 = vmatpush.msra.mxu0 %v471
    %1369 = vmatpush.msra.mxu0 %v463
    %1370 = vmatmul.f32.gmra.mxu0 %v1292
    %v1371 = vpop.f32.mrf.mxu0
    %v1372 = vadd.f32 %v1352, %v1371
    %1373 = vdwg.mxu0
    %1374 = vmatpush.msra.mxu0 %v456
    %1375 = vmatpush.msra.mxu0 %v448
    %1376 = vmatpush.msra.mxu0 %v440
    %1377 = vmatpush.msra.mxu0 %v432
    %1378 = vmatpush.msra.mxu0 %v424
    %1379 = vmatpush.msra.mxu0 %v416
    %1380 = vmatpush.msra.mxu0 %v408
    %1381 = vmatpush.msra.mxu0 %v400
    %1382 = vmatpush.msra.mxu0 %v392
    %1383 = vmatpush.msra.mxu0 %v384
    %1384 = vmatpush.msra.mxu0 %v376
    %1385 = vmatpush.msra.mxu0 %v368
    %1386 = vmatpush.msra.mxu0 %v360
    %1387 = vmatpush.msra.mxu0 %v352
    %1388 = vmatpush.msra.mxu0 %v344
    %1389 = vmatpush.msra.mxu0 %v336
    %1390 = vmatmul.f32.gmra.mxu0 %v1229
    %v1391 = vpop.f32.mrf.mxu0
    %v1392 = vadd.f32 %v594, %v1391
    %1393 = vdwg.mxu0
    %1394 = vmatpush.msra.mxu0 %v584
    %1395 = vmatpush.msra.mxu0 %v576
    %1396 = vmatpush.msra.mxu0 %v568
    %1397 = vmatpush.msra.mxu0 %v560
    %1398 = vmatpush.msra.mxu0 %v552
    %1399 = vmatpush.msra.mxu0 %v544
    %1400 = vmatpush.msra.mxu0 %v536
    %1401 = vmatpush.msra.mxu0 %v528
    %1402 = vmatpush.msra.mxu0 %v520
    %1403 = vmatpush.msra.mxu0 %v512
    %1404 = vmatpush.msra.mxu0 %v504
    %1405 = vmatpush.msra.mxu0 %v496
    %1406 = vmatpush.msra.mxu0 %v488
    %1407 = vmatpush.msra.mxu0 %v480
    %1408 = vmatpush.msra.mxu0 %v472
    %1409 = vmatpush.msra.mxu0 %v464
    %1410 = vmatmul.f32.gmra.mxu0 %v1292
    %v1411 = vpop.f32.mrf.mxu0
    %v1412 = vadd.f32 %v1392, %v1411
    %1413 = vdwg.mxu0
    %1414 = vmatpush.msra.mxu0 %v457
    %1415 = vmatpush.msra.mxu0 %v449
    %1416 = vmatpush.msra.mxu0 %v441
    %1417 = vmatpush.msra.mxu0 %v433
    %1418 = vmatpush.msra.mxu0 %v425
    %1419 = vmatpush.msra.mxu0 %v417
    %1420 = vmatpush.msra.mxu0 %v409
    %1421 = vmatpush.msra.mxu0 %v401
    %1422 = vmatpush.msra.mxu0 %v393
    %1423 = vmatpush.msra.mxu0 %v385
    %1424 = vmatpush.msra.mxu0 %v377
    %1425 = vmatpush.msra.mxu0 %v369
    %1426 = vmatpush.msra.mxu0 %v361
    %1427 = vmatpush.msra.mxu0 %v353
    %1428 = vmatpush.msra.mxu0 %v345
    %1429 = vmatpush.msra.mxu0 %v337
    %1430 = vmatmul.f32.gmra.mxu0 %v1229
    %v1431 = vpop.f32.mrf.mxu0
    %v1432 = vadd.f32 %v595, %v1431
    %1433 = vdwg.mxu0
    %1434 = vmatpush.msra.mxu0 %v585
    %1435 = vmatpush.msra.mxu0 %v577
    %1436 = vmatpush.msra.mxu0 %v569
    %1437 = vmatpush.msra.mxu0 %v561
    %1438 = vmatpush.msra.mxu0 %v553
    %1439 = vmatpush.msra.mxu0 %v545
    %1440 = vmatpush.msra.mxu0 %v537
    %1441 = vmatpush.msra.mxu0 %v529
    %1442 = vmatpush.msra.mxu0 %v521
    %1443 = vmatpush.msra.mxu0 %v513
    %1444 = vmatpush.msra.mxu0 %v505
    %1445 = vmatpush.msra.mxu0 %v497
    %1446 = vmatpush.msra.mxu0 %v489
    %1447 = vmatpush.msra.mxu0 %v481
    %1448 = vmatpush.msra.mxu0 %v473
    %1449 = vmatpush.msra.mxu0 %v465
    %1450 = vmatmul.f32.gmra.mxu0 %v1292
    %v1451 = vpop.f32.mrf.mxu0
    %v1452 = vadd.f32 %v1432, %v1451
    %1453 = vdwg.mxu0
    %1454 = vmatpush.msra.mxu0 %v458
    %1455 = vmatpush.msra.mxu0 %v450
    %1456 = vmatpush.msra.mxu0 %v442
    %1457 = vmatpush.msra.mxu0 %v434
    %1458 = vmatpush.msra.mxu0 %v426
    %1459 = vmatpush.msra.mxu0 %v418
    %1460 = vmatpush.msra.mxu0 %v410
    %1461 = vmatpush.msra.mxu0 %v402
    %1462 = vmatpush.msra.mxu0 %v394
    %1463 = vmatpush.msra.mxu0 %v386
    %1464 = vmatpush.msra.mxu0 %v378
    %1465 = vmatpush.msra.mxu0 %v370
    %1466 = vmatpush.msra.mxu0 %v362
    %1467 = vmatpush.msra.mxu0 %v354
    %1468 = vmatpush.msra.mxu0 %v346
    %1469 = vmatpush.msra.mxu0 %v338
    %1470 = vmatmul.f32.gmra.mxu0 %v1229
    %v1471 = vpop.f32.mrf.mxu0
    %v1472 = vadd.f32 %v596, %v1471
    %1473 = vdwg.mxu0
    %1474 = vmatpush.msra.mxu0 %v586
    %1475 = vmatpush.msra.mxu0 %v578
    %1476 = vmatpush.msra.mxu0 %v570
    %1477 = vmatpush.msra.mxu0 %v562
    %1478 = vmatpush.msra.mxu0 %v554
    %1479 = vmatpush.msra.mxu0 %v546
    %1480 = vmatpush.msra.mxu0 %v538
    %1481 = vmatpush.msra.mxu0 %v530
    %1482 = vmatpush.msra.mxu0 %v522
    %1483 = vmatpush.msra.mxu0 %v514
    %1484 = vmatpush.msra.mxu0 %v506
    %1485 = vmatpush.msra.mxu0 %v498
    %1486 = vmatpush.msra.mxu0 %v490
    %1487 = vmatpush.msra.mxu0 %v482
    %1488 = vmatpush.msra.mxu0 %v474
    %1489 = vmatpush.msra.mxu0 %v466
    %1490 = vmatmul.f32.gmra.mxu0 %v1292
    %v1491 = vpop.f32.mrf.mxu0
    %v1492 = vadd.f32 %v1472, %v1491
    %1493 = vdwg.mxu0
    %1494 = vmatpush.msra.mxu0 %v459
    %1495 = vmatpush.msra.mxu0 %v451
    %1496 = vmatpush.msra.mxu0 %v443
    %1497 = vmatpush.msra.mxu0 %v435
    %1498 = vmatpush.msra.mxu0 %v427
    %1499 = vmatpush.msra.mxu0 %v419
    %1500 = vmatpush.msra.mxu0 %v411
    %1501 = vmatpush.msra.mxu0 %v403
    %1502 = vmatpush.msra.mxu0 %v395
    %1503 = vmatpush.msra.mxu0 %v387
    %1504 = vmatpush.msra.mxu0 %v379
    %1505 = vmatpush.msra.mxu0 %v371
    %1506 = vmatpush.msra.mxu0 %v363
    %1507 = vmatpush.msra.mxu0 %v355
    %1508 = vmatpush.msra.mxu0 %v347
    %1509 = vmatpush.msra.mxu0 %v339
    %1510 = vmatmul.f32.gmra.mxu0 %v1229
    %v1511 = vpop.f32.mrf.mxu0
    %v1512 = vadd.f32 %v597, %v1511
    %1513 = vdwg.mxu0
    %1514 = vmatpush.msra.mxu0 %v587
    %1515 = vmatpush.msra.mxu0 %v579
    %1516 = vmatpush.msra.mxu0 %v571
    %1517 = vmatpush.msra.mxu0 %v563
    %1518 = vmatpush.msra.mxu0 %v555
    %1519 = vmatpush.msra.mxu0 %v547
    %1520 = vmatpush.msra.mxu0 %v539
    %1521 = vmatpush.msra.mxu0 %v531
    %1522 = vmatpush.msra.mxu0 %v523
    %1523 = vmatpush.msra.mxu0 %v515
    %1524 = vmatpush.msra.mxu0 %v507
    %1525 = vmatpush.msra.mxu0 %v499
    %1526 = vmatpush.msra.mxu0 %v491
    %1527 = vmatpush.msra.mxu0 %v483
    %1528 = vmatpush.msra.mxu0 %v475
    %1529 = vmatpush.msra.mxu0 %v467
    %1530 = vmatmul.f32.gmra.mxu0 %v1292
    %v1531 = vpop.f32.mrf.mxu0
    %v1532 = vadd.f32 %v1512, %v1531
    %1533 = vdwg.mxu0
    %1534 = vmatpush.msra.mxu0 %v460
    %1535 = vmatpush.msra.mxu0 %v452
    %1536 = vmatpush.msra.mxu0 %v444
    %1537 = vmatpush.msra.mxu0 %v436
    %1538 = vmatpush.msra.mxu0 %v428
    %1539 = vmatpush.msra.mxu0 %v420
    %1540 = vmatpush.msra.mxu0 %v412
    %1541 = vmatpush.msra.mxu0 %v404
    %1542 = vmatpush.msra.mxu0 %v396
    %1543 = vmatpush.msra.mxu0 %v388
    %1544 = vmatpush.msra.mxu0 %v380
    %1545 = vmatpush.msra.mxu0 %v372
    %1546 = vmatpush.msra.mxu0 %v364
    %1547 = vmatpush.msra.mxu0 %v356
    %1548 = vmatpush.msra.mxu0 %v348
    %1549 = vmatpush.msra.mxu0 %v340
    %1550 = vmatmul.f32.gmra.mxu0 %v1229
    %v1551 = vpop.f32.mrf.mxu0
    %v1552 = vadd.f32 %v598, %v1551
    %1553 = vdwg.mxu0
    %1554 = vmatpush.msra.mxu0 %v588
    %1555 = vmatpush.msra.mxu0 %v580
    %1556 = vmatpush.msra.mxu0 %v572
    %1557 = vmatpush.msra.mxu0 %v564
    %1558 = vmatpush.msra.mxu0 %v556
    %1559 = vmatpush.msra.mxu0 %v548
    %1560 = vmatpush.msra.mxu0 %v540
    %1561 = vmatpush.msra.mxu0 %v532
    %1562 = vmatpush.msra.mxu0 %v524
    %1563 = vmatpush.msra.mxu0 %v516
    %1564 = vmatpush.msra.mxu0 %v508
    %1565 = vmatpush.msra.mxu0 %v500
    %1566 = vmatpush.msra.mxu0 %v492
    %1567 = vmatpush.msra.mxu0 %v484
    %1568 = vmatpush.msra.mxu0 %v476
    %1569 = vmatpush.msra.mxu0 %v468
    %1570 = vmatmul.f32.gmra.mxu0 %v1292
    %v1571 = vpop.f32.mrf.mxu0
    %v1572 = vadd.f32 %v1552, %v1571
    %1573 = vdwg.mxu0
    %1574 = vmatpush.msra.mxu0 %v461
    %1575 = vmatpush.msra.mxu0 %v453
    %1576 = vmatpush.msra.mxu0 %v445
    %1577 = vmatpush.msra.mxu0 %v437
    %1578 = vmatpush.msra.mxu0 %v429
    %1579 = vmatpush.msra.mxu0 %v421
    %1580 = vmatpush.msra.mxu0 %v413
    %1581 = vmatpush.msra.mxu0 %v405
    %1582 = vmatpush.msra.mxu0 %v397
    %1583 = vmatpush.msra.mxu0 %v389
    %1584 = vmatpush.msra.mxu0 %v381
    %1585 = vmatpush.msra.mxu0 %v373
    %1586 = vmatpush.msra.mxu0 %v365
    %1587 = vmatpush.msra.mxu0 %v357
    %1588 = vmatpush.msra.mxu0 %v349
    %1589 = vmatpush.msra.mxu0 %v341
    %1590 = vmatmul.f32.gmra.mxu0 %v1229
    %v1591 = vpop.f32.mrf.mxu0
    %v1592 = vadd.f32 %v599, %v1591
    %1593 = vdwg.mxu0
    %1594 = vmatpush.msra.mxu0 %v589
    %1595 = vmatpush.msra.mxu0 %v581
    %1596 = vmatpush.msra.mxu0 %v573
    %1597 = vmatpush.msra.mxu0 %v565
    %1598 = vmatpush.msra.mxu0 %v557
    %1599 = vmatpush.msra.mxu0 %v549
    %1600 = vmatpush.msra.mxu0 %v541
    %1601 = vmatpush.msra.mxu0 %v533
    %1602 = vmatpush.msra.mxu0 %v525
    %1603 = vmatpush.msra.mxu0 %v517
    %1604 = vmatpush.msra.mxu0 %v509
    %1605 = vmatpush.msra.mxu0 %v501
    %1606 = vmatpush.msra.mxu0 %v493
    %1607 = vmatpush.msra.mxu0 %v485
    %1608 = vmatpush.msra.mxu0 %v477
    %1609 = vmatpush.msra.mxu0 %v469
    %1610 = vmatmul.f32.gmra.mxu0 %v1292
    %v1611 = vpop.f32.mrf.mxu0
    %v1612 = vadd.f32 %v1592, %v1611
    %1613 = vdwg.mxu0
    %v1614 = vld [vmem:[#allocation2 + $0x40] sm:$0xff]
    %v1615 = vld [vmem:[#allocation2 + $0x48] sm:$0xff]
    %v1616 = vld [vmem:[#allocation2 + $0x50] sm:$0xff]
    %v1617 = vld [vmem:[#allocation2 + $0x58] sm:$0xff]
    %v1618 = vadd.f32 %v1332, %v1614
    %v1619 = vadd.f32 %v1372, %v1615
    %v1620 = vadd.f32 %v1412, %v1616
    %v1621 = vadd.f32 %v1452, %v1617
    %v1622 = vxor.u32 %v1618, 2147483648
    %v1623 = vmul.f32 %v1622, 1.442695
    %v1624 = vpow.pop %v1623
    %v1625 = vadd.f32 %v1624, 1.0
    %v1626 = vrcp.pop %v1625
    %v1627 = vmul.f32 %v1625, %v1626
    %v1628 = vsub.f32 1.0, %v1627
    %v1629 = vmul.f32 %v1626, %v1628
    %v1630 = vadd.f32 %v1626, %v1629
    %vm1631 = vweird.f32 %v1625
    %vm1632 = vweird.f32 %v1626
    %vm1633 = vmor %vm1631, %vm1632
    %v1634 = vsel %vm1633, %v1626, %v1630
    %v1635 = vand.u32 2147483647, %v1625
    %vm1636 = vcmp.eq.f32.partialorder %v1635, 8.507059e+37
    %v1637 = vand.u32 %v1625, 2147483648
    %v1638 = vor.u32 1.1754944e-38, %v1637
    %v1639 = vsel %vm1636, %v1638, %v1634
    %v1640 = vmul.f32 1.0, %v1639
    %v1641 = vxor.u32 %v1619, 2147483648
    %v1642 = vmul.f32 %v1641, 1.442695
    %v1643 = vpow.pop %v1642
    %v1644 = vadd.f32 %v1643, 1.0
    %v1645 = vrcp.pop %v1644
    %v1646 = vmul.f32 %v1644, %v1645
    %v1647 = vsub.f32 1.0, %v1646
    %v1648 = vmul.f32 %v1645, %v1647
    %v1649 = vadd.f32 %v1645, %v1648
    %vm1650 = vweird.f32 %v1644
    %vm1651 = vweird.f32 %v1645
    %vm1652 = vmor %vm1650, %vm1651
    %v1653 = vsel %vm1652, %v1645, %v1649
    %v1654 = vand.u32 2147483647, %v1644
    %vm1655 = vcmp.eq.f32.partialorder %v1654, 8.507059e+37
    %v1656 = vand.u32 %v1644, 2147483648
    %v1657 = vor.u32 1.1754944e-38, %v1656
    %v1658 = vsel %vm1655, %v1657, %v1653
    %v1659 = vmul.f32 1.0, %v1658
    %v1660 = vtanh.pop %v1620
    %v1661 = vxor.u32 %v1621, 2147483648
    %v1662 = vmul.f32 %v1661, 1.442695
    %v1663 = vpow.pop %v1662
    %v1664 = vadd.f32 %v1663, 1.0
    %v1665 = vrcp.pop %v1664
    %v1666 = vmul.f32 %v1664, %v1665
    %v1667 = vsub.f32 1.0, %v1666
    %v1668 = vmul.f32 %v1665, %v1667
    %v1669 = vadd.f32 %v1665, %v1668
    %vm1670 = vweird.f32 %v1664
    %vm1671 = vweird.f32 %v1665
    %vm1672 = vmor %vm1670, %vm1671
    %v1673 = vsel %vm1672, %v1665, %v1669
    %v1674 = vand.u32 2147483647, %v1664
    %vm1675 = vcmp.eq.f32.partialorder %v1674, 8.507059e+37
    %v1676 = vand.u32 %v1664, 2147483648
    %v1677 = vor.u32 1.1754944e-38, %v1676
    %v1678 = vsel %vm1675, %v1677, %v1673
    %v1679 = vmul.f32 1.0, %v1678
    %v1680 = vmul.f32 %v1659, %v1227
    %v1681 = vmul.f32 %v1640, %v1660
    %v1682 = vadd.f32 %v1680, %v1681
    %v1683 = vtanh.pop %v1682
    %v1684 = vmul.f32 %v1679, %v1683
    %v1685 = vxor.u32 %v1492, 2147483648
    %v1686 = vmul.f32 %v1685, 1.442695
    %v1687 = vpow.pop %v1686
    %v1688 = vadd.f32 %v1687, 1.0
    %v1689 = vrcp.pop %v1688
    %v1690 = vmul.f32 %v1688, %v1689
    %v1691 = vsub.f32 1.0, %v1690
    %v1692 = vmul.f32 %v1689, %v1691
    %v1693 = vadd.f32 %v1689, %v1692
    %vm1694 = vweird.f32 %v1688
    %vm1695 = vweird.f32 %v1689
    %vm1696 = vmor %vm1694, %vm1695
    %v1697 = vsel %vm1696, %v1689, %v1693
    %v1698 = vand.u32 2147483647, %v1688
    %vm1699 = vcmp.eq.f32.partialorder %v1698, 8.507059e+37
    %v1700 = vand.u32 %v1688, 2147483648
    %v1701 = vor.u32 1.1754944e-38, %v1700
    %v1702 = vsel %vm1699, %v1701, %v1697
    %v1703 = vmul.f32 1.0, %v1702
    %v1704 = vxor.u32 %v1532, 2147483648
    %v1705 = vmul.f32 %v1704, 1.442695
    %v1706 = vpow.pop %v1705
    %v1707 = vadd.f32 %v1706, 1.0
    %v1708 = vrcp.pop %v1707
    %v1709 = vmul.f32 %v1707, %v1708
    %v1710 = vsub.f32 1.0, %v1709
    %v1711 = vmul.f32 %v1708, %v1710
    %v1712 = vadd.f32 %v1708, %v1711
    %vm1713 = vweird.f32 %v1707
    %vm1714 = vweird.f32 %v1708
    %vm1715 = vmor %vm1713, %vm1714
    %v1716 = vsel %vm1715, %v1708, %v1712
    %v1717 = vand.u32 2147483647, %v1707
    %vm1718 = vcmp.eq.f32.partialorder %v1717, 8.507059e+37
    %v1719 = vand.u32 %v1707, 2147483648
    %v1720 = vor.u32 1.1754944e-38, %v1719
    %v1721 = vsel %vm1718, %v1720, %v1716
    %v1722 = vmul.f32 1.0, %v1721
    %v1723 = vtanh.pop %v1572
    %v1724 = vxor.u32 %v1612, 2147483648
    %v1725 = vmul.f32 %v1724, 1.442695
    %v1726 = vpow.pop %v1725
    %v1727 = vadd.f32 %v1726, 1.0
    %v1728 = vrcp.pop %v1727
    %v1729 = vmul.f32 %v1727, %v1728
    %v1730 = vsub.f32 1.0, %v1729
    %v1731 = vmul.f32 %v1728, %v1730
    %v1732 = vadd.f32 %v1728, %v1731
    %vm1733 = vweird.f32 %v1727
    %vm1734 = vweird.f32 %v1728
    %vm1735 = vmor %vm1733, %vm1734
    %v1736 = vsel %vm1735, %v1728, %v1732
    %v1737 = vand.u32 2147483647, %v1727
    %vm1738 = vcmp.eq.f32.partialorder %v1737, 8.507059e+37
    %v1739 = vand.u32 %v1727, 2147483648
    %v1740 = vor.u32 1.1754944e-38, %v1739
    %v1741 = vsel %vm1738, %v1740, %v1736
    %v1742 = vmul.f32 1.0, %v1741
    %v1743 = vmul.f32 %v1722, %v1290
    %v1744 = vmul.f32 %v1703, %v1723
    %v1745 = vadd.f32 %v1743, %v1744
    %v1746 = vtanh.pop %v1745
    %v1747 = vmul.f32 %v1742, %v1746
    %1748 = vst [vmem:[#allocation3 + $0x8] sm:$0xff] %v1747
    %1749 = vmatpush.msra.mxu0 %v454
    %1750 = vmatpush.msra.mxu0 %v446
    %1751 = vmatpush.msra.mxu0 %v438
    %1752 = vmatpush.msra.mxu0 %v430
    %1753 = vmatpush.msra.mxu0 %v422
    %1754 = vmatpush.msra.mxu0 %v414
    %1755 = vmatpush.msra.mxu0 %v406
    %1756 = vmatpush.msra.mxu0 %v398
    %1757 = vmatpush.msra.mxu0 %v390
    %1758 = vmatpush.msra.mxu0 %v382
    %1759 = vmatpush.msra.mxu0 %v374
    %1760 = vmatpush.msra.mxu0 %v366
    %1761 = vmatpush.msra.mxu0 %v358
    %1762 = vmatpush.msra.mxu0 %v350
    %1763 = vmatpush.msra.mxu0 %v342
    %1764 = vmatpush.msra.mxu0 %v334
    %1765 = vmatmul.f32.gmra.mxu0 %v1684
    %v1766 = vpop.f32.mrf.mxu0
    %v1767 = vadd.f32 %v592, %v1766
    %1768 = vdwg.mxu0
    %1769 = vmatpush.msra.mxu0 %v582
    %1770 = vmatpush.msra.mxu0 %v574
    %1771 = vmatpush.msra.mxu0 %v566
    %1772 = vmatpush.msra.mxu0 %v558
    %1773 = vmatpush.msra.mxu0 %v550
    %1774 = vmatpush.msra.mxu0 %v542
    %1775 = vmatpush.msra.mxu0 %v534
    %1776 = vmatpush.msra.mxu0 %v526
    %1777 = vmatpush.msra.mxu0 %v518
    %1778 = vmatpush.msra.mxu0 %v510
    %1779 = vmatpush.msra.mxu0 %v502
    %1780 = vmatpush.msra.mxu0 %v494
    %1781 = vmatpush.msra.mxu0 %v486
    %1782 = vmatpush.msra.mxu0 %v478
    %1783 = vmatpush.msra.mxu0 %v470
    %1784 = vmatpush.msra.mxu0 %v462
    %1785 = vmatmul.f32.gmra.mxu0 %v1747
    %v1786 = vpop.f32.mrf.mxu0
    %v1787 = vadd.f32 %v1767, %v1786
    %1788 = vdwg.mxu0
    %1789 = vmatpush.msra.mxu0 %v455
    %1790 = vmatpush.msra.mxu0 %v447
    %1791 = vmatpush.msra.mxu0 %v439
    %1792 = vmatpush.msra.mxu0 %v431
    %1793 = vmatpush.msra.mxu0 %v423
    %1794 = vmatpush.msra.mxu0 %v415
    %1795 = vmatpush.msra.mxu0 %v407
    %1796 = vmatpush.msra.mxu0 %v399
    %1797 = vmatpush.msra.mxu0 %v391
    %1798 = vmatpush.msra.mxu0 %v383
    %1799 = vmatpush.msra.mxu0 %v375
    %1800 = vmatpush.msra.mxu0 %v367
    %1801 = vmatpush.msra.mxu0 %v359
    %1802 = vmatpush.msra.mxu0 %v351
    %1803 = vmatpush.msra.mxu0 %v343
    %1804 = vmatpush.msra.mxu0 %v335
    %1805 = vmatmul.f32.gmra.mxu0 %v1684
    %v1806 = vpop.f32.mrf.mxu0
    %v1807 = vadd.f32 %v593, %v1806
    %1808 = vdwg.mxu0
    %1809 = vmatpush.msra.mxu0 %v583
    %1810 = vmatpush.msra.mxu0 %v575
    %1811 = vmatpush.msra.mxu0 %v567
    %1812 = vmatpush.msra.mxu0 %v559
    %1813 = vmatpush.msra.mxu0 %v551
    %1814 = vmatpush.msra.mxu0 %v543
    %1815 = vmatpush.msra.mxu0 %v535
    %1816 = vmatpush.msra.mxu0 %v527
    %1817 = vmatpush.msra.mxu0 %v519
    %1818 = vmatpush.msra.mxu0 %v511
    %1819 = vmatpush.msra.mxu0 %v503
    %1820 = vmatpush.msra.mxu0 %v495
    %1821 = vmatpush.msra.mxu0 %v487
    %1822 = vmatpush.msra.mxu0 %v479
    %1823 = vmatpush.msra.mxu0 %v471
    %1824 = vmatpush.msra.mxu0 %v463
    %1825 = vmatmul.f32.gmra.mxu0 %v1747
    %v1826 = vpop.f32.mrf.mxu0
    %v1827 = vadd.f32 %v1807, %v1826
    %1828 = vdwg.mxu0
    %1829 = vmatpush.msra.mxu0 %v456
    %1830 = vmatpush.msra.mxu0 %v448
    %1831 = vmatpush.msra.mxu0 %v440
    %1832 = vmatpush.msra.mxu0 %v432
    %1833 = vmatpush.msra.mxu0 %v424
    %1834 = vmatpush.msra.mxu0 %v416
    %1835 = vmatpush.msra.mxu0 %v408
    %1836 = vmatpush.msra.mxu0 %v400
    %1837 = vmatpush.msra.mxu0 %v392
    %1838 = vmatpush.msra.mxu0 %v384
    %1839 = vmatpush.msra.mxu0 %v376
    %1840 = vmatpush.msra.mxu0 %v368
    %1841 = vmatpush.msra.mxu0 %v360
    %1842 = vmatpush.msra.mxu0 %v352
    %1843 = vmatpush.msra.mxu0 %v344
    %1844 = vmatpush.msra.mxu0 %v336
    %1845 = vmatmul.f32.gmra.mxu0 %v1684
    %v1846 = vpop.f32.mrf.mxu0
    %v1847 = vadd.f32 %v594, %v1846
    %1848 = vdwg.mxu0
    %1849 = vmatpush.msra.mxu0 %v584
    %1850 = vmatpush.msra.mxu0 %v576
    %1851 = vmatpush.msra.mxu0 %v568
    %1852 = vmatpush.msra.mxu0 %v560
    %1853 = vmatpush.msra.mxu0 %v552
    %1854 = vmatpush.msra.mxu0 %v544
    %1855 = vmatpush.msra.mxu0 %v536
    %1856 = vmatpush.msra.mxu0 %v528
    %1857 = vmatpush.msra.mxu0 %v520
    %1858 = vmatpush.msra.mxu0 %v512
    %1859 = vmatpush.msra.mxu0 %v504
    %1860 = vmatpush.msra.mxu0 %v496
    %1861 = vmatpush.msra.mxu0 %v488
    %1862 = vmatpush.msra.mxu0 %v480
    %1863 = vmatpush.msra.mxu0 %v472
    %1864 = vmatpush.msra.mxu0 %v464
    %1865 = vmatmul.f32.gmra.mxu0 %v1747
    %v1866 = vpop.f32.mrf.mxu0
    %v1867 = vadd.f32 %v1847, %v1866
    %1868 = vdwg.mxu0
    %1869 = vmatpush.msra.mxu0 %v457
    %1870 = vmatpush.msra.mxu0 %v449
    %1871 = vmatpush.msra.mxu0 %v441
    %1872 = vmatpush.msra.mxu0 %v433
    %1873 = vmatpush.msra.mxu0 %v425
    %1874 = vmatpush.msra.mxu0 %v417
    %1875 = vmatpush.msra.mxu0 %v409
    %1876 = vmatpush.msra.mxu0 %v401
    %1877 = vmatpush.msra.mxu0 %v393
    %1878 = vmatpush.msra.mxu0 %v385
    %1879 = vmatpush.msra.mxu0 %v377
    %1880 = vmatpush.msra.mxu0 %v369
    %1881 = vmatpush.msra.mxu0 %v361
    %1882 = vmatpush.msra.mxu0 %v353
    %1883 = vmatpush.msra.mxu0 %v345
    %1884 = vmatpush.msra.mxu0 %v337
    %1885 = vmatmul.f32.gmra.mxu0 %v1684
    %v1886 = vpop.f32.mrf.mxu0
    %v1887 = vadd.f32 %v595, %v1886
    %1888 = vdwg.mxu0
    %1889 = vmatpush.msra.mxu0 %v585
    %1890 = vmatpush.msra.mxu0 %v577
    %1891 = vmatpush.msra.mxu0 %v569
    %1892 = vmatpush.msra.mxu0 %v561
    %1893 = vmatpush.msra.mxu0 %v553
    %1894 = vmatpush.msra.mxu0 %v545
    %1895 = vmatpush.msra.mxu0 %v537
    %1896 = vmatpush.msra.mxu0 %v529
    %1897 = vmatpush.msra.mxu0 %v521
    %1898 = vmatpush.msra.mxu0 %v513
    %1899 = vmatpush.msra.mxu0 %v505
    %1900 = vmatpush.msra.mxu0 %v497
    %1901 = vmatpush.msra.mxu0 %v489
    %1902 = vmatpush.msra.mxu0 %v481
    %1903 = vmatpush.msra.mxu0 %v473
    %1904 = vmatpush.msra.mxu0 %v465
    %1905 = vmatmul.f32.gmra.mxu0 %v1747
    %v1906 = vpop.f32.mrf.mxu0
    %v1907 = vadd.f32 %v1887, %v1906
    %1908 = vdwg.mxu0
    %1909 = vmatpush.msra.mxu0 %v458
    %1910 = vmatpush.msra.mxu0 %v450
    %1911 = vmatpush.msra.mxu0 %v442
    %1912 = vmatpush.msra.mxu0 %v434
    %1913 = vmatpush.msra.mxu0 %v426
    %1914 = vmatpush.msra.mxu0 %v418
    %1915 = vmatpush.msra.mxu0 %v410
    %1916 = vmatpush.msra.mxu0 %v402
    %1917 = vmatpush.msra.mxu0 %v394
    %1918 = vmatpush.msra.mxu0 %v386
    %1919 = vmatpush.msra.mxu0 %v378
    %1920 = vmatpush.msra.mxu0 %v370
    %1921 = vmatpush.msra.mxu0 %v362
    %1922 = vmatpush.msra.mxu0 %v354
    %1923 = vmatpush.msra.mxu0 %v346
    %1924 = vmatpush.msra.mxu0 %v338
    %1925 = vmatmul.f32.gmra.mxu0 %v1684
    %v1926 = vpop.f32.mrf.mxu0
    %v1927 = vadd.f32 %v596, %v1926
    %1928 = vdwg.mxu0
    %1929 = vmatpush.msra.mxu0 %v586
    %1930 = vmatpush.msra.mxu0 %v578
    %1931 = vmatpush.msra.mxu0 %v570
    %1932 = vmatpush.msra.mxu0 %v562
    %1933 = vmatpush.msra.mxu0 %v554
    %1934 = vmatpush.msra.mxu0 %v546
    %1935 = vmatpush.msra.mxu0 %v538
    %1936 = vmatpush.msra.mxu0 %v530
    %1937 = vmatpush.msra.mxu0 %v522
    %1938 = vmatpush.msra.mxu0 %v514
    %1939 = vmatpush.msra.mxu0 %v506
    %1940 = vmatpush.msra.mxu0 %v498
    %1941 = vmatpush.msra.mxu0 %v490
    %1942 = vmatpush.msra.mxu0 %v482
    %1943 = vmatpush.msra.mxu0 %v474
    %1944 = vmatpush.msra.mxu0 %v466
    %1945 = vmatmul.f32.gmra.mxu0 %v1747
    %v1946 = vpop.f32.mrf.mxu0
    %v1947 = vadd.f32 %v1927, %v1946
    %1948 = vdwg.mxu0
    %1949 = vmatpush.msra.mxu0 %v459
    %1950 = vmatpush.msra.mxu0 %v451
    %1951 = vmatpush.msra.mxu0 %v443
    %1952 = vmatpush.msra.mxu0 %v435
    %1953 = vmatpush.msra.mxu0 %v427
    %1954 = vmatpush.msra.mxu0 %v419
    %1955 = vmatpush.msra.mxu0 %v411
    %1956 = vmatpush.msra.mxu0 %v403
    %1957 = vmatpush.msra.mxu0 %v395
    %1958 = vmatpush.msra.mxu0 %v387
    %1959 = vmatpush.msra.mxu0 %v379
    %1960 = vmatpush.msra.mxu0 %v371
    %1961 = vmatpush.msra.mxu0 %v363
    %1962 = vmatpush.msra.mxu0 %v355
    %1963 = vmatpush.msra.mxu0 %v347
    %1964 = vmatpush.msra.mxu0 %v339
    %1965 = vmatmul.f32.gmra.mxu0 %v1684
    %v1966 = vpop.f32.mrf.mxu0
    %v1967 = vadd.f32 %v597, %v1966
    %1968 = vdwg.mxu0
    %1969 = vmatpush.msra.mxu0 %v587
    %1970 = vmatpush.msra.mxu0 %v579
    %1971 = vmatpush.msra.mxu0 %v571
    %1972 = vmatpush.msra.mxu0 %v563
    %1973 = vmatpush.msra.mxu0 %v555
    %1974 = vmatpush.msra.mxu0 %v547
    %1975 = vmatpush.msra.mxu0 %v539
    %1976 = vmatpush.msra.mxu0 %v531
    %1977 = vmatpush.msra.mxu0 %v523
    %1978 = vmatpush.msra.mxu0 %v515
    %1979 = vmatpush.msra.mxu0 %v507
    %1980 = vmatpush.msra.mxu0 %v499
    %1981 = vmatpush.msra.mxu0 %v491
    %1982 = vmatpush.msra.mxu0 %v483
    %1983 = vmatpush.msra.mxu0 %v475
    %1984 = vmatpush.msra.mxu0 %v467
    %1985 = vmatmul.f32.gmra.mxu0 %v1747
    %v1986 = vpop.f32.mrf.mxu0
    %v1987 = vadd.f32 %v1967, %v1986
    %1988 = vdwg.mxu0
    %1989 = vmatpush.msra.mxu0 %v460
    %1990 = vmatpush.msra.mxu0 %v452
    %1991 = vmatpush.msra.mxu0 %v444
    %1992 = vmatpush.msra.mxu0 %v436
    %1993 = vmatpush.msra.mxu0 %v428
    %1994 = vmatpush.msra.mxu0 %v420
    %1995 = vmatpush.msra.mxu0 %v412
    %1996 = vmatpush.msra.mxu0 %v404
    %1997 = vmatpush.msra.mxu0 %v396
    %1998 = vmatpush.msra.mxu0 %v388
    %1999 = vmatpush.msra.mxu0 %v380
    %2000 = vmatpush.msra.mxu0 %v372
    %2001 = vmatpush.msra.mxu0 %v364
    %2002 = vmatpush.msra.mxu0 %v356
    %2003 = vmatpush.msra.mxu0 %v348
    %2004 = vmatpush.msra.mxu0 %v340
    %2005 = vmatmul.f32.gmra.mxu0 %v1684
    %v2006 = vpop.f32.mrf.mxu0
    %v2007 = vadd.f32 %v598, %v2006
    %2008 = vdwg.mxu0
    %2009 = vmatpush.msra.mxu0 %v588
    %2010 = vmatpush.msra.mxu0 %v580
    %2011 = vmatpush.msra.mxu0 %v572
    %2012 = vmatpush.msra.mxu0 %v564
    %2013 = vmatpush.msra.mxu0 %v556
    %2014 = vmatpush.msra.mxu0 %v548
    %2015 = vmatpush.msra.mxu0 %v540
    %2016 = vmatpush.msra.mxu0 %v532
    %2017 = vmatpush.msra.mxu0 %v524
    %2018 = vmatpush.msra.mxu0 %v516
    %2019 = vmatpush.msra.mxu0 %v508
    %2020 = vmatpush.msra.mxu0 %v500
    %2021 = vmatpush.msra.mxu0 %v492
    %2022 = vmatpush.msra.mxu0 %v484
    %2023 = vmatpush.msra.mxu0 %v476
    %2024 = vmatpush.msra.mxu0 %v468
    %2025 = vmatmul.f32.gmra.mxu0 %v1747
    %v2026 = vpop.f32.mrf.mxu0
    %v2027 = vadd.f32 %v2007, %v2026
    %2028 = vdwg.mxu0
    %2029 = vmatpush.msra.mxu0 %v461
    %2030 = vmatpush.msra.mxu0 %v453
    %2031 = vmatpush.msra.mxu0 %v445
    %2032 = vmatpush.msra.mxu0 %v437
    %2033 = vmatpush.msra.mxu0 %v429
    %2034 = vmatpush.msra.mxu0 %v421
    %2035 = vmatpush.msra.mxu0 %v413
    %2036 = vmatpush.msra.mxu0 %v405
    %2037 = vmatpush.msra.mxu0 %v397
    %2038 = vmatpush.msra.mxu0 %v389
    %2039 = vmatpush.msra.mxu0 %v381
    %2040 = vmatpush.msra.mxu0 %v373
    %2041 = vmatpush.msra.mxu0 %v365
    %2042 = vmatpush.msra.mxu0 %v357
    %2043 = vmatpush.msra.mxu0 %v349
    %2044 = vmatpush.msra.mxu0 %v341
    %2045 = vmatmul.f32.gmra.mxu0 %v1684
    %v2046 = vpop.f32.mrf.mxu0
    %v2047 = vadd.f32 %v599, %v2046
    %2048 = vdwg.mxu0
    %2049 = vmatpush.msra.mxu0 %v589
    %2050 = vmatpush.msra.mxu0 %v581
    %2051 = vmatpush.msra.mxu0 %v573
    %2052 = vmatpush.msra.mxu0 %v565
    %2053 = vmatpush.msra.mxu0 %v557
    %2054 = vmatpush.msra.mxu0 %v549
    %2055 = vmatpush.msra.mxu0 %v541
    %2056 = vmatpush.msra.mxu0 %v533
    %2057 = vmatpush.msra.mxu0 %v525
    %2058 = vmatpush.msra.mxu0 %v517
    %2059 = vmatpush.msra.mxu0 %v509
    %2060 = vmatpush.msra.mxu0 %v501
    %2061 = vmatpush.msra.mxu0 %v493
    %2062 = vmatpush.msra.mxu0 %v485
    %2063 = vmatpush.msra.mxu0 %v477
    %2064 = vmatpush.msra.mxu0 %v469
    %2065 = vmatmul.f32.gmra.mxu0 %v1747
    %v2066 = vpop.f32.mrf.mxu0
    %v2067 = vadd.f32 %v2047, %v2066
    %2068 = vdwg.mxu0
    %v2069 = vld [vmem:[#allocation2 + $0x60] sm:$0xff]
    %v2070 = vld [vmem:[#allocation2 + $0x68] sm:$0xff]
    %v2071 = vld [vmem:[#allocation2 + $0x70] sm:$0xff]
    %v2072 = vld [vmem:[#allocation2 + $0x78] sm:$0xff]
    %v2073 = vadd.f32 %v1787, %v2069
    %v2074 = vadd.f32 %v1827, %v2070
    %v2075 = vadd.f32 %v1867, %v2071
    %v2076 = vadd.f32 %v1907, %v2072
    %v2077 = vxor.u32 %v2073, 2147483648
    %v2078 = vmul.f32 %v2077, 1.442695
    %v2079 = vpow.pop %v2078
    %v2080 = vadd.f32 %v2079, 1.0
    %v2081 = vrcp.pop %v2080
    %v2082 = vmul.f32 %v2080, %v2081
    %v2083 = vsub.f32 1.0, %v2082
    %v2084 = vmul.f32 %v2081, %v2083
    %v2085 = vadd.f32 %v2081, %v2084
    %vm2086 = vweird.f32 %v2080
    %vm2087 = vweird.f32 %v2081
    %vm2088 = vmor %vm2086, %vm2087
    %v2089 = vsel %vm2088, %v2081, %v2085
    %v2090 = vand.u32 2147483647, %v2080
    %vm2091 = vcmp.eq.f32.partialorder %v2090, 8.507059e+37
    %v2092 = vand.u32 %v2080, 2147483648
    %v2093 = vor.u32 1.1754944e-38, %v2092
    %v2094 = vsel %vm2091, %v2093, %v2089
    %v2095 = vmul.f32 1.0, %v2094
    %v2096 = vxor.u32 %v2074, 2147483648
    %v2097 = vmul.f32 %v2096, 1.442695
    %v2098 = vpow.pop %v2097
    %v2099 = vadd.f32 %v2098, 1.0
    %v2100 = vrcp.pop %v2099
    %v2101 = vmul.f32 %v2099, %v2100
    %v2102 = vsub.f32 1.0, %v2101
    %v2103 = vmul.f32 %v2100, %v2102
    %v2104 = vadd.f32 %v2100, %v2103
    %vm2105 = vweird.f32 %v2099
    %vm2106 = vweird.f32 %v2100
    %vm2107 = vmor %vm2105, %vm2106
    %v2108 = vsel %vm2107, %v2100, %v2104
    %v2109 = vand.u32 2147483647, %v2099
    %vm2110 = vcmp.eq.f32.partialorder %v2109, 8.507059e+37
    %v2111 = vand.u32 %v2099, 2147483648
    %v2112 = vor.u32 1.1754944e-38, %v2111
    %v2113 = vsel %vm2110, %v2112, %v2108
    %v2114 = vmul.f32 1.0, %v2113
    %v2115 = vtanh.pop %v2075
    %v2116 = vxor.u32 %v2076, 2147483648
    %v2117 = vmul.f32 %v2116, 1.442695
    %v2118 = vpow.pop %v2117
    %v2119 = vadd.f32 %v2118, 1.0
    %v2120 = vrcp.pop %v2119
    %v2121 = vmul.f32 %v2119, %v2120
    %v2122 = vsub.f32 1.0, %v2121
    %v2123 = vmul.f32 %v2120, %v2122
    %v2124 = vadd.f32 %v2120, %v2123
    %vm2125 = vweird.f32 %v2119
    %vm2126 = vweird.f32 %v2120
    %vm2127 = vmor %vm2125, %vm2126
    %v2128 = vsel %vm2127, %v2120, %v2124
    %v2129 = vand.u32 2147483647, %v2119
    %vm2130 = vcmp.eq.f32.partialorder %v2129, 8.507059e+37
    %v2131 = vand.u32 %v2119, 2147483648
    %v2132 = vor.u32 1.1754944e-38, %v2131
    %v2133 = vsel %vm2130, %v2132, %v2128
    %v2134 = vmul.f32 1.0, %v2133
    %v2135 = vmul.f32 %v2114, %v1682
    %v2136 = vmul.f32 %v2095, %v2115
    %v2137 = vadd.f32 %v2135, %v2136
    %v2138 = vtanh.pop %v2137
    %v2139 = vmul.f32 %v2134, %v2138
    %v2140 = vxor.u32 %v1947, 2147483648
    %v2141 = vmul.f32 %v2140, 1.442695
    %v2142 = vpow.pop %v2141
    %v2143 = vadd.f32 %v2142, 1.0
    %v2144 = vrcp.pop %v2143
    %v2145 = vmul.f32 %v2143, %v2144
    %v2146 = vsub.f32 1.0, %v2145
    %v2147 = vmul.f32 %v2144, %v2146
    %v2148 = vadd.f32 %v2144, %v2147
    %vm2149 = vweird.f32 %v2143
    %vm2150 = vweird.f32 %v2144
    %vm2151 = vmor %vm2149, %vm2150
    %v2152 = vsel %vm2151, %v2144, %v2148
    %v2153 = vand.u32 2147483647, %v2143
    %vm2154 = vcmp.eq.f32.partialorder %v2153, 8.507059e+37
    %v2155 = vand.u32 %v2143, 2147483648
    %v2156 = vor.u32 1.1754944e-38, %v2155
    %v2157 = vsel %vm2154, %v2156, %v2152
    %v2158 = vmul.f32 1.0, %v2157
    %v2159 = vxor.u32 %v1987, 2147483648
    %v2160 = vmul.f32 %v2159, 1.442695
    %v2161 = vpow.pop %v2160
    %v2162 = vadd.f32 %v2161, 1.0
    %v2163 = vrcp.pop %v2162
    %v2164 = vmul.f32 %v2162, %v2163
    %v2165 = vsub.f32 1.0, %v2164
    %v2166 = vmul.f32 %v2163, %v2165
    %v2167 = vadd.f32 %v2163, %v2166
    %vm2168 = vweird.f32 %v2162
    %vm2169 = vweird.f32 %v2163
    %vm2170 = vmor %vm2168, %vm2169
    %v2171 = vsel %vm2170, %v2163, %v2167
    %v2172 = vand.u32 2147483647, %v2162
    %vm2173 = vcmp.eq.f32.partialorder %v2172, 8.507059e+37
    %v2174 = vand.u32 %v2162, 2147483648
    %v2175 = vor.u32 1.1754944e-38, %v2174
    %v2176 = vsel %vm2173, %v2175, %v2171
    %v2177 = vmul.f32 1.0, %v2176
    %v2178 = vtanh.pop %v2027
    %v2179 = vxor.u32 %v2067, 2147483648
    %v2180 = vmul.f32 %v2179, 1.442695
    %v2181 = vpow.pop %v2180
    %v2182 = vadd.f32 %v2181, 1.0
    %v2183 = vrcp.pop %v2182
    %v2184 = vmul.f32 %v2182, %v2183
    %v2185 = vsub.f32 1.0, %v2184
    %v2186 = vmul.f32 %v2183, %v2185
    %v2187 = vadd.f32 %v2183, %v2186
    %vm2188 = vweird.f32 %v2182
    %vm2189 = vweird.f32 %v2183
    %vm2190 = vmor %vm2188, %vm2189
    %v2191 = vsel %vm2190, %v2183, %v2187
    %v2192 = vand.u32 2147483647, %v2182
    %vm2193 = vcmp.eq.f32.partialorder %v2192, 8.507059e+37
    %v2194 = vand.u32 %v2182, 2147483648
    %v2195 = vor.u32 1.1754944e-38, %v2194
    %v2196 = vsel %vm2193, %v2195, %v2191
    %v2197 = vmul.f32 1.0, %v2196
    %v2198 = vmul.f32 %v2177, %v1745
    %v2199 = vmul.f32 %v2158, %v2178
    %v2200 = vadd.f32 %v2198, %v2199
    %v2201 = vtanh.pop %v2200
    %v2202 = vmul.f32 %v2197, %v2201
    %2203 = vst [vmem:[#allocation3 + $0x10] sm:$0xff] %v2202
    %2204 = vmatpush.msra.mxu0 %v454
    %2205 = vmatpush.msra.mxu0 %v446
    %2206 = vmatpush.msra.mxu0 %v438
    %2207 = vmatpush.msra.mxu0 %v430
    %2208 = vmatpush.msra.mxu0 %v422
    %2209 = vmatpush.msra.mxu0 %v414
    %2210 = vmatpush.msra.mxu0 %v406
    %2211 = vmatpush.msra.mxu0 %v398
    %2212 = vmatpush.msra.mxu0 %v390
    %2213 = vmatpush.msra.mxu0 %v382
    %2214 = vmatpush.msra.mxu0 %v374
    %2215 = vmatpush.msra.mxu0 %v366
    %2216 = vmatpush.msra.mxu0 %v358
    %2217 = vmatpush.msra.mxu0 %v350
    %2218 = vmatpush.msra.mxu0 %v342
    %2219 = vmatpush.msra.mxu0 %v334
    %2220 = vmatmul.f32.gmra.mxu0 %v2139
    %v2221 = vpop.f32.mrf.mxu0
    %v2222 = vadd.f32 %v592, %v2221
    %2223 = vdwg.mxu0
    %2224 = vmatpush.msra.mxu0 %v582
    %2225 = vmatpush.msra.mxu0 %v574
    %2226 = vmatpush.msra.mxu0 %v566
    %2227 = vmatpush.msra.mxu0 %v558
    %2228 = vmatpush.msra.mxu0 %v550
    %2229 = vmatpush.msra.mxu0 %v542
    %2230 = vmatpush.msra.mxu0 %v534
    %2231 = vmatpush.msra.mxu0 %v526
    %2232 = vmatpush.msra.mxu0 %v518
    %2233 = vmatpush.msra.mxu0 %v510
    %2234 = vmatpush.msra.mxu0 %v502
    %2235 = vmatpush.msra.mxu0 %v494
    %2236 = vmatpush.msra.mxu0 %v486
    %2237 = vmatpush.msra.mxu0 %v478
    %2238 = vmatpush.msra.mxu0 %v470
    %2239 = vmatpush.msra.mxu0 %v462
    %2240 = vmatmul.f32.gmra.mxu0 %v2202
    %v2241 = vpop.f32.mrf.mxu0
    %v2242 = vadd.f32 %v2222, %v2241
    %2243 = vdwg.mxu0
    %2244 = vmatpush.msra.mxu0 %v455
    %2245 = vmatpush.msra.mxu0 %v447
    %2246 = vmatpush.msra.mxu0 %v439
    %2247 = vmatpush.msra.mxu0 %v431
    %2248 = vmatpush.msra.mxu0 %v423
    %2249 = vmatpush.msra.mxu0 %v415
    %2250 = vmatpush.msra.mxu0 %v407
    %2251 = vmatpush.msra.mxu0 %v399
    %2252 = vmatpush.msra.mxu0 %v391
    %2253 = vmatpush.msra.mxu0 %v383
    %2254 = vmatpush.msra.mxu0 %v375
    %2255 = vmatpush.msra.mxu0 %v367
    %2256 = vmatpush.msra.mxu0 %v359
    %2257 = vmatpush.msra.mxu0 %v351
    %2258 = vmatpush.msra.mxu0 %v343
    %2259 = vmatpush.msra.mxu0 %v335
    %2260 = vmatmul.f32.gmra.mxu0 %v2139
    %v2261 = vpop.f32.mrf.mxu0
    %v2262 = vadd.f32 %v593, %v2261
    %2263 = vdwg.mxu0
    %2264 = vmatpush.msra.mxu0 %v583
    %2265 = vmatpush.msra.mxu0 %v575
    %2266 = vmatpush.msra.mxu0 %v567
    %2267 = vmatpush.msra.mxu0 %v559
    %2268 = vmatpush.msra.mxu0 %v551
    %2269 = vmatpush.msra.mxu0 %v543
    %2270 = vmatpush.msra.mxu0 %v535
    %2271 = vmatpush.msra.mxu0 %v527
    %2272 = vmatpush.msra.mxu0 %v519
    %2273 = vmatpush.msra.mxu0 %v511
    %2274 = vmatpush.msra.mxu0 %v503
    %2275 = vmatpush.msra.mxu0 %v495
    %2276 = vmatpush.msra.mxu0 %v487
    %2277 = vmatpush.msra.mxu0 %v479
    %2278 = vmatpush.msra.mxu0 %v471
    %2279 = vmatpush.msra.mxu0 %v463
    %2280 = vmatmul.f32.gmra.mxu0 %v2202
    %v2281 = vpop.f32.mrf.mxu0
    %v2282 = vadd.f32 %v2262, %v2281
    %2283 = vdwg.mxu0
    %2284 = vmatpush.msra.mxu0 %v456
    %2285 = vmatpush.msra.mxu0 %v448
    %2286 = vmatpush.msra.mxu0 %v440
    %2287 = vmatpush.msra.mxu0 %v432
    %2288 = vmatpush.msra.mxu0 %v424
    %2289 = vmatpush.msra.mxu0 %v416
    %2290 = vmatpush.msra.mxu0 %v408
    %2291 = vmatpush.msra.mxu0 %v400
    %2292 = vmatpush.msra.mxu0 %v392
    %2293 = vmatpush.msra.mxu0 %v384
    %2294 = vmatpush.msra.mxu0 %v376
    %2295 = vmatpush.msra.mxu0 %v368
    %2296 = vmatpush.msra.mxu0 %v360
    %2297 = vmatpush.msra.mxu0 %v352
    %2298 = vmatpush.msra.mxu0 %v344
    %2299 = vmatpush.msra.mxu0 %v336
    %2300 = vmatmul.f32.gmra.mxu0 %v2139
    %v2301 = vpop.f32.mrf.mxu0
    %v2302 = vadd.f32 %v594, %v2301
    %2303 = vdwg.mxu0
    %2304 = vmatpush.msra.mxu0 %v584
    %2305 = vmatpush.msra.mxu0 %v576
    %2306 = vmatpush.msra.mxu0 %v568
    %2307 = vmatpush.msra.mxu0 %v560
    %2308 = vmatpush.msra.mxu0 %v552
    %2309 = vmatpush.msra.mxu0 %v544
    %2310 = vmatpush.msra.mxu0 %v536
    %2311 = vmatpush.msra.mxu0 %v528
    %2312 = vmatpush.msra.mxu0 %v520
    %2313 = vmatpush.msra.mxu0 %v512
    %2314 = vmatpush.msra.mxu0 %v504
    %2315 = vmatpush.msra.mxu0 %v496
    %2316 = vmatpush.msra.mxu0 %v488
    %2317 = vmatpush.msra.mxu0 %v480
    %2318 = vmatpush.msra.mxu0 %v472
    %2319 = vmatpush.msra.mxu0 %v464
    %2320 = vmatmul.f32.gmra.mxu0 %v2202
    %v2321 = vpop.f32.mrf.mxu0
    %v2322 = vadd.f32 %v2302, %v2321
    %2323 = vdwg.mxu0
    %2324 = vmatpush.msra.mxu0 %v457
    %2325 = vmatpush.msra.mxu0 %v449
    %2326 = vmatpush.msra.mxu0 %v441
    %2327 = vmatpush.msra.mxu0 %v433
    %2328 = vmatpush.msra.mxu0 %v425
    %2329 = vmatpush.msra.mxu0 %v417
    %2330 = vmatpush.msra.mxu0 %v409
    %2331 = vmatpush.msra.mxu0 %v401
    %2332 = vmatpush.msra.mxu0 %v393
    %2333 = vmatpush.msra.mxu0 %v385
    %2334 = vmatpush.msra.mxu0 %v377
    %2335 = vmatpush.msra.mxu0 %v369
    %2336 = vmatpush.msra.mxu0 %v361
    %2337 = vmatpush.msra.mxu0 %v353
    %2338 = vmatpush.msra.mxu0 %v345
    %2339 = vmatpush.msra.mxu0 %v337
    %2340 = vmatmul.f32.gmra.mxu0 %v2139
    %v2341 = vpop.f32.mrf.mxu0
    %v2342 = vadd.f32 %v595, %v2341
    %2343 = vdwg.mxu0
    %2344 = vmatpush.msra.mxu0 %v585
    %2345 = vmatpush.msra.mxu0 %v577
    %2346 = vmatpush.msra.mxu0 %v569
    %2347 = vmatpush.msra.mxu0 %v561
    %2348 = vmatpush.msra.mxu0 %v553
    %2349 = vmatpush.msra.mxu0 %v545
    %2350 = vmatpush.msra.mxu0 %v537
    %2351 = vmatpush.msra.mxu0 %v529
    %2352 = vmatpush.msra.mxu0 %v521
    %2353 = vmatpush.msra.mxu0 %v513
    %2354 = vmatpush.msra.mxu0 %v505
    %2355 = vmatpush.msra.mxu0 %v497
    %2356 = vmatpush.msra.mxu0 %v489
    %2357 = vmatpush.msra.mxu0 %v481
    %2358 = vmatpush.msra.mxu0 %v473
    %2359 = vmatpush.msra.mxu0 %v465
    %2360 = vmatmul.f32.gmra.mxu0 %v2202
    %v2361 = vpop.f32.mrf.mxu0
    %v2362 = vadd.f32 %v2342, %v2361
    %2363 = vdwg.mxu0
    %2364 = vmatpush.msra.mxu0 %v458
    %2365 = vmatpush.msra.mxu0 %v450
    %2366 = vmatpush.msra.mxu0 %v442
    %2367 = vmatpush.msra.mxu0 %v434
    %2368 = vmatpush.msra.mxu0 %v426
    %2369 = vmatpush.msra.mxu0 %v418
    %2370 = vmatpush.msra.mxu0 %v410
    %2371 = vmatpush.msra.mxu0 %v402
    %2372 = vmatpush.msra.mxu0 %v394
    %2373 = vmatpush.msra.mxu0 %v386
    %2374 = vmatpush.msra.mxu0 %v378
    %2375 = vmatpush.msra.mxu0 %v370
    %2376 = vmatpush.msra.mxu0 %v362
    %2377 = vmatpush.msra.mxu0 %v354
    %2378 = vmatpush.msra.mxu0 %v346
    %2379 = vmatpush.msra.mxu0 %v338
    %2380 = vmatmul.f32.gmra.mxu0 %v2139
    %v2381 = vpop.f32.mrf.mxu0
    %v2382 = vadd.f32 %v596, %v2381
    %2383 = vdwg.mxu0
    %2384 = vmatpush.msra.mxu0 %v586
    %2385 = vmatpush.msra.mxu0 %v578
    %2386 = vmatpush.msra.mxu0 %v570
    %2387 = vmatpush.msra.mxu0 %v562
    %2388 = vmatpush.msra.mxu0 %v554
    %2389 = vmatpush.msra.mxu0 %v546
    %2390 = vmatpush.msra.mxu0 %v538
    %2391 = vmatpush.msra.mxu0 %v530
    %2392 = vmatpush.msra.mxu0 %v522
    %2393 = vmatpush.msra.mxu0 %v514
    %2394 = vmatpush.msra.mxu0 %v506
    %2395 = vmatpush.msra.mxu0 %v498
    %2396 = vmatpush.msra.mxu0 %v490
    %2397 = vmatpush.msra.mxu0 %v482
    %2398 = vmatpush.msra.mxu0 %v474
    %2399 = vmatpush.msra.mxu0 %v466
    %2400 = vmatmul.f32.gmra.mxu0 %v2202
    %v2401 = vpop.f32.mrf.mxu0
    %v2402 = vadd.f32 %v2382, %v2401
    %2403 = vdwg.mxu0
    %2404 = vmatpush.msra.mxu0 %v459
    %2405 = vmatpush.msra.mxu0 %v451
    %2406 = vmatpush.msra.mxu0 %v443
    %2407 = vmatpush.msra.mxu0 %v435
    %2408 = vmatpush.msra.mxu0 %v427
    %2409 = vmatpush.msra.mxu0 %v419
    %2410 = vmatpush.msra.mxu0 %v411
    %2411 = vmatpush.msra.mxu0 %v403
    %2412 = vmatpush.msra.mxu0 %v395
    %2413 = vmatpush.msra.mxu0 %v387
    %2414 = vmatpush.msra.mxu0 %v379
    %2415 = vmatpush.msra.mxu0 %v371
    %2416 = vmatpush.msra.mxu0 %v363
    %2417 = vmatpush.msra.mxu0 %v355
    %2418 = vmatpush.msra.mxu0 %v347
    %2419 = vmatpush.msra.mxu0 %v339
    %2420 = vmatmul.f32.gmra.mxu0 %v2139
    %v2421 = vpop.f32.mrf.mxu0
    %v2422 = vadd.f32 %v597, %v2421
    %2423 = vdwg.mxu0
    %2424 = vmatpush.msra.mxu0 %v587
    %2425 = vmatpush.msra.mxu0 %v579
    %2426 = vmatpush.msra.mxu0 %v571
    %2427 = vmatpush.msra.mxu0 %v563
    %2428 = vmatpush.msra.mxu0 %v555
    %2429 = vmatpush.msra.mxu0 %v547
    %2430 = vmatpush.msra.mxu0 %v539
    %2431 = vmatpush.msra.mxu0 %v531
    %2432 = vmatpush.msra.mxu0 %v523
    %2433 = vmatpush.msra.mxu0 %v515
    %2434 = vmatpush.msra.mxu0 %v507
    %2435 = vmatpush.msra.mxu0 %v499
    %2436 = vmatpush.msra.mxu0 %v491
    %2437 = vmatpush.msra.mxu0 %v483
    %2438 = vmatpush.msra.mxu0 %v475
    %2439 = vmatpush.msra.mxu0 %v467
    %2440 = vmatmul.f32.gmra.mxu0 %v2202
    %v2441 = vpop.f32.mrf.mxu0
    %v2442 = vadd.f32 %v2422, %v2441
    %2443 = vdwg.mxu0
    %2444 = vmatpush.msra.mxu0 %v460
    %2445 = vmatpush.msra.mxu0 %v452
    %2446 = vmatpush.msra.mxu0 %v444
    %2447 = vmatpush.msra.mxu0 %v436
    %2448 = vmatpush.msra.mxu0 %v428
    %2449 = vmatpush.msra.mxu0 %v420
    %2450 = vmatpush.msra.mxu0 %v412
    %2451 = vmatpush.msra.mxu0 %v404
    %2452 = vmatpush.msra.mxu0 %v396
    %2453 = vmatpush.msra.mxu0 %v388
    %2454 = vmatpush.msra.mxu0 %v380
    %2455 = vmatpush.msra.mxu0 %v372
    %2456 = vmatpush.msra.mxu0 %v364
    %2457 = vmatpush.msra.mxu0 %v356
    %2458 = vmatpush.msra.mxu0 %v348
    %2459 = vmatpush.msra.mxu0 %v340
    %2460 = vmatmul.f32.gmra.mxu0 %v2139
    %v2461 = vpop.f32.mrf.mxu0
    %v2462 = vadd.f32 %v598, %v2461
    %2463 = vdwg.mxu0
    %2464 = vmatpush.msra.mxu0 %v588
    %2465 = vmatpush.msra.mxu0 %v580
    %2466 = vmatpush.msra.mxu0 %v572
    %2467 = vmatpush.msra.mxu0 %v564
    %2468 = vmatpush.msra.mxu0 %v556
    %2469 = vmatpush.msra.mxu0 %v548
    %2470 = vmatpush.msra.mxu0 %v540
    %2471 = vmatpush.msra.mxu0 %v532
    %2472 = vmatpush.msra.mxu0 %v524
    %2473 = vmatpush.msra.mxu0 %v516
    %2474 = vmatpush.msra.mxu0 %v508
    %2475 = vmatpush.msra.mxu0 %v500
    %2476 = vmatpush.msra.mxu0 %v492
    %2477 = vmatpush.msra.mxu0 %v484
    %2478 = vmatpush.msra.mxu0 %v476
    %2479 = vmatpush.msra.mxu0 %v468
    %2480 = vmatmul.f32.gmra.mxu0 %v2202
    %v2481 = vpop.f32.mrf.mxu0
    %v2482 = vadd.f32 %v2462, %v2481
    %2483 = vdwg.mxu0
    %2484 = vmatpush.msra.mxu0 %v461
    %2485 = vmatpush.msra.mxu0 %v453
    %2486 = vmatpush.msra.mxu0 %v445
    %2487 = vmatpush.msra.mxu0 %v437
    %2488 = vmatpush.msra.mxu0 %v429
    %2489 = vmatpush.msra.mxu0 %v421
    %2490 = vmatpush.msra.mxu0 %v413
    %2491 = vmatpush.msra.mxu0 %v405
    %2492 = vmatpush.msra.mxu0 %v397
    %2493 = vmatpush.msra.mxu0 %v389
    %2494 = vmatpush.msra.mxu0 %v381
    %2495 = vmatpush.msra.mxu0 %v373
    %2496 = vmatpush.msra.mxu0 %v365
    %2497 = vmatpush.msra.mxu0 %v357
    %2498 = vmatpush.msra.mxu0 %v349
    %2499 = vmatpush.msra.mxu0 %v341
    %2500 = vmatmul.f32.gmra.mxu0 %v2139
    %v2501 = vpop.f32.mrf.mxu0
    %v2502 = vadd.f32 %v599, %v2501
    %2503 = vdwg.mxu0
    %2504 = vmatpush.msra.mxu0 %v589
    %2505 = vmatpush.msra.mxu0 %v581
    %2506 = vmatpush.msra.mxu0 %v573
    %2507 = vmatpush.msra.mxu0 %v565
    %2508 = vmatpush.msra.mxu0 %v557
    %2509 = vmatpush.msra.mxu0 %v549
    %2510 = vmatpush.msra.mxu0 %v541
    %2511 = vmatpush.msra.mxu0 %v533
    %2512 = vmatpush.msra.mxu0 %v525
    %2513 = vmatpush.msra.mxu0 %v517
    %2514 = vmatpush.msra.mxu0 %v509
    %2515 = vmatpush.msra.mxu0 %v501
    %2516 = vmatpush.msra.mxu0 %v493
    %2517 = vmatpush.msra.mxu0 %v485
    %2518 = vmatpush.msra.mxu0 %v477
    %2519 = vmatpush.msra.mxu0 %v469
    %2520 = vmatmul.f32.gmra.mxu0 %v2202
    %v2521 = vpop.f32.mrf.mxu0
    %v2522 = vadd.f32 %v2502, %v2521
    %2523 = vdwg.mxu0
    %v2524 = vld [vmem:[#allocation2 + $0x80] sm:$0xff]
    %v2525 = vld [vmem:[#allocation2 + $0x88] sm:$0xff]
    %v2526 = vld [vmem:[#allocation2 + $0x90] sm:$0xff]
    %v2527 = vld [vmem:[#allocation2 + $0x98] sm:$0xff]
    %v2528 = vadd.f32 %v2242, %v2524
    %v2529 = vadd.f32 %v2282, %v2525
    %v2530 = vadd.f32 %v2322, %v2526
    %v2531 = vadd.f32 %v2362, %v2527
    %v2532 = vxor.u32 %v2528, 2147483648
    %v2533 = vmul.f32 %v2532, 1.442695
    %v2534 = vpow.pop %v2533
    %v2535 = vadd.f32 %v2534, 1.0
    %v2536 = vrcp.pop %v2535
    %v2537 = vmul.f32 %v2535, %v2536
    %v2538 = vsub.f32 1.0, %v2537
    %v2539 = vmul.f32 %v2536, %v2538
    %v2540 = vadd.f32 %v2536, %v2539
    %vm2541 = vweird.f32 %v2535
    %vm2542 = vweird.f32 %v2536
    %vm2543 = vmor %vm2541, %vm2542
    %v2544 = vsel %vm2543, %v2536, %v2540
    %v2545 = vand.u32 2147483647, %v2535
    %vm2546 = vcmp.eq.f32.partialorder %v2545, 8.507059e+37
    %v2547 = vand.u32 %v2535, 2147483648
    %v2548 = vor.u32 1.1754944e-38, %v2547
    %v2549 = vsel %vm2546, %v2548, %v2544
    %v2550 = vmul.f32 1.0, %v2549
    %v2551 = vxor.u32 %v2529, 2147483648
    %v2552 = vmul.f32 %v2551, 1.442695
    %v2553 = vpow.pop %v2552
    %v2554 = vadd.f32 %v2553, 1.0
    %v2555 = vrcp.pop %v2554
    %v2556 = vmul.f32 %v2554, %v2555
    %v2557 = vsub.f32 1.0, %v2556
    %v2558 = vmul.f32 %v2555, %v2557
    %v2559 = vadd.f32 %v2555, %v2558
    %vm2560 = vweird.f32 %v2554
    %vm2561 = vweird.f32 %v2555
    %vm2562 = vmor %vm2560, %vm2561
    %v2563 = vsel %vm2562, %v2555, %v2559
    %v2564 = vand.u32 2147483647, %v2554
    %vm2565 = vcmp.eq.f32.partialorder %v2564, 8.507059e+37
    %v2566 = vand.u32 %v2554, 2147483648
    %v2567 = vor.u32 1.1754944e-38, %v2566
    %v2568 = vsel %vm2565, %v2567, %v2563
    %v2569 = vmul.f32 1.0, %v2568
    %v2570 = vtanh.pop %v2530
    %v2571 = vxor.u32 %v2531, 2147483648
    %v2572 = vmul.f32 %v2571, 1.442695
    %v2573 = vpow.pop %v2572
    %v2574 = vadd.f32 %v2573, 1.0
    %v2575 = vrcp.pop %v2574
    %v2576 = vmul.f32 %v2574, %v2575
    %v2577 = vsub.f32 1.0, %v2576
    %v2578 = vmul.f32 %v2575, %v2577
    %v2579 = vadd.f32 %v2575, %v2578
    %vm2580 = vweird.f32 %v2574
    %vm2581 = vweird.f32 %v2575
    %vm2582 = vmor %vm2580, %vm2581
    %v2583 = vsel %vm2582, %v2575, %v2579
    %v2584 = vand.u32 2147483647, %v2574
    %vm2585 = vcmp.eq.f32.partialorder %v2584, 8.507059e+37
    %v2586 = vand.u32 %v2574, 2147483648
    %v2587 = vor.u32 1.1754944e-38, %v2586
    %v2588 = vsel %vm2585, %v2587, %v2583
    %v2589 = vmul.f32 1.0, %v2588
    %v2590 = vmul.f32 %v2569, %v2137
    %v2591 = vmul.f32 %v2550, %v2570
    %v2592 = vadd.f32 %v2590, %v2591
    %v2593 = vtanh.pop %v2592
    %v2594 = vmul.f32 %v2589, %v2593
    %v2595 = vxor.u32 %v2402, 2147483648
    %v2596 = vmul.f32 %v2595, 1.442695
    %v2597 = vpow.pop %v2596
    %v2598 = vadd.f32 %v2597, 1.0
    %v2599 = vrcp.pop %v2598
    %v2600 = vmul.f32 %v2598, %v2599
    %v2601 = vsub.f32 1.0, %v2600
    %v2602 = vmul.f32 %v2599, %v2601
    %v2603 = vadd.f32 %v2599, %v2602
    %vm2604 = vweird.f32 %v2598
    %vm2605 = vweird.f32 %v2599
    %vm2606 = vmor %vm2604, %vm2605
    %v2607 = vsel %vm2606, %v2599, %v2603
    %v2608 = vand.u32 2147483647, %v2598
    %vm2609 = vcmp.eq.f32.partialorder %v2608, 8.507059e+37
    %v2610 = vand.u32 %v2598, 2147483648
    %v2611 = vor.u32 1.1754944e-38, %v2610
    %v2612 = vsel %vm2609, %v2611, %v2607
    %v2613 = vmul.f32 1.0, %v2612
    %v2614 = vxor.u32 %v2442, 2147483648
    %v2615 = vmul.f32 %v2614, 1.442695
    %v2616 = vpow.pop %v2615
    %v2617 = vadd.f32 %v2616, 1.0
    %v2618 = vrcp.pop %v2617
    %v2619 = vmul.f32 %v2617, %v2618
    %v2620 = vsub.f32 1.0, %v2619
    %v2621 = vmul.f32 %v2618, %v2620
    %v2622 = vadd.f32 %v2618, %v2621
    %vm2623 = vweird.f32 %v2617
    %vm2624 = vweird.f32 %v2618
    %vm2625 = vmor %vm2623, %vm2624
    %v2626 = vsel %vm2625, %v2618, %v2622
    %v2627 = vand.u32 2147483647, %v2617
    %vm2628 = vcmp.eq.f32.partialorder %v2627, 8.507059e+37
    %v2629 = vand.u32 %v2617, 2147483648
    %v2630 = vor.u32 1.1754944e-38, %v2629
    %v2631 = vsel %vm2628, %v2630, %v2626
    %v2632 = vmul.f32 1.0, %v2631
    %v2633 = vtanh.pop %v2482
    %v2634 = vxor.u32 %v2522, 2147483648
    %v2635 = vmul.f32 %v2634, 1.442695
    %v2636 = vpow.pop %v2635
    %v2637 = vadd.f32 %v2636, 1.0
    %v2638 = vrcp.pop %v2637
    %v2639 = vmul.f32 %v2637, %v2638
    %v2640 = vsub.f32 1.0, %v2639
    %v2641 = vmul.f32 %v2638, %v2640
    %v2642 = vadd.f32 %v2638, %v2641
    %vm2643 = vweird.f32 %v2637
    %vm2644 = vweird.f32 %v2638
    %vm2645 = vmor %vm2643, %vm2644
    %v2646 = vsel %vm2645, %v2638, %v2642
    %v2647 = vand.u32 2147483647, %v2637
    %vm2648 = vcmp.eq.f32.partialorder %v2647, 8.507059e+37
    %v2649 = vand.u32 %v2637, 2147483648
    %v2650 = vor.u32 1.1754944e-38, %v2649
    %v2651 = vsel %vm2648, %v2650, %v2646
    %v2652 = vmul.f32 1.0, %v2651
    %v2653 = vmul.f32 %v2632, %v2200
    %v2654 = vmul.f32 %v2613, %v2633
    %v2655 = vadd.f32 %v2653, %v2654
    %v2656 = vtanh.pop %v2655
    %v2657 = vmul.f32 %v2652, %v2656
    %2658 = vst [vmem:[#allocation3 + $0x18] sm:$0xff] %v2657
    %2659 = vmatpush.msra.mxu0 %v454
    %2660 = vmatpush.msra.mxu0 %v446
    %2661 = vmatpush.msra.mxu0 %v438
    %2662 = vmatpush.msra.mxu0 %v430
    %2663 = vmatpush.msra.mxu0 %v422
    %2664 = vmatpush.msra.mxu0 %v414
    %2665 = vmatpush.msra.mxu0 %v406
    %2666 = vmatpush.msra.mxu0 %v398
    %2667 = vmatpush.msra.mxu0 %v390
    %2668 = vmatpush.msra.mxu0 %v382
    %2669 = vmatpush.msra.mxu0 %v374
    %2670 = vmatpush.msra.mxu0 %v366
    %2671 = vmatpush.msra.mxu0 %v358
    %2672 = vmatpush.msra.mxu0 %v350
    %2673 = vmatpush.msra.mxu0 %v342
    %2674 = vmatpush.msra.mxu0 %v334
    %2675 = vmatmul.f32.gmra.mxu0 %v2594
    %v2676 = vpop.f32.mrf.mxu0
    %v2677 = vadd.f32 %v592, %v2676
    %2678 = vdwg.mxu0
    %2679 = vmatpush.msra.mxu0 %v582
    %2680 = vmatpush.msra.mxu0 %v574
    %2681 = vmatpush.msra.mxu0 %v566
    %2682 = vmatpush.msra.mxu0 %v558
    %2683 = vmatpush.msra.mxu0 %v550
    %2684 = vmatpush.msra.mxu0 %v542
    %2685 = vmatpush.msra.mxu0 %v534
    %2686 = vmatpush.msra.mxu0 %v526
    %2687 = vmatpush.msra.mxu0 %v518
    %2688 = vmatpush.msra.mxu0 %v510
    %2689 = vmatpush.msra.mxu0 %v502
    %2690 = vmatpush.msra.mxu0 %v494
    %2691 = vmatpush.msra.mxu0 %v486
    %2692 = vmatpush.msra.mxu0 %v478
    %2693 = vmatpush.msra.mxu0 %v470
    %2694 = vmatpush.msra.mxu0 %v462
    %2695 = vmatmul.f32.gmra.mxu0 %v2657
    %v2696 = vpop.f32.mrf.mxu0
    %v2697 = vadd.f32 %v2677, %v2696
    %2698 = vdwg.mxu0
    %2699 = vmatpush.msra.mxu0 %v455
    %2700 = vmatpush.msra.mxu0 %v447
    %2701 = vmatpush.msra.mxu0 %v439
    %2702 = vmatpush.msra.mxu0 %v431
    %2703 = vmatpush.msra.mxu0 %v423
    %2704 = vmatpush.msra.mxu0 %v415
    %2705 = vmatpush.msra.mxu0 %v407
    %2706 = vmatpush.msra.mxu0 %v399
    %2707 = vmatpush.msra.mxu0 %v391
    %2708 = vmatpush.msra.mxu0 %v383
    %2709 = vmatpush.msra.mxu0 %v375
    %2710 = vmatpush.msra.mxu0 %v367
    %2711 = vmatpush.msra.mxu0 %v359
    %2712 = vmatpush.msra.mxu0 %v351
    %2713 = vmatpush.msra.mxu0 %v343
    %2714 = vmatpush.msra.mxu0 %v335
    %2715 = vmatmul.f32.gmra.mxu0 %v2594
    %v2716 = vpop.f32.mrf.mxu0
    %v2717 = vadd.f32 %v593, %v2716
    %2718 = vdwg.mxu0
    %2719 = vmatpush.msra.mxu0 %v583
    %2720 = vmatpush.msra.mxu0 %v575
    %2721 = vmatpush.msra.mxu0 %v567
    %2722 = vmatpush.msra.mxu0 %v559
    %2723 = vmatpush.msra.mxu0 %v551
    %2724 = vmatpush.msra.mxu0 %v543
    %2725 = vmatpush.msra.mxu0 %v535
    %2726 = vmatpush.msra.mxu0 %v527
    %2727 = vmatpush.msra.mxu0 %v519
    %2728 = vmatpush.msra.mxu0 %v511
    %2729 = vmatpush.msra.mxu0 %v503
    %2730 = vmatpush.msra.mxu0 %v495
    %2731 = vmatpush.msra.mxu0 %v487
    %2732 = vmatpush.msra.mxu0 %v479
    %2733 = vmatpush.msra.mxu0 %v471
    %2734 = vmatpush.msra.mxu0 %v463
    %2735 = vmatmul.f32.gmra.mxu0 %v2657
    %v2736 = vpop.f32.mrf.mxu0
    %v2737 = vadd.f32 %v2717, %v2736
    %2738 = vdwg.mxu0
    %2739 = vmatpush.msra.mxu0 %v456
    %2740 = vmatpush.msra.mxu0 %v448
    %2741 = vmatpush.msra.mxu0 %v440
    %2742 = vmatpush.msra.mxu0 %v432
    %2743 = vmatpush.msra.mxu0 %v424
    %2744 = vmatpush.msra.mxu0 %v416
    %2745 = vmatpush.msra.mxu0 %v408
    %2746 = vmatpush.msra.mxu0 %v400
    %2747 = vmatpush.msra.mxu0 %v392
    %2748 = vmatpush.msra.mxu0 %v384
    %2749 = vmatpush.msra.mxu0 %v376
    %2750 = vmatpush.msra.mxu0 %v368
    %2751 = vmatpush.msra.mxu0 %v360
    %2752 = vmatpush.msra.mxu0 %v352
    %2753 = vmatpush.msra.mxu0 %v344
    %2754 = vmatpush.msra.mxu0 %v336
    %2755 = vmatmul.f32.gmra.mxu0 %v2594
    %v2756 = vpop.f32.mrf.mxu0
    %v2757 = vadd.f32 %v594, %v2756
    %2758 = vdwg.mxu0
    %2759 = vmatpush.msra.mxu0 %v584
    %2760 = vmatpush.msra.mxu0 %v576
    %2761 = vmatpush.msra.mxu0 %v568
    %2762 = vmatpush.msra.mxu0 %v560
    %2763 = vmatpush.msra.mxu0 %v552
    %2764 = vmatpush.msra.mxu0 %v544
    %2765 = vmatpush.msra.mxu0 %v536
    %2766 = vmatpush.msra.mxu0 %v528
    %2767 = vmatpush.msra.mxu0 %v520
    %2768 = vmatpush.msra.mxu0 %v512
    %2769 = vmatpush.msra.mxu0 %v504
    %2770 = vmatpush.msra.mxu0 %v496
    %2771 = vmatpush.msra.mxu0 %v488
    %2772 = vmatpush.msra.mxu0 %v480
    %2773 = vmatpush.msra.mxu0 %v472
    %2774 = vmatpush.msra.mxu0 %v464
    %2775 = vmatmul.f32.gmra.mxu0 %v2657
    %v2776 = vpop.f32.mrf.mxu0
    %v2777 = vadd.f32 %v2757, %v2776
    %2778 = vdwg.mxu0
    %2779 = vmatpush.msra.mxu0 %v457
    %2780 = vmatpush.msra.mxu0 %v449
    %2781 = vmatpush.msra.mxu0 %v441
    %2782 = vmatpush.msra.mxu0 %v433
    %2783 = vmatpush.msra.mxu0 %v425
    %2784 = vmatpush.msra.mxu0 %v417
    %2785 = vmatpush.msra.mxu0 %v409
    %2786 = vmatpush.msra.mxu0 %v401
    %2787 = vmatpush.msra.mxu0 %v393
    %2788 = vmatpush.msra.mxu0 %v385
    %2789 = vmatpush.msra.mxu0 %v377
    %2790 = vmatpush.msra.mxu0 %v369
    %2791 = vmatpush.msra.mxu0 %v361
    %2792 = vmatpush.msra.mxu0 %v353
    %2793 = vmatpush.msra.mxu0 %v345
    %2794 = vmatpush.msra.mxu0 %v337
    %2795 = vmatmul.f32.gmra.mxu0 %v2594
    %v2796 = vpop.f32.mrf.mxu0
    %v2797 = vadd.f32 %v595, %v2796
    %2798 = vdwg.mxu0
    %2799 = vmatpush.msra.mxu0 %v585
    %2800 = vmatpush.msra.mxu0 %v577
    %2801 = vmatpush.msra.mxu0 %v569
    %2802 = vmatpush.msra.mxu0 %v561
    %2803 = vmatpush.msra.mxu0 %v553
    %2804 = vmatpush.msra.mxu0 %v545
    %2805 = vmatpush.msra.mxu0 %v537
    %2806 = vmatpush.msra.mxu0 %v529
    %2807 = vmatpush.msra.mxu0 %v521
    %2808 = vmatpush.msra.mxu0 %v513
    %2809 = vmatpush.msra.mxu0 %v505
    %2810 = vmatpush.msra.mxu0 %v497
    %2811 = vmatpush.msra.mxu0 %v489
    %2812 = vmatpush.msra.mxu0 %v481
    %2813 = vmatpush.msra.mxu0 %v473
    %2814 = vmatpush.msra.mxu0 %v465
    %2815 = vmatmul.f32.gmra.mxu0 %v2657
    %v2816 = vpop.f32.mrf.mxu0
    %v2817 = vadd.f32 %v2797, %v2816
    %2818 = vdwg.mxu0
    %2819 = vmatpush.msra.mxu0 %v458
    %2820 = vmatpush.msra.mxu0 %v450
    %2821 = vmatpush.msra.mxu0 %v442
    %2822 = vmatpush.msra.mxu0 %v434
    %2823 = vmatpush.msra.mxu0 %v426
    %2824 = vmatpush.msra.mxu0 %v418
    %2825 = vmatpush.msra.mxu0 %v410
    %2826 = vmatpush.msra.mxu0 %v402
    %2827 = vmatpush.msra.mxu0 %v394
    %2828 = vmatpush.msra.mxu0 %v386
    %2829 = vmatpush.msra.mxu0 %v378
    %2830 = vmatpush.msra.mxu0 %v370
    %2831 = vmatpush.msra.mxu0 %v362
    %2832 = vmatpush.msra.mxu0 %v354
    %2833 = vmatpush.msra.mxu0 %v346
    %2834 = vmatpush.msra.mxu0 %v338
    %2835 = vmatmul.f32.gmra.mxu0 %v2594
    %v2836 = vpop.f32.mrf.mxu0
    %v2837 = vadd.f32 %v596, %v2836
    %2838 = vdwg.mxu0
    %2839 = vmatpush.msra.mxu0 %v586
    %2840 = vmatpush.msra.mxu0 %v578
    %2841 = vmatpush.msra.mxu0 %v570
    %2842 = vmatpush.msra.mxu0 %v562
    %2843 = vmatpush.msra.mxu0 %v554
    %2844 = vmatpush.msra.mxu0 %v546
    %2845 = vmatpush.msra.mxu0 %v538
    %2846 = vmatpush.msra.mxu0 %v530
    %2847 = vmatpush.msra.mxu0 %v522
    %2848 = vmatpush.msra.mxu0 %v514
    %2849 = vmatpush.msra.mxu0 %v506
    %2850 = vmatpush.msra.mxu0 %v498
    %2851 = vmatpush.msra.mxu0 %v490
    %2852 = vmatpush.msra.mxu0 %v482
    %2853 = vmatpush.msra.mxu0 %v474
    %2854 = vmatpush.msra.mxu0 %v466
    %2855 = vmatmul.f32.gmra.mxu0 %v2657
    %v2856 = vpop.f32.mrf.mxu0
    %v2857 = vadd.f32 %v2837, %v2856
    %2858 = vdwg.mxu0
    %2859 = vmatpush.msra.mxu0 %v459
    %2860 = vmatpush.msra.mxu0 %v451
    %2861 = vmatpush.msra.mxu0 %v443
    %2862 = vmatpush.msra.mxu0 %v435
    %2863 = vmatpush.msra.mxu0 %v427
    %2864 = vmatpush.msra.mxu0 %v419
    %2865 = vmatpush.msra.mxu0 %v411
    %2866 = vmatpush.msra.mxu0 %v403
    %2867 = vmatpush.msra.mxu0 %v395
    %2868 = vmatpush.msra.mxu0 %v387
    %2869 = vmatpush.msra.mxu0 %v379
    %2870 = vmatpush.msra.mxu0 %v371
    %2871 = vmatpush.msra.mxu0 %v363
    %2872 = vmatpush.msra.mxu0 %v355
    %2873 = vmatpush.msra.mxu0 %v347
    %2874 = vmatpush.msra.mxu0 %v339
    %2875 = vmatmul.f32.gmra.mxu0 %v2594
    %v2876 = vpop.f32.mrf.mxu0
    %v2877 = vadd.f32 %v597, %v2876
    %2878 = vdwg.mxu0
    %2879 = vmatpush.msra.mxu0 %v587
    %2880 = vmatpush.msra.mxu0 %v579
    %2881 = vmatpush.msra.mxu0 %v571
    %2882 = vmatpush.msra.mxu0 %v563
    %2883 = vmatpush.msra.mxu0 %v555
    %2884 = vmatpush.msra.mxu0 %v547
    %2885 = vmatpush.msra.mxu0 %v539
    %2886 = vmatpush.msra.mxu0 %v531
    %2887 = vmatpush.msra.mxu0 %v523
    %2888 = vmatpush.msra.mxu0 %v515
    %2889 = vmatpush.msra.mxu0 %v507
    %2890 = vmatpush.msra.mxu0 %v499
    %2891 = vmatpush.msra.mxu0 %v491
    %2892 = vmatpush.msra.mxu0 %v483
    %2893 = vmatpush.msra.mxu0 %v475
    %2894 = vmatpush.msra.mxu0 %v467
    %2895 = vmatmul.f32.gmra.mxu0 %v2657
    %v2896 = vpop.f32.mrf.mxu0
    %v2897 = vadd.f32 %v2877, %v2896
    %2898 = vdwg.mxu0
    %2899 = vmatpush.msra.mxu0 %v460
    %2900 = vmatpush.msra.mxu0 %v452
    %2901 = vmatpush.msra.mxu0 %v444
    %2902 = vmatpush.msra.mxu0 %v436
    %2903 = vmatpush.msra.mxu0 %v428
    %2904 = vmatpush.msra.mxu0 %v420
    %2905 = vmatpush.msra.mxu0 %v412
    %2906 = vmatpush.msra.mxu0 %v404
    %2907 = vmatpush.msra.mxu0 %v396
    %2908 = vmatpush.msra.mxu0 %v388
    %2909 = vmatpush.msra.mxu0 %v380
    %2910 = vmatpush.msra.mxu0 %v372
    %2911 = vmatpush.msra.mxu0 %v364
    %2912 = vmatpush.msra.mxu0 %v356
    %2913 = vmatpush.msra.mxu0 %v348
    %2914 = vmatpush.msra.mxu0 %v340
    %2915 = vmatmul.f32.gmra.mxu0 %v2594
    %v2916 = vpop.f32.mrf.mxu0
    %v2917 = vadd.f32 %v598, %v2916
    %2918 = vdwg.mxu0
    %2919 = vmatpush.msra.mxu0 %v588
    %2920 = vmatpush.msra.mxu0 %v580
    %2921 = vmatpush.msra.mxu0 %v572
    %2922 = vmatpush.msra.mxu0 %v564
    %2923 = vmatpush.msra.mxu0 %v556
    %2924 = vmatpush.msra.mxu0 %v548
    %2925 = vmatpush.msra.mxu0 %v540
    %2926 = vmatpush.msra.mxu0 %v532
    %2927 = vmatpush.msra.mxu0 %v524
    %2928 = vmatpush.msra.mxu0 %v516
    %2929 = vmatpush.msra.mxu0 %v508
    %2930 = vmatpush.msra.mxu0 %v500
    %2931 = vmatpush.msra.mxu0 %v492
    %2932 = vmatpush.msra.mxu0 %v484
    %2933 = vmatpush.msra.mxu0 %v476
    %2934 = vmatpush.msra.mxu0 %v468
    %2935 = vmatmul.f32.gmra.mxu0 %v2657
    %v2936 = vpop.f32.mrf.mxu0
    %v2937 = vadd.f32 %v2917, %v2936
    %2938 = vdwg.mxu0
    %2939 = vmatpush.msra.mxu0 %v461
    %2940 = vmatpush.msra.mxu0 %v453
    %2941 = vmatpush.msra.mxu0 %v445
    %2942 = vmatpush.msra.mxu0 %v437
    %2943 = vmatpush.msra.mxu0 %v429
    %2944 = vmatpush.msra.mxu0 %v421
    %2945 = vmatpush.msra.mxu0 %v413
    %2946 = vmatpush.msra.mxu0 %v405
    %2947 = vmatpush.msra.mxu0 %v397
    %2948 = vmatpush.msra.mxu0 %v389
    %2949 = vmatpush.msra.mxu0 %v381
    %2950 = vmatpush.msra.mxu0 %v373
    %2951 = vmatpush.msra.mxu0 %v365
    %2952 = vmatpush.msra.mxu0 %v357
    %2953 = vmatpush.msra.mxu0 %v349
    %2954 = vmatpush.msra.mxu0 %v341
    %2955 = vmatmul.f32.gmra.mxu0 %v2594
    %v2956 = vpop.f32.mrf.mxu0
    %v2957 = vadd.f32 %v599, %v2956
    %2958 = vdwg.mxu0
    %2959 = vmatpush.msra.mxu0 %v589
    %2960 = vmatpush.msra.mxu0 %v581
    %2961 = vmatpush.msra.mxu0 %v573
    %2962 = vmatpush.msra.mxu0 %v565
    %2963 = vmatpush.msra.mxu0 %v557
    %2964 = vmatpush.msra.mxu0 %v549
    %2965 = vmatpush.msra.mxu0 %v541
    %2966 = vmatpush.msra.mxu0 %v533
    %2967 = vmatpush.msra.mxu0 %v525
    %2968 = vmatpush.msra.mxu0 %v517
    %2969 = vmatpush.msra.mxu0 %v509
    %2970 = vmatpush.msra.mxu0 %v501
    %2971 = vmatpush.msra.mxu0 %v493
    %2972 = vmatpush.msra.mxu0 %v485
    %2973 = vmatpush.msra.mxu0 %v477
    %2974 = vmatpush.msra.mxu0 %v469
    %2975 = vmatmul.f32.gmra.mxu0 %v2657
    %v2976 = vpop.f32.mrf.mxu0
    %v2977 = vadd.f32 %v2957, %v2976
    %2978 = vdwg.mxu0
    %v2979 = vld [vmem:[#allocation2 + $0xa0] sm:$0xff]
    %v2980 = vld [vmem:[#allocation2 + $0xa8] sm:$0xff]
    %v2981 = vld [vmem:[#allocation2 + $0xb0] sm:$0xff]
    %v2982 = vld [vmem:[#allocation2 + $0xb8] sm:$0xff]
    %v2983 = vadd.f32 %v2697, %v2979
    %v2984 = vadd.f32 %v2737, %v2980
    %v2985 = vadd.f32 %v2777, %v2981
    %v2986 = vadd.f32 %v2817, %v2982
    %v2987 = vxor.u32 %v2983, 2147483648
    %v2988 = vmul.f32 %v2987, 1.442695
    %v2989 = vpow.pop %v2988
    %v2990 = vadd.f32 %v2989, 1.0
    %v2991 = vrcp.pop %v2990
    %v2992 = vmul.f32 %v2990, %v2991
    %v2993 = vsub.f32 1.0, %v2992
    %v2994 = vmul.f32 %v2991, %v2993
    %v2995 = vadd.f32 %v2991, %v2994
    %vm2996 = vweird.f32 %v2990
    %vm2997 = vweird.f32 %v2991
    %vm2998 = vmor %vm2996, %vm2997
    %v2999 = vsel %vm2998, %v2991, %v2995
    %v3000 = vand.u32 2147483647, %v2990
    %vm3001 = vcmp.eq.f32.partialorder %v3000, 8.507059e+37
    %v3002 = vand.u32 %v2990, 2147483648
    %v3003 = vor.u32 1.1754944e-38, %v3002
    %v3004 = vsel %vm3001, %v3003, %v2999
    %v3005 = vmul.f32 1.0, %v3004
    %v3006 = vxor.u32 %v2984, 2147483648
    %v3007 = vmul.f32 %v3006, 1.442695
    %v3008 = vpow.pop %v3007
    %v3009 = vadd.f32 %v3008, 1.0
    %v3010 = vrcp.pop %v3009
    %v3011 = vmul.f32 %v3009, %v3010
    %v3012 = vsub.f32 1.0, %v3011
    %v3013 = vmul.f32 %v3010, %v3012
    %v3014 = vadd.f32 %v3010, %v3013
    %vm3015 = vweird.f32 %v3009
    %vm3016 = vweird.f32 %v3010
    %vm3017 = vmor %vm3015, %vm3016
    %v3018 = vsel %vm3017, %v3010, %v3014
    %v3019 = vand.u32 2147483647, %v3009
    %vm3020 = vcmp.eq.f32.partialorder %v3019, 8.507059e+37
    %v3021 = vand.u32 %v3009, 2147483648
    %v3022 = vor.u32 1.1754944e-38, %v3021
    %v3023 = vsel %vm3020, %v3022, %v3018
    %v3024 = vmul.f32 1.0, %v3023
    %v3025 = vtanh.pop %v2985
    %v3026 = vxor.u32 %v2986, 2147483648
    %v3027 = vmul.f32 %v3026, 1.442695
    %v3028 = vpow.pop %v3027
    %v3029 = vadd.f32 %v3028, 1.0
    %v3030 = vrcp.pop %v3029
    %v3031 = vmul.f32 %v3029, %v3030
    %v3032 = vsub.f32 1.0, %v3031
    %v3033 = vmul.f32 %v3030, %v3032
    %v3034 = vadd.f32 %v3030, %v3033
    %vm3035 = vweird.f32 %v3029
    %vm3036 = vweird.f32 %v3030
    %vm3037 = vmor %vm3035, %vm3036
    %v3038 = vsel %vm3037, %v3030, %v3034
    %v3039 = vand.u32 2147483647, %v3029
    %vm3040 = vcmp.eq.f32.partialorder %v3039, 8.507059e+37
    %v3041 = vand.u32 %v3029, 2147483648
    %v3042 = vor.u32 1.1754944e-38, %v3041
    %v3043 = vsel %vm3040, %v3042, %v3038
    %v3044 = vmul.f32 1.0, %v3043
    %v3045 = vmul.f32 %v3024, %v2592
    %v3046 = vmul.f32 %v3005, %v3025
    %v3047 = vadd.f32 %v3045, %v3046
    %v3048 = vtanh.pop %v3047
    %v3049 = vmul.f32 %v3044, %v3048
    %v3050 = vxor.u32 %v2857, 2147483648
    %v3051 = vmul.f32 %v3050, 1.442695
    %v3052 = vpow.pop %v3051
    %v3053 = vadd.f32 %v3052, 1.0
    %v3054 = vrcp.pop %v3053
    %v3055 = vmul.f32 %v3053, %v3054
    %v3056 = vsub.f32 1.0, %v3055
    %v3057 = vmul.f32 %v3054, %v3056
    %v3058 = vadd.f32 %v3054, %v3057
    %vm3059 = vweird.f32 %v3053
    %vm3060 = vweird.f32 %v3054
    %vm3061 = vmor %vm3059, %vm3060
    %v3062 = vsel %vm3061, %v3054, %v3058
    %v3063 = vand.u32 2147483647, %v3053
    %vm3064 = vcmp.eq.f32.partialorder %v3063, 8.507059e+37
    %v3065 = vand.u32 %v3053, 2147483648
    %v3066 = vor.u32 1.1754944e-38, %v3065
    %v3067 = vsel %vm3064, %v3066, %v3062
    %v3068 = vmul.f32 1.0, %v3067
    %v3069 = vxor.u32 %v2897, 2147483648
    %v3070 = vmul.f32 %v3069, 1.442695
    %v3071 = vpow.pop %v3070
    %v3072 = vadd.f32 %v3071, 1.0
    %v3073 = vrcp.pop %v3072
    %v3074 = vmul.f32 %v3072, %v3073
    %v3075 = vsub.f32 1.0, %v3074
    %v3076 = vmul.f32 %v3073, %v3075
    %v3077 = vadd.f32 %v3073, %v3076
    %vm3078 = vweird.f32 %v3072
    %vm3079 = vweird.f32 %v3073
    %vm3080 = vmor %vm3078, %vm3079
    %v3081 = vsel %vm3080, %v3073, %v3077
    %v3082 = vand.u32 2147483647, %v3072
    %vm3083 = vcmp.eq.f32.partialorder %v3082, 8.507059e+37
    %v3084 = vand.u32 %v3072, 2147483648
    %v3085 = vor.u32 1.1754944e-38, %v3084
    %v3086 = vsel %vm3083, %v3085, %v3081
    %v3087 = vmul.f32 1.0, %v3086
    %v3088 = vtanh.pop %v2937
    %v3089 = vxor.u32 %v2977, 2147483648
    %v3090 = vmul.f32 %v3089, 1.442695
    %v3091 = vpow.pop %v3090
    %v3092 = vadd.f32 %v3091, 1.0
    %v3093 = vrcp.pop %v3092
    %v3094 = vmul.f32 %v3092, %v3093
    %v3095 = vsub.f32 1.0, %v3094
    %v3096 = vmul.f32 %v3093, %v3095
    %v3097 = vadd.f32 %v3093, %v3096
    %vm3098 = vweird.f32 %v3092
    %vm3099 = vweird.f32 %v3093
    %vm3100 = vmor %vm3098, %vm3099
    %v3101 = vsel %vm3100, %v3093, %v3097
    %v3102 = vand.u32 2147483647, %v3092
    %vm3103 = vcmp.eq.f32.partialorder %v3102, 8.507059e+37
    %v3104 = vand.u32 %v3092, 2147483648
    %v3105 = vor.u32 1.1754944e-38, %v3104
    %v3106 = vsel %vm3103, %v3105, %v3101
    %v3107 = vmul.f32 1.0, %v3106
    %v3108 = vmul.f32 %v3087, %v2655
    %v3109 = vmul.f32 %v3068, %v3088
    %v3110 = vadd.f32 %v3108, %v3109
    %v3111 = vtanh.pop %v3110
    %v3112 = vmul.f32 %v3107, %v3111
    %3113 = vst [vmem:[#allocation3 + $0x20] sm:$0xff] %v3112
    %3114 = vmatpush.msra.mxu0 %v454
    %3115 = vmatpush.msra.mxu0 %v446
    %3116 = vmatpush.msra.mxu0 %v438
    %3117 = vmatpush.msra.mxu0 %v430
    %3118 = vmatpush.msra.mxu0 %v422
    %3119 = vmatpush.msra.mxu0 %v414
    %3120 = vmatpush.msra.mxu0 %v406
    %3121 = vmatpush.msra.mxu0 %v398
    %3122 = vmatpush.msra.mxu0 %v390
    %3123 = vmatpush.msra.mxu0 %v382
    %3124 = vmatpush.msra.mxu0 %v374
    %3125 = vmatpush.msra.mxu0 %v366
    %3126 = vmatpush.msra.mxu0 %v358
    %3127 = vmatpush.msra.mxu0 %v350
    %3128 = vmatpush.msra.mxu0 %v342
    %3129 = vmatpush.msra.mxu0 %v334
    %3130 = vmatmul.f32.gmra.mxu0 %v3049
    %v3131 = vpop.f32.mrf.mxu0
    %v3132 = vadd.f32 %v592, %v3131
    %3133 = vdwg.mxu0
    %3134 = vmatpush.msra.mxu0 %v582
    %3135 = vmatpush.msra.mxu0 %v574
    %3136 = vmatpush.msra.mxu0 %v566
    %3137 = vmatpush.msra.mxu0 %v558
    %3138 = vmatpush.msra.mxu0 %v550
    %3139 = vmatpush.msra.mxu0 %v542
    %3140 = vmatpush.msra.mxu0 %v534
    %3141 = vmatpush.msra.mxu0 %v526
    %3142 = vmatpush.msra.mxu0 %v518
    %3143 = vmatpush.msra.mxu0 %v510
    %3144 = vmatpush.msra.mxu0 %v502
    %3145 = vmatpush.msra.mxu0 %v494
    %3146 = vmatpush.msra.mxu0 %v486
    %3147 = vmatpush.msra.mxu0 %v478
    %3148 = vmatpush.msra.mxu0 %v470
    %3149 = vmatpush.msra.mxu0 %v462
    %3150 = vmatmul.f32.gmra.mxu0 %v3112
    %v3151 = vpop.f32.mrf.mxu0
    %v3152 = vadd.f32 %v3132, %v3151
    %3153 = vdwg.mxu0
    %3154 = vmatpush.msra.mxu0 %v455
    %3155 = vmatpush.msra.mxu0 %v447
    %3156 = vmatpush.msra.mxu0 %v439
    %3157 = vmatpush.msra.mxu0 %v431
    %3158 = vmatpush.msra.mxu0 %v423
    %3159 = vmatpush.msra.mxu0 %v415
    %3160 = vmatpush.msra.mxu0 %v407
    %3161 = vmatpush.msra.mxu0 %v399
    %3162 = vmatpush.msra.mxu0 %v391
    %3163 = vmatpush.msra.mxu0 %v383
    %3164 = vmatpush.msra.mxu0 %v375
    %3165 = vmatpush.msra.mxu0 %v367
    %3166 = vmatpush.msra.mxu0 %v359
    %3167 = vmatpush.msra.mxu0 %v351
    %3168 = vmatpush.msra.mxu0 %v343
    %3169 = vmatpush.msra.mxu0 %v335
    %3170 = vmatmul.f32.gmra.mxu0 %v3049
    %v3171 = vpop.f32.mrf.mxu0
    %v3172 = vadd.f32 %v593, %v3171
    %3173 = vdwg.mxu0
    %3174 = vmatpush.msra.mxu0 %v583
    %3175 = vmatpush.msra.mxu0 %v575
    %3176 = vmatpush.msra.mxu0 %v567
    %3177 = vmatpush.msra.mxu0 %v559
    %3178 = vmatpush.msra.mxu0 %v551
    %3179 = vmatpush.msra.mxu0 %v543
    %3180 = vmatpush.msra.mxu0 %v535
    %3181 = vmatpush.msra.mxu0 %v527
    %3182 = vmatpush.msra.mxu0 %v519
    %3183 = vmatpush.msra.mxu0 %v511
    %3184 = vmatpush.msra.mxu0 %v503
    %3185 = vmatpush.msra.mxu0 %v495
    %3186 = vmatpush.msra.mxu0 %v487
    %3187 = vmatpush.msra.mxu0 %v479
    %3188 = vmatpush.msra.mxu0 %v471
    %3189 = vmatpush.msra.mxu0 %v463
    %3190 = vmatmul.f32.gmra.mxu0 %v3112
    %v3191 = vpop.f32.mrf.mxu0
    %v3192 = vadd.f32 %v3172, %v3191
    %3193 = vdwg.mxu0
    %3194 = vmatpush.msra.mxu0 %v456
    %3195 = vmatpush.msra.mxu0 %v448
    %3196 = vmatpush.msra.mxu0 %v440
    %3197 = vmatpush.msra.mxu0 %v432
    %3198 = vmatpush.msra.mxu0 %v424
    %3199 = vmatpush.msra.mxu0 %v416
    %3200 = vmatpush.msra.mxu0 %v408
    %3201 = vmatpush.msra.mxu0 %v400
    %3202 = vmatpush.msra.mxu0 %v392
    %3203 = vmatpush.msra.mxu0 %v384
    %3204 = vmatpush.msra.mxu0 %v376
    %3205 = vmatpush.msra.mxu0 %v368
    %3206 = vmatpush.msra.mxu0 %v360
    %3207 = vmatpush.msra.mxu0 %v352
    %3208 = vmatpush.msra.mxu0 %v344
    %3209 = vmatpush.msra.mxu0 %v336
    %3210 = vmatmul.f32.gmra.mxu0 %v3049
    %v3211 = vpop.f32.mrf.mxu0
    %v3212 = vadd.f32 %v594, %v3211
    %3213 = vdwg.mxu0
    %3214 = vmatpush.msra.mxu0 %v584
    %3215 = vmatpush.msra.mxu0 %v576
    %3216 = vmatpush.msra.mxu0 %v568
    %3217 = vmatpush.msra.mxu0 %v560
    %3218 = vmatpush.msra.mxu0 %v552
    %3219 = vmatpush.msra.mxu0 %v544
    %3220 = vmatpush.msra.mxu0 %v536
    %3221 = vmatpush.msra.mxu0 %v528
    %3222 = vmatpush.msra.mxu0 %v520
    %3223 = vmatpush.msra.mxu0 %v512
    %3224 = vmatpush.msra.mxu0 %v504
    %3225 = vmatpush.msra.mxu0 %v496
    %3226 = vmatpush.msra.mxu0 %v488
    %3227 = vmatpush.msra.mxu0 %v480
    %3228 = vmatpush.msra.mxu0 %v472
    %3229 = vmatpush.msra.mxu0 %v464
    %3230 = vmatmul.f32.gmra.mxu0 %v3112
    %v3231 = vpop.f32.mrf.mxu0
    %v3232 = vadd.f32 %v3212, %v3231
    %3233 = vdwg.mxu0
    %3234 = vmatpush.msra.mxu0 %v457
    %3235 = vmatpush.msra.mxu0 %v449
    %3236 = vmatpush.msra.mxu0 %v441
    %3237 = vmatpush.msra.mxu0 %v433
    %3238 = vmatpush.msra.mxu0 %v425
    %3239 = vmatpush.msra.mxu0 %v417
    %3240 = vmatpush.msra.mxu0 %v409
    %3241 = vmatpush.msra.mxu0 %v401
    %3242 = vmatpush.msra.mxu0 %v393
    %3243 = vmatpush.msra.mxu0 %v385
    %3244 = vmatpush.msra.mxu0 %v377
    %3245 = vmatpush.msra.mxu0 %v369
    %3246 = vmatpush.msra.mxu0 %v361
    %3247 = vmatpush.msra.mxu0 %v353
    %3248 = vmatpush.msra.mxu0 %v345
    %3249 = vmatpush.msra.mxu0 %v337
    %3250 = vmatmul.f32.gmra.mxu0 %v3049
    %v3251 = vpop.f32.mrf.mxu0
    %v3252 = vadd.f32 %v595, %v3251
    %3253 = vdwg.mxu0
    %3254 = vmatpush.msra.mxu0 %v585
    %3255 = vmatpush.msra.mxu0 %v577
    %3256 = vmatpush.msra.mxu0 %v569
    %3257 = vmatpush.msra.mxu0 %v561
    %3258 = vmatpush.msra.mxu0 %v553
    %3259 = vmatpush.msra.mxu0 %v545
    %3260 = vmatpush.msra.mxu0 %v537
    %3261 = vmatpush.msra.mxu0 %v529
    %3262 = vmatpush.msra.mxu0 %v521
    %3263 = vmatpush.msra.mxu0 %v513
    %3264 = vmatpush.msra.mxu0 %v505
    %3265 = vmatpush.msra.mxu0 %v497
    %3266 = vmatpush.msra.mxu0 %v489
    %3267 = vmatpush.msra.mxu0 %v481
    %3268 = vmatpush.msra.mxu0 %v473
    %3269 = vmatpush.msra.mxu0 %v465
    %3270 = vmatmul.f32.gmra.mxu0 %v3112
    %v3271 = vpop.f32.mrf.mxu0
    %v3272 = vadd.f32 %v3252, %v3271
    %3273 = vdwg.mxu0
    %3274 = vmatpush.msra.mxu0 %v458
    %3275 = vmatpush.msra.mxu0 %v450
    %3276 = vmatpush.msra.mxu0 %v442
    %3277 = vmatpush.msra.mxu0 %v434
    %3278 = vmatpush.msra.mxu0 %v426
    %3279 = vmatpush.msra.mxu0 %v418
    %3280 = vmatpush.msra.mxu0 %v410
    %3281 = vmatpush.msra.mxu0 %v402
    %3282 = vmatpush.msra.mxu0 %v394
    %3283 = vmatpush.msra.mxu0 %v386
    %3284 = vmatpush.msra.mxu0 %v378
    %3285 = vmatpush.msra.mxu0 %v370
    %3286 = vmatpush.msra.mxu0 %v362
    %3287 = vmatpush.msra.mxu0 %v354
    %3288 = vmatpush.msra.mxu0 %v346
    %3289 = vmatpush.msra.mxu0 %v338
    %3290 = vmatmul.f32.gmra.mxu0 %v3049
    %v3291 = vpop.f32.mrf.mxu0
    %v3292 = vadd.f32 %v596, %v3291
    %3293 = vdwg.mxu0
    %3294 = vmatpush.msra.mxu0 %v586
    %3295 = vmatpush.msra.mxu0 %v578
    %3296 = vmatpush.msra.mxu0 %v570
    %3297 = vmatpush.msra.mxu0 %v562
    %3298 = vmatpush.msra.mxu0 %v554
    %3299 = vmatpush.msra.mxu0 %v546
    %3300 = vmatpush.msra.mxu0 %v538
    %3301 = vmatpush.msra.mxu0 %v530
    %3302 = vmatpush.msra.mxu0 %v522
    %3303 = vmatpush.msra.mxu0 %v514
    %3304 = vmatpush.msra.mxu0 %v506
    %3305 = vmatpush.msra.mxu0 %v498
    %3306 = vmatpush.msra.mxu0 %v490
    %3307 = vmatpush.msra.mxu0 %v482
    %3308 = vmatpush.msra.mxu0 %v474
    %3309 = vmatpush.msra.mxu0 %v466
    %3310 = vmatmul.f32.gmra.mxu0 %v3112
    %v3311 = vpop.f32.mrf.mxu0
    %v3312 = vadd.f32 %v3292, %v3311
    %3313 = vdwg.mxu0
    %3314 = vmatpush.msra.mxu0 %v459
    %3315 = vmatpush.msra.mxu0 %v451
    %3316 = vmatpush.msra.mxu0 %v443
    %3317 = vmatpush.msra.mxu0 %v435
    %3318 = vmatpush.msra.mxu0 %v427
    %3319 = vmatpush.msra.mxu0 %v419
    %3320 = vmatpush.msra.mxu0 %v411
    %3321 = vmatpush.msra.mxu0 %v403
    %3322 = vmatpush.msra.mxu0 %v395
    %3323 = vmatpush.msra.mxu0 %v387
    %3324 = vmatpush.msra.mxu0 %v379
    %3325 = vmatpush.msra.mxu0 %v371
    %3326 = vmatpush.msra.mxu0 %v363
    %3327 = vmatpush.msra.mxu0 %v355
    %3328 = vmatpush.msra.mxu0 %v347
    %3329 = vmatpush.msra.mxu0 %v339
    %3330 = vmatmul.f32.gmra.mxu0 %v3049
    %v3331 = vpop.f32.mrf.mxu0
    %v3332 = vadd.f32 %v597, %v3331
    %3333 = vdwg.mxu0
    %3334 = vmatpush.msra.mxu0 %v587
    %3335 = vmatpush.msra.mxu0 %v579
    %3336 = vmatpush.msra.mxu0 %v571
    %3337 = vmatpush.msra.mxu0 %v563
    %3338 = vmatpush.msra.mxu0 %v555
    %3339 = vmatpush.msra.mxu0 %v547
    %3340 = vmatpush.msra.mxu0 %v539
    %3341 = vmatpush.msra.mxu0 %v531
    %3342 = vmatpush.msra.mxu0 %v523
    %3343 = vmatpush.msra.mxu0 %v515
    %3344 = vmatpush.msra.mxu0 %v507
    %3345 = vmatpush.msra.mxu0 %v499
    %3346 = vmatpush.msra.mxu0 %v491
    %3347 = vmatpush.msra.mxu0 %v483
    %3348 = vmatpush.msra.mxu0 %v475
    %3349 = vmatpush.msra.mxu0 %v467
    %3350 = vmatmul.f32.gmra.mxu0 %v3112
    %v3351 = vpop.f32.mrf.mxu0
    %v3352 = vadd.f32 %v3332, %v3351
    %3353 = vdwg.mxu0
    %3354 = vmatpush.msra.mxu0 %v460
    %3355 = vmatpush.msra.mxu0 %v452
    %3356 = vmatpush.msra.mxu0 %v444
    %3357 = vmatpush.msra.mxu0 %v436
    %3358 = vmatpush.msra.mxu0 %v428
    %3359 = vmatpush.msra.mxu0 %v420
    %3360 = vmatpush.msra.mxu0 %v412
    %3361 = vmatpush.msra.mxu0 %v404
    %3362 = vmatpush.msra.mxu0 %v396
    %3363 = vmatpush.msra.mxu0 %v388
    %3364 = vmatpush.msra.mxu0 %v380
    %3365 = vmatpush.msra.mxu0 %v372
    %3366 = vmatpush.msra.mxu0 %v364
    %3367 = vmatpush.msra.mxu0 %v356
    %3368 = vmatpush.msra.mxu0 %v348
    %3369 = vmatpush.msra.mxu0 %v340
    %3370 = vmatmul.f32.gmra.mxu0 %v3049
    %v3371 = vpop.f32.mrf.mxu0
    %v3372 = vadd.f32 %v598, %v3371
    %3373 = vdwg.mxu0
    %3374 = vmatpush.msra.mxu0 %v588
    %3375 = vmatpush.msra.mxu0 %v580
    %3376 = vmatpush.msra.mxu0 %v572
    %3377 = vmatpush.msra.mxu0 %v564
    %3378 = vmatpush.msra.mxu0 %v556
    %3379 = vmatpush.msra.mxu0 %v548
    %3380 = vmatpush.msra.mxu0 %v540
    %3381 = vmatpush.msra.mxu0 %v532
    %3382 = vmatpush.msra.mxu0 %v524
    %3383 = vmatpush.msra.mxu0 %v516
    %3384 = vmatpush.msra.mxu0 %v508
    %3385 = vmatpush.msra.mxu0 %v500
    %3386 = vmatpush.msra.mxu0 %v492
    %3387 = vmatpush.msra.mxu0 %v484
    %3388 = vmatpush.msra.mxu0 %v476
    %3389 = vmatpush.msra.mxu0 %v468
    %3390 = vmatmul.f32.gmra.mxu0 %v3112
    %v3391 = vpop.f32.mrf.mxu0
    %v3392 = vadd.f32 %v3372, %v3391
    %3393 = vdwg.mxu0
    %3394 = vmatpush.msra.mxu0 %v461
    %3395 = vmatpush.msra.mxu0 %v453
    %3396 = vmatpush.msra.mxu0 %v445
    %3397 = vmatpush.msra.mxu0 %v437
    %3398 = vmatpush.msra.mxu0 %v429
    %3399 = vmatpush.msra.mxu0 %v421
    %3400 = vmatpush.msra.mxu0 %v413
    %3401 = vmatpush.msra.mxu0 %v405
    %3402 = vmatpush.msra.mxu0 %v397
    %3403 = vmatpush.msra.mxu0 %v389
    %3404 = vmatpush.msra.mxu0 %v381
    %3405 = vmatpush.msra.mxu0 %v373
    %3406 = vmatpush.msra.mxu0 %v365
    %3407 = vmatpush.msra.mxu0 %v357
    %3408 = vmatpush.msra.mxu0 %v349
    %3409 = vmatpush.msra.mxu0 %v341
    %3410 = vmatmul.f32.gmra.mxu0 %v3049
    %v3411 = vpop.f32.mrf.mxu0
    %v3412 = vadd.f32 %v599, %v3411
    %3413 = vdwg.mxu0
    %3414 = vmatpush.msra.mxu0 %v589
    %3415 = vmatpush.msra.mxu0 %v581
    %3416 = vmatpush.msra.mxu0 %v573
    %3417 = vmatpush.msra.mxu0 %v565
    %3418 = vmatpush.msra.mxu0 %v557
    %3419 = vmatpush.msra.mxu0 %v549
    %3420 = vmatpush.msra.mxu0 %v541
    %3421 = vmatpush.msra.mxu0 %v533
    %3422 = vmatpush.msra.mxu0 %v525
    %3423 = vmatpush.msra.mxu0 %v517
    %3424 = vmatpush.msra.mxu0 %v509
    %3425 = vmatpush.msra.mxu0 %v501
    %3426 = vmatpush.msra.mxu0 %v493
    %3427 = vmatpush.msra.mxu0 %v485
    %3428 = vmatpush.msra.mxu0 %v477
    %3429 = vmatpush.msra.mxu0 %v469
    %3430 = vmatmul.f32.gmra.mxu0 %v3112
    %v3431 = vpop.f32.mrf.mxu0
    %v3432 = vadd.f32 %v3412, %v3431
    %3433 = vdwg.mxu0
    %v3434 = vld [vmem:[#allocation2 + $0xc0] sm:$0xff]
    %v3435 = vld [vmem:[#allocation2 + $0xc8] sm:$0xff]
    %v3436 = vld [vmem:[#allocation2 + $0xd0] sm:$0xff]
    %v3437 = vld [vmem:[#allocation2 + $0xd8] sm:$0xff]
    %v3438 = vadd.f32 %v3152, %v3434
    %v3439 = vadd.f32 %v3192, %v3435
    %v3440 = vadd.f32 %v3232, %v3436
    %v3441 = vadd.f32 %v3272, %v3437
    %v3442 = vxor.u32 %v3438, 2147483648
    %v3443 = vmul.f32 %v3442, 1.442695
    %v3444 = vpow.pop %v3443
    %v3445 = vadd.f32 %v3444, 1.0
    %v3446 = vrcp.pop %v3445
    %v3447 = vmul.f32 %v3445, %v3446
    %v3448 = vsub.f32 1.0, %v3447
    %v3449 = vmul.f32 %v3446, %v3448
    %v3450 = vadd.f32 %v3446, %v3449
    %vm3451 = vweird.f32 %v3445
    %vm3452 = vweird.f32 %v3446
    %vm3453 = vmor %vm3451, %vm3452
    %v3454 = vsel %vm3453, %v3446, %v3450
    %v3455 = vand.u32 2147483647, %v3445
    %vm3456 = vcmp.eq.f32.partialorder %v3455, 8.507059e+37
    %v3457 = vand.u32 %v3445, 2147483648
    %v3458 = vor.u32 1.1754944e-38, %v3457
    %v3459 = vsel %vm3456, %v3458, %v3454
    %v3460 = vmul.f32 1.0, %v3459
    %v3461 = vxor.u32 %v3439, 2147483648
    %v3462 = vmul.f32 %v3461, 1.442695
    %v3463 = vpow.pop %v3462
    %v3464 = vadd.f32 %v3463, 1.0
    %v3465 = vrcp.pop %v3464
    %v3466 = vmul.f32 %v3464, %v3465
    %v3467 = vsub.f32 1.0, %v3466
    %v3468 = vmul.f32 %v3465, %v3467
    %v3469 = vadd.f32 %v3465, %v3468
    %vm3470 = vweird.f32 %v3464
    %vm3471 = vweird.f32 %v3465
    %vm3472 = vmor %vm3470, %vm3471
    %v3473 = vsel %vm3472, %v3465, %v3469
    %v3474 = vand.u32 2147483647, %v3464
    %vm3475 = vcmp.eq.f32.partialorder %v3474, 8.507059e+37
    %v3476 = vand.u32 %v3464, 2147483648
    %v3477 = vor.u32 1.1754944e-38, %v3476
    %v3478 = vsel %vm3475, %v3477, %v3473
    %v3479 = vmul.f32 1.0, %v3478
    %v3480 = vtanh.pop %v3440
    %v3481 = vxor.u32 %v3441, 2147483648
    %v3482 = vmul.f32 %v3481, 1.442695
    %v3483 = vpow.pop %v3482
    %v3484 = vadd.f32 %v3483, 1.0
    %v3485 = vrcp.pop %v3484
    %v3486 = vmul.f32 %v3484, %v3485
    %v3487 = vsub.f32 1.0, %v3486
    %v3488 = vmul.f32 %v3485, %v3487
    %v3489 = vadd.f32 %v3485, %v3488
    %vm3490 = vweird.f32 %v3484
    %vm3491 = vweird.f32 %v3485
    %vm3492 = vmor %vm3490, %vm3491
    %v3493 = vsel %vm3492, %v3485, %v3489
    %v3494 = vand.u32 2147483647, %v3484
    %vm3495 = vcmp.eq.f32.partialorder %v3494, 8.507059e+37
    %v3496 = vand.u32 %v3484, 2147483648
    %v3497 = vor.u32 1.1754944e-38, %v3496
    %v3498 = vsel %vm3495, %v3497, %v3493
    %v3499 = vmul.f32 1.0, %v3498
    %v3500 = vmul.f32 %v3479, %v3047
    %v3501 = vmul.f32 %v3460, %v3480
    %v3502 = vadd.f32 %v3500, %v3501
    %v3503 = vtanh.pop %v3502
    %v3504 = vmul.f32 %v3499, %v3503
    %v3505 = vxor.u32 %v3312, 2147483648
    %v3506 = vmul.f32 %v3505, 1.442695
    %v3507 = vpow.pop %v3506
    %v3508 = vadd.f32 %v3507, 1.0
    %v3509 = vrcp.pop %v3508
    %v3510 = vmul.f32 %v3508, %v3509
    %v3511 = vsub.f32 1.0, %v3510
    %v3512 = vmul.f32 %v3509, %v3511
    %v3513 = vadd.f32 %v3509, %v3512
    %vm3514 = vweird.f32 %v3508
    %vm3515 = vweird.f32 %v3509
    %vm3516 = vmor %vm3514, %vm3515
    %v3517 = vsel %vm3516, %v3509, %v3513
    %v3518 = vand.u32 2147483647, %v3508
    %vm3519 = vcmp.eq.f32.partialorder %v3518, 8.507059e+37
    %v3520 = vand.u32 %v3508, 2147483648
    %v3521 = vor.u32 1.1754944e-38, %v3520
    %v3522 = vsel %vm3519, %v3521, %v3517
    %v3523 = vmul.f32 1.0, %v3522
    %v3524 = vxor.u32 %v3352, 2147483648
    %v3525 = vmul.f32 %v3524, 1.442695
    %v3526 = vpow.pop %v3525
    %v3527 = vadd.f32 %v3526, 1.0
    %v3528 = vrcp.pop %v3527
    %v3529 = vmul.f32 %v3527, %v3528
    %v3530 = vsub.f32 1.0, %v3529
    %v3531 = vmul.f32 %v3528, %v3530
    %v3532 = vadd.f32 %v3528, %v3531
    %vm3533 = vweird.f32 %v3527
    %vm3534 = vweird.f32 %v3528
    %vm3535 = vmor %vm3533, %vm3534
    %v3536 = vsel %vm3535, %v3528, %v3532
    %v3537 = vand.u32 2147483647, %v3527
    %vm3538 = vcmp.eq.f32.partialorder %v3537, 8.507059e+37
    %v3539 = vand.u32 %v3527, 2147483648
    %v3540 = vor.u32 1.1754944e-38, %v3539
    %v3541 = vsel %vm3538, %v3540, %v3536
    %v3542 = vmul.f32 1.0, %v3541
    %v3543 = vtanh.pop %v3392
    %v3544 = vxor.u32 %v3432, 2147483648
    %v3545 = vmul.f32 %v3544, 1.442695
    %v3546 = vpow.pop %v3545
    %v3547 = vadd.f32 %v3546, 1.0
    %v3548 = vrcp.pop %v3547
    %v3549 = vmul.f32 %v3547, %v3548
    %v3550 = vsub.f32 1.0, %v3549
    %v3551 = vmul.f32 %v3548, %v3550
    %v3552 = vadd.f32 %v3548, %v3551
    %vm3553 = vweird.f32 %v3547
    %vm3554 = vweird.f32 %v3548
    %vm3555 = vmor %vm3553, %vm3554
    %v3556 = vsel %vm3555, %v3548, %v3552
    %v3557 = vand.u32 2147483647, %v3547
    %vm3558 = vcmp.eq.f32.partialorder %v3557, 8.507059e+37
    %v3559 = vand.u32 %v3547, 2147483648
    %v3560 = vor.u32 1.1754944e-38, %v3559
    %v3561 = vsel %vm3558, %v3560, %v3556
    %v3562 = vmul.f32 1.0, %v3561
    %v3563 = vmul.f32 %v3542, %v3110
    %v3564 = vmul.f32 %v3523, %v3543
    %v3565 = vadd.f32 %v3563, %v3564
    %v3566 = vtanh.pop %v3565
    %v3567 = vmul.f32 %v3562, %v3566
    %3568 = vst [vmem:[#allocation3 + $0x28] sm:$0xff] %v3567
    %3569 = vmatpush.msra.mxu0 %v454
    %3570 = vmatpush.msra.mxu0 %v446
    %3571 = vmatpush.msra.mxu0 %v438
    %3572 = vmatpush.msra.mxu0 %v430
    %3573 = vmatpush.msra.mxu0 %v422
    %3574 = vmatpush.msra.mxu0 %v414
    %3575 = vmatpush.msra.mxu0 %v406
    %3576 = vmatpush.msra.mxu0 %v398
    %3577 = vmatpush.msra.mxu0 %v390
    %3578 = vmatpush.msra.mxu0 %v382
    %3579 = vmatpush.msra.mxu0 %v374
    %3580 = vmatpush.msra.mxu0 %v366
    %3581 = vmatpush.msra.mxu0 %v358
    %3582 = vmatpush.msra.mxu0 %v350
    %3583 = vmatpush.msra.mxu0 %v342
    %3584 = vmatpush.msra.mxu0 %v334
    %3585 = vmatmul.f32.gmra.mxu0 %v3504
    %v3586 = vpop.f32.mrf.mxu0
    %v3587 = vadd.f32 %v592, %v3586
    %3588 = vdwg.mxu0
    %3589 = vmatpush.msra.mxu0 %v582
    %3590 = vmatpush.msra.mxu0 %v574
    %3591 = vmatpush.msra.mxu0 %v566
    %3592 = vmatpush.msra.mxu0 %v558
    %3593 = vmatpush.msra.mxu0 %v550
    %3594 = vmatpush.msra.mxu0 %v542
    %3595 = vmatpush.msra.mxu0 %v534
    %3596 = vmatpush.msra.mxu0 %v526
    %3597 = vmatpush.msra.mxu0 %v518
    %3598 = vmatpush.msra.mxu0 %v510
    %3599 = vmatpush.msra.mxu0 %v502
    %3600 = vmatpush.msra.mxu0 %v494
    %3601 = vmatpush.msra.mxu0 %v486
    %3602 = vmatpush.msra.mxu0 %v478
    %3603 = vmatpush.msra.mxu0 %v470
    %3604 = vmatpush.msra.mxu0 %v462
    %3605 = vmatmul.f32.gmra.mxu0 %v3567
    %v3606 = vpop.f32.mrf.mxu0
    %v3607 = vadd.f32 %v3587, %v3606
    %3608 = vdwg.mxu0
    %3609 = vmatpush.msra.mxu0 %v455
    %3610 = vmatpush.msra.mxu0 %v447
    %3611 = vmatpush.msra.mxu0 %v439
    %3612 = vmatpush.msra.mxu0 %v431
    %3613 = vmatpush.msra.mxu0 %v423
    %3614 = vmatpush.msra.mxu0 %v415
    %3615 = vmatpush.msra.mxu0 %v407
    %3616 = vmatpush.msra.mxu0 %v399
    %3617 = vmatpush.msra.mxu0 %v391
    %3618 = vmatpush.msra.mxu0 %v383
    %3619 = vmatpush.msra.mxu0 %v375
    %3620 = vmatpush.msra.mxu0 %v367
    %3621 = vmatpush.msra.mxu0 %v359
    %3622 = vmatpush.msra.mxu0 %v351
    %3623 = vmatpush.msra.mxu0 %v343
    %3624 = vmatpush.msra.mxu0 %v335
    %3625 = vmatmul.f32.gmra.mxu0 %v3504
    %v3626 = vpop.f32.mrf.mxu0
    %v3627 = vadd.f32 %v593, %v3626
    %3628 = vdwg.mxu0
    %3629 = vmatpush.msra.mxu0 %v583
    %3630 = vmatpush.msra.mxu0 %v575
    %3631 = vmatpush.msra.mxu0 %v567
    %3632 = vmatpush.msra.mxu0 %v559
    %3633 = vmatpush.msra.mxu0 %v551
    %3634 = vmatpush.msra.mxu0 %v543
    %3635 = vmatpush.msra.mxu0 %v535
    %3636 = vmatpush.msra.mxu0 %v527
    %3637 = vmatpush.msra.mxu0 %v519
    %3638 = vmatpush.msra.mxu0 %v511
    %3639 = vmatpush.msra.mxu0 %v503
    %3640 = vmatpush.msra.mxu0 %v495
    %3641 = vmatpush.msra.mxu0 %v487
    %3642 = vmatpush.msra.mxu0 %v479
    %3643 = vmatpush.msra.mxu0 %v471
    %3644 = vmatpush.msra.mxu0 %v463
    %3645 = vmatmul.f32.gmra.mxu0 %v3567
    %v3646 = vpop.f32.mrf.mxu0
    %v3647 = vadd.f32 %v3627, %v3646
    %3648 = vdwg.mxu0
    %3649 = vmatpush.msra.mxu0 %v456
    %3650 = vmatpush.msra.mxu0 %v448
    %3651 = vmatpush.msra.mxu0 %v440
    %3652 = vmatpush.msra.mxu0 %v432
    %3653 = vmatpush.msra.mxu0 %v424
    %3654 = vmatpush.msra.mxu0 %v416
    %3655 = vmatpush.msra.mxu0 %v408
    %3656 = vmatpush.msra.mxu0 %v400
    %3657 = vmatpush.msra.mxu0 %v392
    %3658 = vmatpush.msra.mxu0 %v384
    %3659 = vmatpush.msra.mxu0 %v376
    %3660 = vmatpush.msra.mxu0 %v368
    %3661 = vmatpush.msra.mxu0 %v360
    %3662 = vmatpush.msra.mxu0 %v352
    %3663 = vmatpush.msra.mxu0 %v344
    %3664 = vmatpush.msra.mxu0 %v336
    %3665 = vmatmul.f32.gmra.mxu0 %v3504
    %v3666 = vpop.f32.mrf.mxu0
    %v3667 = vadd.f32 %v594, %v3666
    %3668 = vdwg.mxu0
    %3669 = vmatpush.msra.mxu0 %v584
    %3670 = vmatpush.msra.mxu0 %v576
    %3671 = vmatpush.msra.mxu0 %v568
    %3672 = vmatpush.msra.mxu0 %v560
    %3673 = vmatpush.msra.mxu0 %v552
    %3674 = vmatpush.msra.mxu0 %v544
    %3675 = vmatpush.msra.mxu0 %v536
    %3676 = vmatpush.msra.mxu0 %v528
    %3677 = vmatpush.msra.mxu0 %v520
    %3678 = vmatpush.msra.mxu0 %v512
    %3679 = vmatpush.msra.mxu0 %v504
    %3680 = vmatpush.msra.mxu0 %v496
    %3681 = vmatpush.msra.mxu0 %v488
    %3682 = vmatpush.msra.mxu0 %v480
    %3683 = vmatpush.msra.mxu0 %v472
    %3684 = vmatpush.msra.mxu0 %v464
    %3685 = vmatmul.f32.gmra.mxu0 %v3567
    %v3686 = vpop.f32.mrf.mxu0
    %v3687 = vadd.f32 %v3667, %v3686
    %3688 = vdwg.mxu0
    %3689 = vmatpush.msra.mxu0 %v457
    %3690 = vmatpush.msra.mxu0 %v449
    %3691 = vmatpush.msra.mxu0 %v441
    %3692 = vmatpush.msra.mxu0 %v433
    %3693 = vmatpush.msra.mxu0 %v425
    %3694 = vmatpush.msra.mxu0 %v417
    %3695 = vmatpush.msra.mxu0 %v409
    %3696 = vmatpush.msra.mxu0 %v401
    %3697 = vmatpush.msra.mxu0 %v393
    %3698 = vmatpush.msra.mxu0 %v385
    %3699 = vmatpush.msra.mxu0 %v377
    %3700 = vmatpush.msra.mxu0 %v369
    %3701 = vmatpush.msra.mxu0 %v361
    %3702 = vmatpush.msra.mxu0 %v353
    %3703 = vmatpush.msra.mxu0 %v345
    %3704 = vmatpush.msra.mxu0 %v337
    %3705 = vmatmul.f32.gmra.mxu0 %v3504
    %v3706 = vpop.f32.mrf.mxu0
    %v3707 = vadd.f32 %v595, %v3706
    %3708 = vdwg.mxu0
    %3709 = vmatpush.msra.mxu0 %v585
    %3710 = vmatpush.msra.mxu0 %v577
    %3711 = vmatpush.msra.mxu0 %v569
    %3712 = vmatpush.msra.mxu0 %v561
    %3713 = vmatpush.msra.mxu0 %v553
    %3714 = vmatpush.msra.mxu0 %v545
    %3715 = vmatpush.msra.mxu0 %v537
    %3716 = vmatpush.msra.mxu0 %v529
    %3717 = vmatpush.msra.mxu0 %v521
    %3718 = vmatpush.msra.mxu0 %v513
    %3719 = vmatpush.msra.mxu0 %v505
    %3720 = vmatpush.msra.mxu0 %v497
    %3721 = vmatpush.msra.mxu0 %v489
    %3722 = vmatpush.msra.mxu0 %v481
    %3723 = vmatpush.msra.mxu0 %v473
    %3724 = vmatpush.msra.mxu0 %v465
    %3725 = vmatmul.f32.gmra.mxu0 %v3567
    %v3726 = vpop.f32.mrf.mxu0
    %v3727 = vadd.f32 %v3707, %v3726
    %3728 = vdwg.mxu0
    %3729 = vmatpush.msra.mxu0 %v458
    %3730 = vmatpush.msra.mxu0 %v450
    %3731 = vmatpush.msra.mxu0 %v442
    %3732 = vmatpush.msra.mxu0 %v434
    %3733 = vmatpush.msra.mxu0 %v426
    %3734 = vmatpush.msra.mxu0 %v418
    %3735 = vmatpush.msra.mxu0 %v410
    %3736 = vmatpush.msra.mxu0 %v402
    %3737 = vmatpush.msra.mxu0 %v394
    %3738 = vmatpush.msra.mxu0 %v386
    %3739 = vmatpush.msra.mxu0 %v378
    %3740 = vmatpush.msra.mxu0 %v370
    %3741 = vmatpush.msra.mxu0 %v362
    %3742 = vmatpush.msra.mxu0 %v354
    %3743 = vmatpush.msra.mxu0 %v346
    %3744 = vmatpush.msra.mxu0 %v338
    %3745 = vmatmul.f32.gmra.mxu0 %v3504
    %v3746 = vpop.f32.mrf.mxu0
    %v3747 = vadd.f32 %v596, %v3746
    %3748 = vdwg.mxu0
    %3749 = vmatpush.msra.mxu0 %v586
    %3750 = vmatpush.msra.mxu0 %v578
    %3751 = vmatpush.msra.mxu0 %v570
    %3752 = vmatpush.msra.mxu0 %v562
    %3753 = vmatpush.msra.mxu0 %v554
    %3754 = vmatpush.msra.mxu0 %v546
    %3755 = vmatpush.msra.mxu0 %v538
    %3756 = vmatpush.msra.mxu0 %v530
    %3757 = vmatpush.msra.mxu0 %v522
    %3758 = vmatpush.msra.mxu0 %v514
    %3759 = vmatpush.msra.mxu0 %v506
    %3760 = vmatpush.msra.mxu0 %v498
    %3761 = vmatpush.msra.mxu0 %v490
    %3762 = vmatpush.msra.mxu0 %v482
    %3763 = vmatpush.msra.mxu0 %v474
    %3764 = vmatpush.msra.mxu0 %v466
    %3765 = vmatmul.f32.gmra.mxu0 %v3567
    %v3766 = vpop.f32.mrf.mxu0
    %v3767 = vadd.f32 %v3747, %v3766
    %3768 = vdwg.mxu0
    %3769 = vmatpush.msra.mxu0 %v459
    %3770 = vmatpush.msra.mxu0 %v451
    %3771 = vmatpush.msra.mxu0 %v443
    %3772 = vmatpush.msra.mxu0 %v435
    %3773 = vmatpush.msra.mxu0 %v427
    %3774 = vmatpush.msra.mxu0 %v419
    %3775 = vmatpush.msra.mxu0 %v411
    %3776 = vmatpush.msra.mxu0 %v403
    %3777 = vmatpush.msra.mxu0 %v395
    %3778 = vmatpush.msra.mxu0 %v387
    %3779 = vmatpush.msra.mxu0 %v379
    %3780 = vmatpush.msra.mxu0 %v371
    %3781 = vmatpush.msra.mxu0 %v363
    %3782 = vmatpush.msra.mxu0 %v355
    %3783 = vmatpush.msra.mxu0 %v347
    %3784 = vmatpush.msra.mxu0 %v339
    %3785 = vmatmul.f32.gmra.mxu0 %v3504
    %v3786 = vpop.f32.mrf.mxu0
    %v3787 = vadd.f32 %v597, %v3786
    %3788 = vdwg.mxu0
    %3789 = vmatpush.msra.mxu0 %v587
    %3790 = vmatpush.msra.mxu0 %v579
    %3791 = vmatpush.msra.mxu0 %v571
    %3792 = vmatpush.msra.mxu0 %v563
    %3793 = vmatpush.msra.mxu0 %v555
    %3794 = vmatpush.msra.mxu0 %v547
    %3795 = vmatpush.msra.mxu0 %v539
    %3796 = vmatpush.msra.mxu0 %v531
    %3797 = vmatpush.msra.mxu0 %v523
    %3798 = vmatpush.msra.mxu0 %v515
    %3799 = vmatpush.msra.mxu0 %v507
    %3800 = vmatpush.msra.mxu0 %v499
    %3801 = vmatpush.msra.mxu0 %v491
    %3802 = vmatpush.msra.mxu0 %v483
    %3803 = vmatpush.msra.mxu0 %v475
    %3804 = vmatpush.msra.mxu0 %v467
    %3805 = vmatmul.f32.gmra.mxu0 %v3567
    %v3806 = vpop.f32.mrf.mxu0
    %v3807 = vadd.f32 %v3787, %v3806
    %3808 = vdwg.mxu0
    %3809 = vmatpush.msra.mxu0 %v460
    %3810 = vmatpush.msra.mxu0 %v452
    %3811 = vmatpush.msra.mxu0 %v444
    %3812 = vmatpush.msra.mxu0 %v436
    %3813 = vmatpush.msra.mxu0 %v428
    %3814 = vmatpush.msra.mxu0 %v420
    %3815 = vmatpush.msra.mxu0 %v412
    %3816 = vmatpush.msra.mxu0 %v404
    %3817 = vmatpush.msra.mxu0 %v396
    %3818 = vmatpush.msra.mxu0 %v388
    %3819 = vmatpush.msra.mxu0 %v380
    %3820 = vmatpush.msra.mxu0 %v372
    %3821 = vmatpush.msra.mxu0 %v364
    %3822 = vmatpush.msra.mxu0 %v356
    %3823 = vmatpush.msra.mxu0 %v348
    %3824 = vmatpush.msra.mxu0 %v340
    %3825 = vmatmul.f32.gmra.mxu0 %v3504
    %v3826 = vpop.f32.mrf.mxu0
    %v3827 = vadd.f32 %v598, %v3826
    %3828 = vdwg.mxu0
    %3829 = vmatpush.msra.mxu0 %v588
    %3830 = vmatpush.msra.mxu0 %v580
    %3831 = vmatpush.msra.mxu0 %v572
    %3832 = vmatpush.msra.mxu0 %v564
    %3833 = vmatpush.msra.mxu0 %v556
    %3834 = vmatpush.msra.mxu0 %v548
    %3835 = vmatpush.msra.mxu0 %v540
    %3836 = vmatpush.msra.mxu0 %v532
    %3837 = vmatpush.msra.mxu0 %v524
    %3838 = vmatpush.msra.mxu0 %v516
    %3839 = vmatpush.msra.mxu0 %v508
    %3840 = vmatpush.msra.mxu0 %v500
    %3841 = vmatpush.msra.mxu0 %v492
    %3842 = vmatpush.msra.mxu0 %v484
    %3843 = vmatpush.msra.mxu0 %v476
    %3844 = vmatpush.msra.mxu0 %v468
    %3845 = vmatmul.f32.gmra.mxu0 %v3567
    %v3846 = vpop.f32.mrf.mxu0
    %v3847 = vadd.f32 %v3827, %v3846
    %3848 = vdwg.mxu0
    %3849 = vmatpush.msra.mxu0 %v461
    %3850 = vmatpush.msra.mxu0 %v453
    %3851 = vmatpush.msra.mxu0 %v445
    %3852 = vmatpush.msra.mxu0 %v437
    %3853 = vmatpush.msra.mxu0 %v429
    %3854 = vmatpush.msra.mxu0 %v421
    %3855 = vmatpush.msra.mxu0 %v413
    %3856 = vmatpush.msra.mxu0 %v405
    %3857 = vmatpush.msra.mxu0 %v397
    %3858 = vmatpush.msra.mxu0 %v389
    %3859 = vmatpush.msra.mxu0 %v381
    %3860 = vmatpush.msra.mxu0 %v373
    %3861 = vmatpush.msra.mxu0 %v365
    %3862 = vmatpush.msra.mxu0 %v357
    %3863 = vmatpush.msra.mxu0 %v349
    %3864 = vmatpush.msra.mxu0 %v341
    %3865 = vmatmul.f32.gmra.mxu0 %v3504
    %v3866 = vpop.f32.mrf.mxu0
    %v3867 = vadd.f32 %v599, %v3866
    %3868 = vdwg.mxu0
    %3869 = vmatpush.msra.mxu0 %v589
    %3870 = vmatpush.msra.mxu0 %v581
    %3871 = vmatpush.msra.mxu0 %v573
    %3872 = vmatpush.msra.mxu0 %v565
    %3873 = vmatpush.msra.mxu0 %v557
    %3874 = vmatpush.msra.mxu0 %v549
    %3875 = vmatpush.msra.mxu0 %v541
    %3876 = vmatpush.msra.mxu0 %v533
    %3877 = vmatpush.msra.mxu0 %v525
    %3878 = vmatpush.msra.mxu0 %v517
    %3879 = vmatpush.msra.mxu0 %v509
    %3880 = vmatpush.msra.mxu0 %v501
    %3881 = vmatpush.msra.mxu0 %v493
    %3882 = vmatpush.msra.mxu0 %v485
    %3883 = vmatpush.msra.mxu0 %v477
    %3884 = vmatpush.msra.mxu0 %v469
    %3885 = vmatmul.f32.gmra.mxu0 %v3567
    %v3886 = vpop.f32.mrf.mxu0
    %v3887 = vadd.f32 %v3867, %v3886
    %3888 = vdwg.mxu0
    %v3889 = vld [vmem:[#allocation2 + $0xe0] sm:$0xff]
    %v3890 = vld [vmem:[#allocation2 + $0xe8] sm:$0xff]
    %v3891 = vld [vmem:[#allocation2 + $0xf0] sm:$0xff]
    %v3892 = vld [vmem:[#allocation2 + $0xf8] sm:$0xff]
    %v3893 = vadd.f32 %v3607, %v3889
    %v3894 = vadd.f32 %v3647, %v3890
    %v3895 = vadd.f32 %v3687, %v3891
    %v3896 = vadd.f32 %v3727, %v3892
    %v3897 = vxor.u32 %v3893, 2147483648
    %v3898 = vmul.f32 %v3897, 1.442695
    %v3899 = vpow.pop %v3898
    %v3900 = vadd.f32 %v3899, 1.0
    %v3901 = vrcp.pop %v3900
    %v3902 = vmul.f32 %v3900, %v3901
    %v3903 = vsub.f32 1.0, %v3902
    %v3904 = vmul.f32 %v3901, %v3903
    %v3905 = vadd.f32 %v3901, %v3904
    %vm3906 = vweird.f32 %v3900
    %vm3907 = vweird.f32 %v3901
    %vm3908 = vmor %vm3906, %vm3907
    %v3909 = vsel %vm3908, %v3901, %v3905
    %v3910 = vand.u32 2147483647, %v3900
    %vm3911 = vcmp.eq.f32.partialorder %v3910, 8.507059e+37
    %v3912 = vand.u32 %v3900, 2147483648
    %v3913 = vor.u32 1.1754944e-38, %v3912
    %v3914 = vsel %vm3911, %v3913, %v3909
    %v3915 = vmul.f32 1.0, %v3914
    %v3916 = vxor.u32 %v3894, 2147483648
    %v3917 = vmul.f32 %v3916, 1.442695
    %v3918 = vpow.pop %v3917
    %v3919 = vadd.f32 %v3918, 1.0
    %v3920 = vrcp.pop %v3919
    %v3921 = vmul.f32 %v3919, %v3920
    %v3922 = vsub.f32 1.0, %v3921
    %v3923 = vmul.f32 %v3920, %v3922
    %v3924 = vadd.f32 %v3920, %v3923
    %vm3925 = vweird.f32 %v3919
    %vm3926 = vweird.f32 %v3920
    %vm3927 = vmor %vm3925, %vm3926
    %v3928 = vsel %vm3927, %v3920, %v3924
    %v3929 = vand.u32 2147483647, %v3919
    %vm3930 = vcmp.eq.f32.partialorder %v3929, 8.507059e+37
    %v3931 = vand.u32 %v3919, 2147483648
    %v3932 = vor.u32 1.1754944e-38, %v3931
    %v3933 = vsel %vm3930, %v3932, %v3928
    %v3934 = vmul.f32 1.0, %v3933
    %v3935 = vtanh.pop %v3895
    %v3936 = vxor.u32 %v3896, 2147483648
    %v3937 = vmul.f32 %v3936, 1.442695
    %v3938 = vpow.pop %v3937
    %v3939 = vadd.f32 %v3938, 1.0
    %v3940 = vrcp.pop %v3939
    %v3941 = vmul.f32 %v3939, %v3940
    %v3942 = vsub.f32 1.0, %v3941
    %v3943 = vmul.f32 %v3940, %v3942
    %v3944 = vadd.f32 %v3940, %v3943
    %vm3945 = vweird.f32 %v3939
    %vm3946 = vweird.f32 %v3940
    %vm3947 = vmor %vm3945, %vm3946
    %v3948 = vsel %vm3947, %v3940, %v3944
    %v3949 = vand.u32 2147483647, %v3939
    %vm3950 = vcmp.eq.f32.partialorder %v3949, 8.507059e+37
    %v3951 = vand.u32 %v3939, 2147483648
    %v3952 = vor.u32 1.1754944e-38, %v3951
    %v3953 = vsel %vm3950, %v3952, %v3948
    %v3954 = vmul.f32 1.0, %v3953
    %v3955 = vmul.f32 %v3934, %v3502
    %v3956 = vmul.f32 %v3915, %v3935
    %v3957 = vadd.f32 %v3955, %v3956
    %v3958 = vtanh.pop %v3957
    %v3959 = vmul.f32 %v3954, %v3958
    %v3960 = vxor.u32 %v3767, 2147483648
    %v3961 = vmul.f32 %v3960, 1.442695
    %v3962 = vpow.pop %v3961
    %v3963 = vadd.f32 %v3962, 1.0
    %v3964 = vrcp.pop %v3963
    %v3965 = vmul.f32 %v3963, %v3964
    %v3966 = vsub.f32 1.0, %v3965
    %v3967 = vmul.f32 %v3964, %v3966
    %v3968 = vadd.f32 %v3964, %v3967
    %vm3969 = vweird.f32 %v3963
    %vm3970 = vweird.f32 %v3964
    %vm3971 = vmor %vm3969, %vm3970
    %v3972 = vsel %vm3971, %v3964, %v3968
    %v3973 = vand.u32 2147483647, %v3963
    %vm3974 = vcmp.eq.f32.partialorder %v3973, 8.507059e+37
    %v3975 = vand.u32 %v3963, 2147483648
    %v3976 = vor.u32 1.1754944e-38, %v3975
    %v3977 = vsel %vm3974, %v3976, %v3972
    %v3978 = vmul.f32 1.0, %v3977
    %v3979 = vxor.u32 %v3807, 2147483648
    %v3980 = vmul.f32 %v3979, 1.442695
    %v3981 = vpow.pop %v3980
    %v3982 = vadd.f32 %v3981, 1.0
    %v3983 = vrcp.pop %v3982
    %v3984 = vmul.f32 %v3982, %v3983
    %v3985 = vsub.f32 1.0, %v3984
    %v3986 = vmul.f32 %v3983, %v3985
    %v3987 = vadd.f32 %v3983, %v3986
    %vm3988 = vweird.f32 %v3982
    %vm3989 = vweird.f32 %v3983
    %vm3990 = vmor %vm3988, %vm3989
    %v3991 = vsel %vm3990, %v3983, %v3987
    %v3992 = vand.u32 2147483647, %v3982
    %vm3993 = vcmp.eq.f32.partialorder %v3992, 8.507059e+37
    %v3994 = vand.u32 %v3982, 2147483648
    %v3995 = vor.u32 1.1754944e-38, %v3994
    %v3996 = vsel %vm3993, %v3995, %v3991
    %v3997 = vmul.f32 1.0, %v3996
    %v3998 = vtanh.pop %v3847
    %v3999 = vxor.u32 %v3887, 2147483648
    %v4000 = vmul.f32 %v3999, 1.442695
    %v4001 = vpow.pop %v4000
    %v4002 = vadd.f32 %v4001, 1.0
    %v4003 = vrcp.pop %v4002
    %v4004 = vmul.f32 %v4002, %v4003
    %v4005 = vsub.f32 1.0, %v4004
    %v4006 = vmul.f32 %v4003, %v4005
    %v4007 = vadd.f32 %v4003, %v4006
    %vm4008 = vweird.f32 %v4002
    %vm4009 = vweird.f32 %v4003
    %vm4010 = vmor %vm4008, %vm4009
    %v4011 = vsel %vm4010, %v4003, %v4007
    %v4012 = vand.u32 2147483647, %v4002
    %vm4013 = vcmp.eq.f32.partialorder %v4012, 8.507059e+37
    %v4014 = vand.u32 %v4002, 2147483648
    %v4015 = vor.u32 1.1754944e-38, %v4014
    %v4016 = vsel %vm4013, %v4015, %v4011
    %v4017 = vmul.f32 1.0, %v4016
    %v4018 = vmul.f32 %v3997, %v3565
    %v4019 = vmul.f32 %v3978, %v3998
    %v4020 = vadd.f32 %v4018, %v4019
    %v4021 = vtanh.pop %v4020
    %v4022 = vmul.f32 %v4017, %v4021
    %4023 = vst [vmem:[#allocation3 + $0x30] sm:$0xff] %v4022
    %4024 = vmatpush.msra.mxu0 %v458
    %4025 = vmatpush.msra.mxu0 %v450
    %4026 = vmatpush.msra.mxu0 %v442
    %4027 = vmatpush.msra.mxu0 %v434
    %4028 = vmatpush.msra.mxu0 %v426
    %4029 = vmatpush.msra.mxu0 %v418
    %4030 = vmatpush.msra.mxu0 %v410
    %4031 = vmatpush.msra.mxu0 %v402
    %4032 = vmatpush.msra.mxu0 %v394
    %4033 = vmatpush.msra.mxu0 %v386
    %4034 = vmatpush.msra.mxu0 %v378
    %4035 = vmatpush.msra.mxu0 %v370
    %4036 = vmatpush.msra.mxu0 %v362
    %4037 = vmatpush.msra.mxu0 %v354
    %4038 = vmatpush.msra.mxu0 %v346
    %4039 = vmatpush.msra.mxu0 %v338
    %4040 = vmatmul.f32.gmra.mxu0 %v3959
    %v4041 = vpop.f32.mrf.mxu0
    %v4042 = vadd.f32 %v596, %v4041
    %4043 = vdwg.mxu0
    %4044 = vmatpush.msra.mxu0 %v586
    %4045 = vmatpush.msra.mxu0 %v578
    %4046 = vmatpush.msra.mxu0 %v570
    %4047 = vmatpush.msra.mxu0 %v562
    %4048 = vmatpush.msra.mxu0 %v554
    %4049 = vmatpush.msra.mxu0 %v546
    %4050 = vmatpush.msra.mxu0 %v538
    %4051 = vmatpush.msra.mxu0 %v530
    %4052 = vmatpush.msra.mxu0 %v522
    %4053 = vmatpush.msra.mxu0 %v514
    %4054 = vmatpush.msra.mxu0 %v506
    %4055 = vmatpush.msra.mxu0 %v498
    %4056 = vmatpush.msra.mxu0 %v490
    %4057 = vmatpush.msra.mxu0 %v482
    %4058 = vmatpush.msra.mxu0 %v474
    %4059 = vmatpush.msra.mxu0 %v466
    %4060 = vmatmul.f32.gmra.mxu0 %v4022
    %v4061 = vpop.f32.mrf.mxu0
    %v4062 = vadd.f32 %v4042, %v4061
    %4063 = vdwg.mxu0
    %4064 = vmatpush.msra.mxu0 %v459
    %4065 = vmatpush.msra.mxu0 %v451
    %4066 = vmatpush.msra.mxu0 %v443
    %4067 = vmatpush.msra.mxu0 %v435
    %4068 = vmatpush.msra.mxu0 %v427
    %4069 = vmatpush.msra.mxu0 %v419
    %4070 = vmatpush.msra.mxu0 %v411
    %4071 = vmatpush.msra.mxu0 %v403
    %4072 = vmatpush.msra.mxu0 %v395
    %4073 = vmatpush.msra.mxu0 %v387
    %4074 = vmatpush.msra.mxu0 %v379
    %4075 = vmatpush.msra.mxu0 %v371
    %4076 = vmatpush.msra.mxu0 %v363
    %4077 = vmatpush.msra.mxu0 %v355
    %4078 = vmatpush.msra.mxu0 %v347
    %4079 = vmatpush.msra.mxu0 %v339
    %4080 = vmatmul.f32.gmra.mxu0 %v3959
    %v4081 = vpop.f32.mrf.mxu0
    %v4082 = vadd.f32 %v597, %v4081
    %4083 = vdwg.mxu0
    %4084 = vmatpush.msra.mxu0 %v587
    %4085 = vmatpush.msra.mxu0 %v579
    %4086 = vmatpush.msra.mxu0 %v571
    %4087 = vmatpush.msra.mxu0 %v563
    %4088 = vmatpush.msra.mxu0 %v555
    %4089 = vmatpush.msra.mxu0 %v547
    %4090 = vmatpush.msra.mxu0 %v539
    %4091 = vmatpush.msra.mxu0 %v531
    %4092 = vmatpush.msra.mxu0 %v523
    %4093 = vmatpush.msra.mxu0 %v515
    %4094 = vmatpush.msra.mxu0 %v507
    %4095 = vmatpush.msra.mxu0 %v499
    %4096 = vmatpush.msra.mxu0 %v491
    %4097 = vmatpush.msra.mxu0 %v483
    %4098 = vmatpush.msra.mxu0 %v475
    %4099 = vmatpush.msra.mxu0 %v467
    %4100 = vmatmul.f32.gmra.mxu0 %v4022
    %v4101 = vpop.f32.mrf.mxu0
    %v4102 = vadd.f32 %v4082, %v4101
    %4103 = vdwg.mxu0
    %4104 = vmatpush.msra.mxu0 %v460
    %4105 = vmatpush.msra.mxu0 %v452
    %4106 = vmatpush.msra.mxu0 %v444
    %4107 = vmatpush.msra.mxu0 %v436
    %4108 = vmatpush.msra.mxu0 %v428
    %4109 = vmatpush.msra.mxu0 %v420
    %4110 = vmatpush.msra.mxu0 %v412
    %4111 = vmatpush.msra.mxu0 %v404
    %4112 = vmatpush.msra.mxu0 %v396
    %4113 = vmatpush.msra.mxu0 %v388
    %4114 = vmatpush.msra.mxu0 %v380
    %4115 = vmatpush.msra.mxu0 %v372
    %4116 = vmatpush.msra.mxu0 %v364
    %4117 = vmatpush.msra.mxu0 %v356
    %4118 = vmatpush.msra.mxu0 %v348
    %4119 = vmatpush.msra.mxu0 %v340
    %4120 = vmatmul.f32.gmra.mxu0 %v3959
    %v4121 = vpop.f32.mrf.mxu0
    %v4122 = vadd.f32 %v598, %v4121
    %4123 = vdwg.mxu0
    %4124 = vmatpush.msra.mxu0 %v588
    %4125 = vmatpush.msra.mxu0 %v580
    %4126 = vmatpush.msra.mxu0 %v572
    %4127 = vmatpush.msra.mxu0 %v564
    %4128 = vmatpush.msra.mxu0 %v556
    %4129 = vmatpush.msra.mxu0 %v548
    %4130 = vmatpush.msra.mxu0 %v540
    %4131 = vmatpush.msra.mxu0 %v532
    %4132 = vmatpush.msra.mxu0 %v524
    %4133 = vmatpush.msra.mxu0 %v516
    %4134 = vmatpush.msra.mxu0 %v508
    %4135 = vmatpush.msra.mxu0 %v500
    %4136 = vmatpush.msra.mxu0 %v492
    %4137 = vmatpush.msra.mxu0 %v484
    %4138 = vmatpush.msra.mxu0 %v476
    %4139 = vmatpush.msra.mxu0 %v468
    %4140 = vmatmul.f32.gmra.mxu0 %v4022
    %v4141 = vpop.f32.mrf.mxu0
    %v4142 = vadd.f32 %v4122, %v4141
    %4143 = vdwg.mxu0
    %4144 = vmatpush.msra.mxu0 %v461
    %4145 = vmatpush.msra.mxu0 %v453
    %4146 = vmatpush.msra.mxu0 %v445
    %4147 = vmatpush.msra.mxu0 %v437
    %4148 = vmatpush.msra.mxu0 %v429
    %4149 = vmatpush.msra.mxu0 %v421
    %4150 = vmatpush.msra.mxu0 %v413
    %4151 = vmatpush.msra.mxu0 %v405
    %4152 = vmatpush.msra.mxu0 %v397
    %4153 = vmatpush.msra.mxu0 %v389
    %4154 = vmatpush.msra.mxu0 %v381
    %4155 = vmatpush.msra.mxu0 %v373
    %4156 = vmatpush.msra.mxu0 %v365
    %4157 = vmatpush.msra.mxu0 %v357
    %4158 = vmatpush.msra.mxu0 %v349
    %4159 = vmatpush.msra.mxu0 %v341
    %4160 = vmatmul.f32.gmra.mxu0 %v3959
    %v4161 = vpop.f32.mrf.mxu0
    %v4162 = vadd.f32 %v599, %v4161
    %4163 = vdwg.mxu0
    %4164 = vmatpush.msra.mxu0 %v589
    %4165 = vmatpush.msra.mxu0 %v581
    %4166 = vmatpush.msra.mxu0 %v573
    %4167 = vmatpush.msra.mxu0 %v565
    %4168 = vmatpush.msra.mxu0 %v557
    %4169 = vmatpush.msra.mxu0 %v549
    %4170 = vmatpush.msra.mxu0 %v541
    %4171 = vmatpush.msra.mxu0 %v533
    %4172 = vmatpush.msra.mxu0 %v525
    %4173 = vmatpush.msra.mxu0 %v517
    %4174 = vmatpush.msra.mxu0 %v509
    %4175 = vmatpush.msra.mxu0 %v501
    %4176 = vmatpush.msra.mxu0 %v493
    %4177 = vmatpush.msra.mxu0 %v485
    %4178 = vmatpush.msra.mxu0 %v477
    %4179 = vmatpush.msra.mxu0 %v469
    %4180 = vmatmul.f32.gmra.mxu0 %v4022
    %v4181 = vpop.f32.mrf.mxu0
    %v4182 = vadd.f32 %v4162, %v4181
    %4183 = vdwg.mxu0
    %v4184 = vxor.u32 %v4062, 2147483648
    %v4185 = vmul.f32 %v4184, 1.442695
    %v4186 = vpow.pop %v4185
    %v4187 = vadd.f32 %v4186, 1.0
    %v4188 = vrcp.pop %v4187
    %v4189 = vmul.f32 %v4187, %v4188
    %v4190 = vsub.f32 1.0, %v4189
    %v4191 = vmul.f32 %v4188, %v4190
    %v4192 = vadd.f32 %v4188, %v4191
    %vm4193 = vweird.f32 %v4187
    %vm4194 = vweird.f32 %v4188
    %vm4195 = vmor %vm4193, %vm4194
    %v4196 = vsel %vm4195, %v4188, %v4192
    %v4197 = vand.u32 2147483647, %v4187
    %vm4198 = vcmp.eq.f32.partialorder %v4197, 8.507059e+37
    %v4199 = vand.u32 %v4187, 2147483648
    %v4200 = vor.u32 1.1754944e-38, %v4199
    %v4201 = vsel %vm4198, %v4200, %v4196
    %v4202 = vmul.f32 1.0, %v4201
    %v4203 = vxor.u32 %v4102, 2147483648
    %v4204 = vmul.f32 %v4203, 1.442695
    %v4205 = vpow.pop %v4204
    %v4206 = vadd.f32 %v4205, 1.0
    %v4207 = vrcp.pop %v4206
    %v4208 = vmul.f32 %v4206, %v4207
    %v4209 = vsub.f32 1.0, %v4208
    %v4210 = vmul.f32 %v4207, %v4209
    %v4211 = vadd.f32 %v4207, %v4210
    %vm4212 = vweird.f32 %v4206
    %vm4213 = vweird.f32 %v4207
    %vm4214 = vmor %vm4212, %vm4213
    %v4215 = vsel %vm4214, %v4207, %v4211
    %v4216 = vand.u32 2147483647, %v4206
    %vm4217 = vcmp.eq.f32.partialorder %v4216, 8.507059e+37
    %v4218 = vand.u32 %v4206, 2147483648
    %v4219 = vor.u32 1.1754944e-38, %v4218
    %v4220 = vsel %vm4217, %v4219, %v4215
    %v4221 = vmul.f32 1.0, %v4220
    %v4222 = vtanh.pop %v4142
    %v4223 = vxor.u32 %v4182, 2147483648
    %v4224 = vmul.f32 %v4223, 1.442695
    %v4225 = vpow.pop %v4224
    %v4226 = vadd.f32 %v4225, 1.0
    %v4227 = vrcp.pop %v4226
    %v4228 = vmul.f32 %v4226, %v4227
    %v4229 = vsub.f32 1.0, %v4228
    %v4230 = vmul.f32 %v4227, %v4229
    %v4231 = vadd.f32 %v4227, %v4230
    %vm4232 = vweird.f32 %v4226
    %vm4233 = vweird.f32 %v4227
    %vm4234 = vmor %vm4232, %vm4233
    %v4235 = vsel %vm4234, %v4227, %v4231
    %v4236 = vand.u32 2147483647, %v4226
    %vm4237 = vcmp.eq.f32.partialorder %v4236, 8.507059e+37
    %v4238 = vand.u32 %v4226, 2147483648
    %v4239 = vor.u32 1.1754944e-38, %v4238
    %v4240 = vsel %vm4237, %v4239, %v4235
    %v4241 = vmul.f32 1.0, %v4240
    %v4242 = vmul.f32 %v4221, %v4020
    %v4243 = vmul.f32 %v4202, %v4222
    %v4244 = vadd.f32 %v4242, %v4243
    %v4245 = vtanh.pop %v4244
    %v4246 = vmul.f32 %v4241, %v4245
    %4247 = vst [vmem:[#allocation3 + $0x38] sm:$0xff] %v4246
    %v4248 = vld [vmem:[#allocation3] sm:$0xff]
    %v4249 = vld [vmem:[#allocation3 + $0x8] sm:$0xff]
    %v4250 = vld [vmem:[#allocation3 + $0x10] sm:$0xff]
    %v4251 = vld [vmem:[#allocation3 + $0x18] sm:$0xff]
    %v4252 = vld [vmem:[#allocation3 + $0x20] sm:$0xff]
    %v4253 = vld [vmem:[#allocation3 + $0x28] sm:$0xff]
    %v4254 = vld [vmem:[#allocation3 + $0x30] sm:$0xff]
    %v4255 = vld [vmem:[#allocation3 + $0x38] sm:$0xff]
    %v4256 = vld [vmem:[%s5] sm:$0xff]
    %v4257 = vld [vmem:[%s5 + $0x8] sm:$0xff]
    %v4258 = vld [vmem:[%s5 + $0x10] sm:$0xff]
    %v4259 = vld [vmem:[%s5 + $0x18] sm:$0xff]
    %v4260 = vld [vmem:[%s5 + $0x20] sm:$0xff]
    %v4261 = vld [vmem:[%s5 + $0x28] sm:$0xff]
    %v4262 = vld [vmem:[%s5 + $0x30] sm:$0xff]
    %v4263 = vld [vmem:[%s5 + $0x38] sm:$0xff]
    %v4264 = vld [vmem:[%s5 + $0x40] sm:$0xff]
    %v4265 = vld [vmem:[%s5 + $0x48] sm:$0xff]
    %v4266 = vld [vmem:[%s5 + $0x50] sm:$0xff]
    %v4267 = vld [vmem:[%s5 + $0x58] sm:$0xff]
    %v4268 = vld [vmem:[%s5 + $0x60] sm:$0xff]
    %v4269 = vld [vmem:[%s5 + $0x68] sm:$0xff]
    %v4270 = vld [vmem:[%s5 + $0x70] sm:$0xff]
    %v4271 = vld [vmem:[%s5 + $0x78] sm:$0xff]
    %v4272 = vld [vmem:[%s5 + $0x80] sm:$0xff]
    %v4273 = vld [vmem:[%s5 + $0x88] sm:$0xff]
    %v4274 = vld [vmem:[%s5 + $0x90] sm:$0xff]
    %v4275 = vld [vmem:[%s5 + $0x98] sm:$0xff]
    %v4276 = vld [vmem:[%s5 + $0xa0] sm:$0xff]
    %v4277 = vld [vmem:[%s5 + $0xa8] sm:$0xff]
    %v4278 = vld [vmem:[%s5 + $0xb0] sm:$0xff]
    %v4279 = vld [vmem:[%s5 + $0xb8] sm:$0xff]
    %v4280 = vld [vmem:[%s5 + $0xc0] sm:$0xff]
    %v4281 = vld [vmem:[%s5 + $0xc8] sm:$0xff]
    %v4282 = vld [vmem:[%s5 + $0xd0] sm:$0xff]
    %v4283 = vld [vmem:[%s5 + $0xd8] sm:$0xff]
    %v4284 = vld [vmem:[%s5 + $0xe0] sm:$0xff]
    %v4285 = vld [vmem:[%s5 + $0xe8] sm:$0xff]
    %v4286 = vld [vmem:[%s5 + $0xf0] sm:$0xff]
    %v4287 = vld [vmem:[%s5 + $0xf8] sm:$0xff]
    %v4288 = vld [vmem:[%s5 + $0x100] sm:$0xff]
    %v4289 = vld [vmem:[%s5 + $0x108] sm:$0xff]
    %v4290 = vld [vmem:[%s5 + $0x110] sm:$0xff]
    %v4291 = vld [vmem:[%s5 + $0x118] sm:$0xff]
    %v4292 = vld [vmem:[%s5 + $0x120] sm:$0xff]
    %v4293 = vld [vmem:[%s5 + $0x128] sm:$0xff]
    %v4294 = vld [vmem:[%s5 + $0x130] sm:$0xff]
    %v4295 = vld [vmem:[%s5 + $0x138] sm:$0xff]
    %v4296 = vld [vmem:[%s5 + $0x140] sm:$0xff]
    %v4297 = vld [vmem:[%s5 + $0x148] sm:$0xff]
    %v4298 = vld [vmem:[%s5 + $0x150] sm:$0xff]
    %v4299 = vld [vmem:[%s5 + $0x158] sm:$0xff]
    %v4300 = vld [vmem:[%s5 + $0x160] sm:$0xff]
    %v4301 = vld [vmem:[%s5 + $0x168] sm:$0xff]
    %v4302 = vld [vmem:[%s5 + $0x170] sm:$0xff]
    %v4303 = vld [vmem:[%s5 + $0x178] sm:$0xff]
    %v4304 = vld [vmem:[%s5 + $0x180] sm:$0xff]
    %v4305 = vld [vmem:[%s5 + $0x188] sm:$0xff]
    %v4306 = vld [vmem:[%s5 + $0x190] sm:$0xff]
    %v4307 = vld [vmem:[%s5 + $0x198] sm:$0xff]
    %v4308 = vld [vmem:[%s5 + $0x1a0] sm:$0xff]
    %v4309 = vld [vmem:[%s5 + $0x1a8] sm:$0xff]
    %v4310 = vld [vmem:[%s5 + $0x1b0] sm:$0xff]
    %v4311 = vld [vmem:[%s5 + $0x1b8] sm:$0xff]
    %v4312 = vld [vmem:[%s5 + $0x1c0] sm:$0xff]
    %v4313 = vld [vmem:[%s5 + $0x1c8] sm:$0xff]
    %v4314 = vld [vmem:[%s5 + $0x1d0] sm:$0xff]
    %v4315 = vld [vmem:[%s5 + $0x1d8] sm:$0xff]
    %v4316 = vld [vmem:[%s5 + $0x1e0] sm:$0xff]
    %v4317 = vld [vmem:[%s5 + $0x1e8] sm:$0xff]
    %v4318 = vld [vmem:[%s5 + $0x1f0] sm:$0xff]
    %v4319 = vld [vmem:[%s5 + $0x1f8] sm:$0xff]
    %4320 = vmatpush.xpose.msra.mxu0 %v4271
    %4321 = vmatpush.xpose.msra.mxu0 %v4270
    %4322 = vmatpush.xpose.msra.mxu0 %v4269
    %4323 = vmatpush.xpose.msra.mxu0 %v4268
    %4324 = vmatpush.xpose.msra.mxu0 %v4267
    %4325 = vmatpush.xpose.msra.mxu0 %v4266
    %4326 = vmatpush.xpose.msra.mxu0 %v4265
    %4327 = vmatpush.xpose.msra.mxu0 %v4264
    %4328 = vmatpush.xpose.msra.mxu0 %v4263
    %4329 = vmatpush.xpose.msra.mxu0 %v4262
    %4330 = vmatpush.xpose.msra.mxu0 %v4261
    %4331 = vmatpush.xpose.msra.mxu0 %v4260
    %4332 = vmatpush.xpose.msra.mxu0 %v4259
    %4333 = vmatpush.xpose.msra.mxu0 %v4258
    %4334 = vmatpush.xpose.msra.mxu0 %v4257
    %4335 = vmatpush.xpose.msra.mxu0 %v4256
    %4336 = vmatmul.f32.gmra.mxu0 %v4248
    %v4337 = vpop.f32.mrf.mxu0
    %v4338 = vadd.f32 0.0, %v4337
    %4339 = vmatmul.f32.gmra.mxu0 %v4249
    %v4340 = vpop.f32.mrf.mxu0
    %v4341 = vadd.f32 0.0, %v4340
    %4342 = vmatmul.f32.gmra.mxu0 %v4250
    %v4343 = vpop.f32.mrf.mxu0
    %v4344 = vadd.f32 0.0, %v4343
    %4345 = vmatmul.f32.gmra.mxu0 %v4251
    %v4346 = vpop.f32.mrf.mxu0
    %v4347 = vadd.f32 0.0, %v4346
    %4348 = vmatmul.f32.gmra.mxu0 %v4252
    %v4349 = vpop.f32.mrf.mxu0
    %v4350 = vadd.f32 0.0, %v4349
    %4351 = vmatmul.f32.gmra.mxu0 %v4253
    %v4352 = vpop.f32.mrf.mxu0
    %v4353 = vadd.f32 0.0, %v4352
    %4354 = vmatmul.f32.gmra.mxu0 %v4254
    %v4355 = vpop.f32.mrf.mxu0
    %v4356 = vadd.f32 0.0, %v4355
    %4357 = vmatmul.f32.gmra.mxu0 %v4255
    %v4358 = vpop.f32.mrf.mxu0
    %v4359 = vadd.f32 0.0, %v4358
    %4360 = vdwg.mxu0
    %4361 = vmatpush.xpose.msra.mxu0 %v4287
    %4362 = vmatpush.xpose.msra.mxu0 %v4286
    %4363 = vmatpush.xpose.msra.mxu0 %v4285
    %4364 = vmatpush.xpose.msra.mxu0 %v4284
    %4365 = vmatpush.xpose.msra.mxu0 %v4283
    %4366 = vmatpush.xpose.msra.mxu0 %v4282
    %4367 = vmatpush.xpose.msra.mxu0 %v4281
    %4368 = vmatpush.xpose.msra.mxu0 %v4280
    %4369 = vmatpush.xpose.msra.mxu0 %v4279
    %4370 = vmatpush.xpose.msra.mxu0 %v4278
    %4371 = vmatpush.xpose.msra.mxu0 %v4277
    %4372 = vmatpush.xpose.msra.mxu0 %v4276
    %4373 = vmatpush.xpose.msra.mxu0 %v4275
    %4374 = vmatpush.xpose.msra.mxu0 %v4274
    %4375 = vmatpush.xpose.msra.mxu0 %v4273
    %4376 = vmatpush.xpose.msra.mxu0 %v4272
    %4377 = vmatmul.f32.gmra.mxu0 %v4248
    %v4378 = vpop.f32.mrf.mxu0
    %v4379 = vadd.f32 0.0, %v4378
    %4380 = vmatmul.f32.gmra.mxu0 %v4249
    %v4381 = vpop.f32.mrf.mxu0
    %v4382 = vadd.f32 0.0, %v4381
    %4383 = vmatmul.f32.gmra.mxu0 %v4250
    %v4384 = vpop.f32.mrf.mxu0
    %v4385 = vadd.f32 0.0, %v4384
    %4386 = vmatmul.f32.gmra.mxu0 %v4251
    %v4387 = vpop.f32.mrf.mxu0
    %v4388 = vadd.f32 0.0, %v4387
    %4389 = vmatmul.f32.gmra.mxu0 %v4252
    %v4390 = vpop.f32.mrf.mxu0
    %v4391 = vadd.f32 0.0, %v4390
    %4392 = vmatmul.f32.gmra.mxu0 %v4253
    %v4393 = vpop.f32.mrf.mxu0
    %v4394 = vadd.f32 0.0, %v4393
    %4395 = vmatmul.f32.gmra.mxu0 %v4254
    %v4396 = vpop.f32.mrf.mxu0
    %v4397 = vadd.f32 0.0, %v4396
    %4398 = vmatmul.f32.gmra.mxu0 %v4255
    %v4399 = vpop.f32.mrf.mxu0
    %v4400 = vadd.f32 0.0, %v4399
    %4401 = vdwg.mxu0
    %4402 = vmatpush.xpose.msra.mxu0 %v4303
    %4403 = vmatpush.xpose.msra.mxu0 %v4302
    %4404 = vmatpush.xpose.msra.mxu0 %v4301
    %4405 = vmatpush.xpose.msra.mxu0 %v4300
    %4406 = vmatpush.xpose.msra.mxu0 %v4299
    %4407 = vmatpush.xpose.msra.mxu0 %v4298
    %4408 = vmatpush.xpose.msra.mxu0 %v4297
    %4409 = vmatpush.xpose.msra.mxu0 %v4296
    %4410 = vmatpush.xpose.msra.mxu0 %v4295
    %4411 = vmatpush.xpose.msra.mxu0 %v4294
    %4412 = vmatpush.xpose.msra.mxu0 %v4293
    %4413 = vmatpush.xpose.msra.mxu0 %v4292
    %4414 = vmatpush.xpose.msra.mxu0 %v4291
    %4415 = vmatpush.xpose.msra.mxu0 %v4290
    %4416 = vmatpush.xpose.msra.mxu0 %v4289
    %4417 = vmatpush.xpose.msra.mxu0 %v4288
    %4418 = vmatmul.f32.gmra.mxu0 %v4248
    %v4419 = vpop.f32.mrf.mxu0
    %v4420 = vadd.f32 0.0, %v4419
    %4421 = vmatmul.f32.gmra.mxu0 %v4249
    %v4422 = vpop.f32.mrf.mxu0
    %v4423 = vadd.f32 0.0, %v4422
    %4424 = vmatmul.f32.gmra.mxu0 %v4250
    %v4425 = vpop.f32.mrf.mxu0
    %v4426 = vadd.f32 0.0, %v4425
    %4427 = vmatmul.f32.gmra.mxu0 %v4251
    %v4428 = vpop.f32.mrf.mxu0
    %v4429 = vadd.f32 0.0, %v4428
    %4430 = vmatmul.f32.gmra.mxu0 %v4252
    %v4431 = vpop.f32.mrf.mxu0
    %v4432 = vadd.f32 0.0, %v4431
    %4433 = vmatmul.f32.gmra.mxu0 %v4253
    %v4434 = vpop.f32.mrf.mxu0
    %v4435 = vadd.f32 0.0, %v4434
    %4436 = vmatmul.f32.gmra.mxu0 %v4254
    %v4437 = vpop.f32.mrf.mxu0
    %v4438 = vadd.f32 0.0, %v4437
    %4439 = vmatmul.f32.gmra.mxu0 %v4255
    %v4440 = vpop.f32.mrf.mxu0
    %v4441 = vadd.f32 0.0, %v4440
    %4442 = vdwg.mxu0
    %4443 = vmatpush.xpose.msra.mxu0 %v4319
    %4444 = vmatpush.xpose.msra.mxu0 %v4318
    %4445 = vmatpush.xpose.msra.mxu0 %v4317
    %4446 = vmatpush.xpose.msra.mxu0 %v4316
    %4447 = vmatpush.xpose.msra.mxu0 %v4315
    %4448 = vmatpush.xpose.msra.mxu0 %v4314
    %4449 = vmatpush.xpose.msra.mxu0 %v4313
    %4450 = vmatpush.xpose.msra.mxu0 %v4312
    %4451 = vmatpush.xpose.msra.mxu0 %v4311
    %4452 = vmatpush.xpose.msra.mxu0 %v4310
    %4453 = vmatpush.xpose.msra.mxu0 %v4309
    %4454 = vmatpush.xpose.msra.mxu0 %v4308
    %4455 = vmatpush.xpose.msra.mxu0 %v4307
    %4456 = vmatpush.xpose.msra.mxu0 %v4306
    %4457 = vmatpush.xpose.msra.mxu0 %v4305
    %4458 = vmatpush.xpose.msra.mxu0 %v4304
    %4459 = vmatmul.f32.gmra.mxu0 %v4248
    %v4460 = vpop.f32.mrf.mxu0
    %v4461 = vadd.f32 0.0, %v4460
    %4462 = vmatmul.f32.gmra.mxu0 %v4249
    %v4463 = vpop.f32.mrf.mxu0
    %v4464 = vadd.f32 0.0, %v4463
    %4465 = vmatmul.f32.gmra.mxu0 %v4250
    %v4466 = vpop.f32.mrf.mxu0
    %v4467 = vadd.f32 0.0, %v4466
    %4468 = vmatmul.f32.gmra.mxu0 %v4251
    %v4469 = vpop.f32.mrf.mxu0
    %v4470 = vadd.f32 0.0, %v4469
    %4471 = vmatmul.f32.gmra.mxu0 %v4252
    %v4472 = vpop.f32.mrf.mxu0
    %v4473 = vadd.f32 0.0, %v4472
    %4474 = vmatmul.f32.gmra.mxu0 %v4253
    %v4475 = vpop.f32.mrf.mxu0
    %v4476 = vadd.f32 0.0, %v4475
    %4477 = vmatmul.f32.gmra.mxu0 %v4254
    %v4478 = vpop.f32.mrf.mxu0
    %v4479 = vadd.f32 0.0, %v4478
    %4480 = vmatmul.f32.gmra.mxu0 %v4255
    %v4481 = vpop.f32.mrf.mxu0
    %v4482 = vadd.f32 0.0, %v4481
    %4483 = vdwg.mxu0
    %4484 = vst [vmem:[#allocation9] sm:$0xff] %v4338
    %4485 = vst [vmem:[#allocation9 + $0x8] sm:$0xff] %v4379
    %4486 = vst [vmem:[#allocation9 + $0x10] sm:$0xff] %v4420
    %4487 = vst [vmem:[#allocation9 + $0x18] sm:$0xff] %v4461
    %4488 = vst [vmem:[#allocation9 + $0x20] sm:$0xff] %v4341
    %4489 = vst [vmem:[#allocation9 + $0x28] sm:$0xff] %v4382
    %4490 = vst [vmem:[#allocation9 + $0x30] sm:$0xff] %v4423
    %4491 = vst [vmem:[#allocation9 + $0x38] sm:$0xff] %v4464
    %4492 = vst [vmem:[#allocation9 + $0x40] sm:$0xff] %v4344
    %4493 = vst [vmem:[#allocation9 + $0x48] sm:$0xff] %v4385
    %4494 = vst [vmem:[#allocation9 + $0x50] sm:$0xff] %v4426
    %4495 = vst [vmem:[#allocation9 + $0x58] sm:$0xff] %v4467
    %4496 = vst [vmem:[#allocation9 + $0x60] sm:$0xff] %v4347
    %4497 = vst [vmem:[#allocation9 + $0x68] sm:$0xff] %v4388
    %4498 = vst [vmem:[#allocation9 + $0x70] sm:$0xff] %v4429
    %4499 = vst [vmem:[#allocation9 + $0x78] sm:$0xff] %v4470
    %4500 = vst [vmem:[#allocation9 + $0x80] sm:$0xff] %v4350
    %4501 = vst [vmem:[#allocation9 + $0x88] sm:$0xff] %v4391
    %4502 = vst [vmem:[#allocation9 + $0x90] sm:$0xff] %v4432
    %4503 = vst [vmem:[#allocation9 + $0x98] sm:$0xff] %v4473
    %4504 = vst [vmem:[#allocation9 + $0xa0] sm:$0xff] %v4353
    %4505 = vst [vmem:[#allocation9 + $0xa8] sm:$0xff] %v4394
    %4506 = vst [vmem:[#allocation9 + $0xb0] sm:$0xff] %v4435
    %4507 = vst [vmem:[#allocation9 + $0xb8] sm:$0xff] %v4476
    %4508 = vst [vmem:[#allocation9 + $0xc0] sm:$0xff] %v4356
    %4509 = vst [vmem:[#allocation9 + $0xc8] sm:$0xff] %v4397
    %4510 = vst [vmem:[#allocation9 + $0xd0] sm:$0xff] %v4438
    %4511 = vst [vmem:[#allocation9 + $0xd8] sm:$0xff] %v4479
    %4512 = vst [vmem:[#allocation9 + $0xe0] sm:$0xff] %v4359
    %4513 = vst [vmem:[#allocation9 + $0xe8] sm:$0xff] %v4400
    %4514 = vst [vmem:[#allocation9 + $0xf0] sm:$0xff] %v4441
    %4515 = vst [vmem:[#allocation9 + $0xf8] sm:$0xff] %v4482
    // Predicated region
    $region34: #{forward.1} parent=1 // pred_check
      _
    $region35: #{forward.1} parent=1 // pred_check_branch
      %4517 = sbr.rel (0) target = $region37
    $region36: #{forward.1} parent=1 // pred_region
      %4519 = vsyncadd [#allocation6], 0
      %s4520 = sshll.u32 [#allocation9], 4
      %s4521 = int_to_ptr.vmem [resolvable:$true] %s4520
      %s4522 = sshll.u32 %s6, 4
      %s4523 = int_to_ptr.hbm [resolvable:$true] %s4522
      %4528 = dma.vmem_to_hbm [thread:$0]  %s4521, 4096, %s4523, [#allocation6], 512, 512, 32
    $region37: #{forward.1} parent=1 // pred_fallthru
      _
    // Predicated region
    $region38: #{forward.1} parent=1 // pred_check
      _
    $region39: #{forward.1} parent=1 // pred_check_branch
      %4530 = sbr.rel (0) target = $region41
    $region40: #{forward.1} parent=1 // pred_region
      %4532 = dma.done [#allocation6], 4096
    $region41: #{forward.1} parent=1 // pred_fallthru
      _
    %4533 = vsyncpa [#allocation5], 1
    %4534 = vsyncpa [#allocation8], 1
    %4535 = vsyncpa [#allocation6], 1

</llo_original>
